<compile_context>
chip_gen: v7x
topology: tpu7x:2x2x1
jax: 0.10.0
libtpu: 0.0.40
codegen_flags: <defaults>
</compile_context>

<pallas_src>
import functools

import jax
import jax.numpy as jnp
from jax import lax
from jax.experimental import pallas as pl
from jax.experimental.pallas import tpu as pltpu

LEAKY_SLOPE = 0.2
NORM_EPS = 1e-8


def _round_up(x, m):
    return -(-x // m) * m


# --------------------------------------------------------------------------- #
# Kernel 1: edge-tiled attention + fused num|den scatter (accumulated in the
# VMEM-resident output slabs across the "arbitrary" edge-tile axis).
# --------------------------------------------------------------------------- #
def _rgat_scatter_kernel(head_ref, tail_ref, etype_ref,
                         user_ref, ent_ref, q_ref, k_ref,
                         acc_u_ref, acc_t_ref,
                         *, n_edges, tile_e, tiles_per_core):
    c = pl.program_id(0)            # TensorCore split ("parallel")
    t = pl.program_id(1)            # edge tile within split ("arbitrary")

    @pl.when(t == 0)
    def _init():
        acc_u_ref[...] = jnp.zeros_like(acc_u_ref)
        acc_t_ref[...] = jnp.zeros_like(acc_t_ref)

    n_users = user_ref.shape[0]
    n_entities = ent_ref.shape[0]
    n_relations = q_ref.shape[0]

    # One-hot selectors, single bool->f32 cast; reused for gather AND scatter.
    oh_h = (head_ref[...] ==
            lax.broadcasted_iota(jnp.int32, (tile_e, n_users), 1)).astype(jnp.float32)
    oh_t = (tail_ref[...] ==
            lax.broadcasted_iota(jnp.int32, (tile_e, n_entities), 1)).astype(jnp.float32)
    oh_r = (etype_ref[...] ==
            lax.broadcasted_iota(jnp.int32, (tile_e, n_relations), 1)).astype(jnp.float32)

    # MXU gathers (replace the old scalar per-row copy loop).
    uh = jnp.dot(oh_h, user_ref[...], preferred_element_type=jnp.float32)   # (TE, D)
    xt = jnp.dot(oh_t, ent_ref[...], preferred_element_type=jnp.float32)    # (TE, D)
    qe = jnp.dot(oh_r, q_ref[...], preferred_element_type=jnp.float32)      # (TE, D) = W1 r_e
    ke = jnp.dot(oh_r, k_ref[...], preferred_element_type=jnp.float32)      # (TE, D) = W2 r_e

    # e = LeakyReLU(sum((cat[u_h,x_t] @ W) * r_e)) == LeakyReLU(u_h.q_e + x_t.k_e)
    e_in = jnp.sum(uh * qe + xt * ke, axis=-1, keepdims=True)               # (TE, 1)
    e = jnp.where(e_in >= 0, e_in, LEAKY_SLOPE * e_in)

    # TODO(synk): like the torch module's e_softmax, exp() is taken without a
    #             per-segment max shift, so extreme logits can overflow (this
    #             matches the spec's semantics exactly).
    base = (c * tiles_per_core + t) * tile_e
    eid = base + lax.broadcasted_iota(jnp.int32, (tile_e, 1), 0)
    valid = (eid < n_edges).astype(jnp.float32)                             # mask padded edges
    e_exp = jnp.exp(e) * valid                                              # (TE, 1)

    # Fused softmax numerator|denominator payloads; one scatter matmul per side
    # (contract over the edge axis), accumulated in f32 output slabs.
    payload_u = jnp.concatenate([xt * e_exp, e_exp], axis=-1)               # (TE, D+1) -> head
    payload_t = jnp.concatenate([uh * e_exp, e_exp], axis=-1)               # (TE, D+1) -> tail
    scat_u = lax.dot_general(oh_h, payload_u, (((0,), (0,)), ((), ())),
                             preferred_element_type=jnp.float32)            # (U, D+1)
    scat_t = lax.dot_general(oh_t, payload_t, (((0,), (0,)), ((), ())),
                             preferred_element_type=jnp.float32)            # (N, D+1)

    acc_u_ref[...] += scat_u[None]
    acc_t_ref[...] += scat_t[None]


# --------------------------------------------------------------------------- #
# Kernel 2: node-tiled epilogue — softmax divide, residual, dropout, L2-norm,
# running "_all" accumulation. Keeps the dropout masks out of kernel-1 residency.
# --------------------------------------------------------------------------- #
def _rgat_epilogue_kernel(acc_ref, prev_ref, drop_ref, out_ref, *, latdim):
    d = latdim
    acc = acc_ref[...]
    prev = prev_ref[...]
    num = acc[:, :d]
    den = acc[:, d:d + 1]
    # softmax divide as multiply-by-guarded-reciprocal (EUP slot)
    inv_den = pl.reciprocal(jnp.where(den > 0.0, den, 1.0), approx=True)
    agg = num * inv_den + prev                  # scatter_sum(...) + residual
    agg = agg * drop_ref[...]                   # nn.Dropout (host-precomputed mask)
    # F.normalize(p=2, dim=-1, eps=1e-8): x / max(||x||, eps) via one rsqrt
    sumsq = jnp.sum(agg * agg, axis=-1, keepdims=True)
    inv_norm = lax.rsqrt(jnp.maximum(sumsq, NORM_EPS * NORM_EPS))
    out_ref[...] = prev + agg * inv_norm        # entity_*_all += normalize(...)


# --------------------------------------------------------------------------- #
# Wrappers
# --------------------------------------------------------------------------- #
def _vmem_budget_bytes(n_users, n_entities, n_relations, latdim, tile_e):
    lane, f32 = 128, 4

    def blk(rows, cols):  # (8,128)-padded f32 block footprint
        return _round_up(max(rows, 1), 8) * _round_up(max(cols, 1), lane) * f32

    resident = (blk(n_users, latdim) + blk(n_entities, latdim)
                + 2 * blk(n_relations, latdim)
                + blk(n_users, latdim + 1) + blk(n_entities, latdim + 1))
    streamed = 3 * blk(tile_e, 1)
    transient = (blk(tile_e, n_users) + blk(tile_e, n_entities) + blk(tile_e, n_relations)
                 + 6 * blk(tile_e, latdim) + 2 * blk(tile_e, latdim + 1))
    total = 2 * (resident + streamed) + 2 * transient      # double buffers + headroom
    return int(min(max(total, 32 * 1024 * 1024), 64 * 1024 * 1024))


def _rgat_scatter(head2, tail2, etype2, user_all, ent_all, q_rel, k_rel,
                  *, n_edges, tile_e, core_split):
    Ep = head2.shape[0]
    U, D = user_all.shape
    N = ent_all.shape[0]
    R = q_rel.shape[0]
    tiles_per_core = Ep // (tile_e * core_split)

    kernel = functools.partial(_rgat_scatter_kernel, n_edges=n_edges,
                               tile_e=tile_e, tiles_per_core=tiles_per_core)

    edge_map = lambda c, t: (c * tiles_per_core + t, 0)
    const_map = lambda c, t: (0, 0)

    grid_spec = pltpu.PrefetchScalarGridSpec(
        num_scalar_prefetch=0,
        grid=(core_split, tiles_per_core),
        in_specs=[
            pl.BlockSpec((tile_e, 1), edge_map),        # head indices
            pl.BlockSpec((tile_e, 1), edge_map),        # tail indices
            pl.BlockSpec((tile_e, 1), edge_map),        # edge types
            pl.BlockSpec((U, D), const_map),            # user table (resident)
            pl.BlockSpec((N, D), const_map),            # entity table (resident)
            pl.BlockSpec((R, D), const_map),            # W1 @ rel  (lane-aligned)
            pl.BlockSpec((R, D), const_map),            # W2 @ rel  (lane-aligned)
        ],
        out_specs=(
            pl.BlockSpec((1, U, D + 1), lambda c, t: (c, 0, 0)),
            pl.BlockSpec((1, N, D + 1), lambda c, t: (c, 0, 0)),
        ),
    )
    acc_u, acc_t = pl.pallas_call(
        kernel,
        grid_spec=grid_spec,
        out_shape=(jax.ShapeDtypeStruct((core_split, U, D + 1), jnp.float32),
                   jax.ShapeDtypeStruct((core_split, N, D + 1), jnp.float32)),
        compiler_params=pltpu.CompilerParams(
            dimension_semantics=("parallel", "arbitrary"),
            vmem_limit_bytes=_vmem_budget_bytes(U, N, R, D, tile_e)),
    )(head2, tail2, etype2, user_all, ent_all, q_rel, k_rel)
    # combine the per-TensorCore partial accumulators (cheap)
    return acc_u.sum(axis=0), acc_t.sum(axis=0)


def _rgat_epilogue(acc, prev, drop, *, tile_n=256):
    rows, d = prev.shape
    rows8 = _round_up(rows, 8)
    tn = min(tile_n, rows8)
    rows_p = _round_up(rows8, tn)
    pad = rows_p - rows
    acc_p = jnp.pad(acc, ((0, pad), (0, 0)))
    prev_p = jnp.pad(prev, ((0, pad), (0, 0)))
    drop_p = jnp.pad(drop, ((0, pad), (0, 0)))
    node_map = lambda i: (i, 0)
    out = pl.pallas_call(
        functools.partial(_rgat_epilogue_kernel, latdim=d),
        grid_spec=pltpu.PrefetchScalarGridSpec(
            num_scalar_prefetch=0,
            grid=(rows_p // tn,),
            in_specs=[pl.BlockSpec((tn, d + 1), node_map),
                      pl.BlockSpec((tn, d), node_map),
                      pl.BlockSpec((tn, d), node_map)],
            out_specs=pl.BlockSpec((tn, d), node_map)),
        out_shape=jax.ShapeDtypeStruct((rows_p, d), jnp.float32),
        compiler_params=pltpu.CompilerParams(dimension_semantics=("parallel",)),
    )(acc_p, prev_p, drop_p)
    return out[:rows]


def rgat_forward(user_embedding, relation_embedding, entity_emb, kg, W,
                 n_hops, mess_dropout=True, dropout_rate=0.4, seed=0,
                 tile_e=256, core_split=2):
    """Pallas implementation of RGAT.forward -> (entity_user_all, entity_emb_all).

    tile_e: 256 on v6e/v7x (MXU contraction depth); use 128 on v5e.
    """
    (head, tail), edge_type = kg
    E = int(head.shape[0])
    U, D = user_embedding.shape
    N = entity_emb.shape[0]

    chunk = tile_e * core_split
    Ep = _round_up(E, chunk)
    pad = Ep - E
    head2 = jnp.pad(head.astype(jnp.int32), (0, pad)).reshape(-1, 1)
    tail2 = jnp.pad(tail.astype(jnp.int32), (0, pad)).reshape(-1, 1)
    etype2 = jnp.pad(edge_type.astype(jnp.int32), (0, pad)).reshape(-1, 1)

    # Relation-side projection precompute (tiny): with W = [[W1],[W2]] (2D, D),
    # sum((cat[u_h,x_t] @ W) * r_e) == u_h.(W1 r_e) + x_t.(W2 r_e).
    qk = jnp.dot(relation_embedding.astype(jnp.float32),
                 W.astype(jnp.float32).T,
                 precision=lax.Precision.HIGHEST)          # (R, 2D)
    q_rel = jnp.asarray(qk[:, :D])                          # two lane-aligned (R, D)
    k_rel = jnp.asarray(qk[:, D:])

    keep = 1.0 - dropout_rate
    key = jax.random.PRNGKey(seed)
    ua = user_embedding.astype(jnp.float32)
    ea = entity_emb.astype(jnp.float32)
    for _ in range(n_hops):
        acc_u, acc_t = _rgat_scatter(head2, tail2, etype2, ua, ea, q_rel, k_rel,
                                     n_edges=E, tile_e=tile_e, core_split=core_split)
        if mess_dropout:
            # TODO(synk): dropout mask uses JAX threefry, not torch's RNG stream,
            #             so stochastic outputs will not bit-match torch.
            key, ku, ke_ = jax.random.split(key, 3)
            drop_u = jax.random.bernoulli(ku, keep, (U, D)).astype(jnp.float32) / keep
            drop_t = jax.random.bernoulli(ke_, keep, (N, D)).astype(jnp.float32) / keep
        else:
            drop_u = jnp.ones((U, D), jnp.float32)
            drop_t = jnp.ones((N, D), jnp.float32)
        ua = _rgat_epilogue(acc_u, ua, drop_u)
        ea = _rgat_epilogue(acc_t, ea, drop_t)
    return ua, ea


def rgat_reference(user_embedding, relation_embedding, entity_emb, kg, W, n_hops):
    """Pure-JAX reference (mess_dropout=False) mirroring the PyTorch module."""
    (head, tail), edge_type = kg
    ua, ea = user_embedding, entity_emb

    def nrm(x):
        n = jnp.sqrt(jnp.sum(x * x, axis=-1, keepdims=True))
        return x / jnp.maximum(n, NORM_EPS)

    for _ in range(n_hops):
        u_h = ua[head]
        x_t = ea[tail]
        r_e = relation_embedding[edge_type]
        a_input = jnp.concatenate([u_h, x_t], axis=-1)
        proj = jnp.dot(a_input, W, precision=lax.Precision.HIGHEST)
        e_in = jnp.sum(proj * r_e, axis=-1)
        e = jnp.where(e_in >= 0, e_in, LEAKY_SLOPE * e_in)
        e_exp = jnp.exp(e)

        den_h = jax.ops.segment_sum(e_exp, head, num_segments=ua.shape[0])[head]
        agg_u = jax.ops.segment_sum(x_t * (e_exp / den_h)[:, None], head,
                                    num_segments=ua.shape[0]) + ua
        den_t = jax.ops.segment_sum(e_exp, tail, num_segments=ea.shape[0])[tail]
        agg_i = jax.ops.segment_sum(u_h * (e_exp / den_t)[:, None], tail,
                                    num_segments=ea.shape[0]) + ea

        ea = ea + nrm(agg_i)
        ua = ua + nrm(agg_u)
    return ua, ea


if __name__ == "__main__":
    latdim = 32
    n_users = 8
    n_entities = 16
    n_relations = 4
    n_edges = 600          # not a multiple of core_split*tile_e -> exercises padding
    n_hops = 2

    key = jax.random.PRNGKey(0)
    k_w, k_u, k_e, k_r, k_h, k_t, k_ty = jax.random.split(key, 7)

    # xavier_uniform with gain = calculate_gain('relu') = sqrt(2)
    gain = jnp.sqrt(2.0)
    bound = gain * jnp.sqrt(6.0 / (2 * latdim + latdim))
    W = jax.random.uniform(k_w, (2 * latdim, latdim), jnp.float32, -bound, bound)

    user_embedding = jax.random.normal(k_u, (n_users, latdim), jnp.float32) * 0.1
    entity_emb = jax.random.normal(k_e, (n_entities, latdim), jnp.float32) * 0.1
    relation_embedding = jax.random.normal(k_r, (n_relations, latdim), jnp.float32) * 0.1

    head = jax.random.randint(k_h, (n_edges,), 0, n_users, jnp.int32)
    tail = jax.random.randint(k_t, (n_edges,), 0, n_entities, jnp.int32)
    edge_type = jax.random.randint(k_ty, (n_edges,), 0, n_relations, jnp.int32)
    kg = ((head, tail), edge_type)

    # deterministic path (mess_dropout=False): check against pure-JAX reference
    user_out, ent_out = rgat_forward(
        user_embedding, relation_embedding, entity_emb, kg, W,
        n_hops=n_hops, mess_dropout=False)
    jax.block_until_ready((user_out, ent_out))

    user_ref, ent_ref = rgat_reference(
        user_embedding, relation_embedding, entity_emb, kg, W, n_hops=n_hops)
    assert jnp.allclose(user_out, user_ref, rtol=1e-2, atol=1e-2), (
        float(jnp.max(jnp.abs(user_out - user_ref))))
    assert jnp.allclose(ent_out, ent_ref, rtol=1e-2, atol=1e-2), (
        float(jnp.max(jnp.abs(ent_out - ent_ref))))

    # stochastic path (mess_dropout=True) with host-precomputed dropout masks
    user_do, ent_do = rgat_forward(
        user_embedding, relation_embedding, entity_emb, kg, W,
        n_hops=n_hops, mess_dropout=True, dropout_rate=0.4, seed=1234)
    jax.block_until_ready((user_do, ent_do))
    assert bool(jnp.all(jnp.isfinite(user_do))) and bool(jnp.all(jnp.isfinite(ent_do)))

    print("KERNEL_OK")
</pallas_src>

<mosaic_0001>
module attributes {stable_mosaic.version = 11 : i64} {
  func.func @_rgat_scatter_kernel(%arg0: i32, %arg1: i32, %arg2: memref<256x1xi32, #tpu.memory_space<vmem>>, %arg3: memref<256x1xi32, #tpu.memory_space<vmem>>, %arg4: memref<256x1xi32, #tpu.memory_space<vmem>>, %arg5: memref<8x32xf32, #tpu.memory_space<vmem>>, %arg6: memref<16x32xf32, #tpu.memory_space<vmem>>, %arg7: memref<4x32xf32, #tpu.memory_space<vmem>>, %arg8: memref<4x32xf32, #tpu.memory_space<vmem>>, %arg9: memref<1x8x33xf32, #tpu.memory_space<vmem>>, %arg10: memref<1x16x33xf32, #tpu.memory_space<vmem>>) attributes {dimension_semantics = [#tpu.dimension_semantics<parallel>, #tpu.dimension_semantics<arbitrary>], iteration_bounds = array<i64: 2, 2>, scalar_prefetch = 0 : i64, scratch_operands = 0 : i64, tpu.core_type = #tpu.core_type<tc>, window_params = [{transform_indices = @transform_0, window_bounds = array<i64: 256, 1>}, {transform_indices = @transform_1, window_bounds = array<i64: 256, 1>}, {transform_indices = @transform_2, window_bounds = array<i64: 256, 1>}, {pipeline_mode = #tpu.pipeline_mode<synchronous>, transform_indices = @transform_3, window_bounds = array<i64: 8, 32>}, {pipeline_mode = #tpu.pipeline_mode<synchronous>, transform_indices = @transform_4, window_bounds = array<i64: 16, 32>}, {pipeline_mode = #tpu.pipeline_mode<synchronous>, transform_indices = @transform_5, window_bounds = array<i64: 4, 32>}, {pipeline_mode = #tpu.pipeline_mode<synchronous>, transform_indices = @transform_6, window_bounds = array<i64: 4, 32>}, {transform_indices = @transform_7, window_bounds = array<i64: 1, 8, 33>}, {transform_indices = @transform_8, window_bounds = array<i64: 1, 16, 33>}]} {
    %c0_i32 = arith.constant 0 : i32
    %0 = arith.cmpi eq, %arg1, %c0_i32 : i32
    %1 = arith.extui %0 : i1 to i32
    %c0_i32_0 = arith.constant 0 : i32
    %2 = arith.cmpi ne, %1, %c0_i32_0 : i32
    scf.if %2 {
      %cst_34 = arith.constant 0.000000e+00 : f32
      %67 = vector.broadcast %cst_34 : f32 to vector<1x8x33xf32>
      %c0_35 = arith.constant 0 : index
      %c0_36 = arith.constant 0 : index
      %c0_37 = arith.constant 0 : index
      %68 = vector.load %arg9[%c0_35, %c0_36, %c0_37] : memref<1x8x33xf32, #tpu.memory_space<vmem>>, vector<1x8x33xf32>
      tpu.vector_store %arg9[%c0_35, %c0_36, %c0_37], %67 {strides = array<i32>} : memref<1x8x33xf32, #tpu.memory_space<vmem>>, vector<1x8x33xf32>,
      %cst_38 = arith.constant 0.000000e+00 : f32
      %69 = vector.broadcast %cst_38 : f32 to vector<1x16x33xf32>
      %c0_39 = arith.constant 0 : index
      %c0_40 = arith.constant 0 : index
      %c0_41 = arith.constant 0 : index
      %70 = vector.load %arg10[%c0_39, %c0_40, %c0_41] : memref<1x16x33xf32, #tpu.memory_space<vmem>>, vector<1x16x33xf32>
      tpu.vector_store %arg10[%c0_39, %c0_40, %c0_41], %69 {strides = array<i32>} : memref<1x16x33xf32, #tpu.memory_space<vmem>>, vector<1x16x33xf32>,
    } else {
    }
    %c0 = arith.constant 0 : index
    %c0_1 = arith.constant 0 : index
    %3 = vector.load %arg2[%c0, %c0_1] : memref<256x1xi32, #tpu.memory_space<vmem>>, vector<256x1xi32>
    %4 = tpu.iota {dimensions = array<i32: 1>} : vector<256x8xi32>
    %5 = vector.broadcast %3 : vector<256x1xi32> to vector<256x8xi32>
    %6 = arith.cmpi eq, %5, %4 : vector<256x8xi32>
    %7 = arith.extui %6 : vector<256x8xi1> to vector<256x8xi32>
    %8 = arith.sitofp %7 : vector<256x8xi32> to vector<256x8xf32>
    %c0_2 = arith.constant 0 : index
    %c0_3 = arith.constant 0 : index
    %9 = vector.load %arg3[%c0_2, %c0_3] : memref<256x1xi32, #tpu.memory_space<vmem>>, vector<256x1xi32>
    %10 = tpu.iota {dimensions = array<i32: 1>} : vector<256x16xi32>
    %11 = vector.broadcast %9 : vector<256x1xi32> to vector<256x16xi32>
    %12 = arith.cmpi eq, %11, %10 : vector<256x16xi32>
    %13 = arith.extui %12 : vector<256x16xi1> to vector<256x16xi32>
    %14 = arith.sitofp %13 : vector<256x16xi32> to vector<256x16xf32>
    %c0_4 = arith.constant 0 : index
    %c0_5 = arith.constant 0 : index
    %15 = vector.load %arg4[%c0_4, %c0_5] : memref<256x1xi32, #tpu.memory_space<vmem>>, vector<256x1xi32>
    %16 = tpu.iota {dimensions = array<i32: 1>} : vector<256x4xi32>
    %17 = vector.broadcast %15 : vector<256x1xi32> to vector<256x4xi32>
    %18 = arith.cmpi eq, %17, %16 : vector<256x4xi32>
    %19 = arith.extui %18 : vector<256x4xi1> to vector<256x4xi32>
    %20 = arith.sitofp %19 : vector<256x4xi32> to vector<256x4xf32>
    %c0_6 = arith.constant 0 : index
    %c0_7 = arith.constant 0 : index
    %21 = vector.load %arg5[%c0_6, %c0_7] : memref<8x32xf32, #tpu.memory_space<vmem>>, vector<8x32xf32>
    %cst = arith.constant dense<0.000000e+00> : vector<256x32xf32>
    %22 = tpu.matmul %8, %21, %cst {dimension_numbers = #tpu.dot_dimension_numbers<[1], [0], [0], [1], [0, 0, 1, 1], [], []>} : vector<256x8xf32>, vector<8x32xf32>, vector<256x32xf32> -> vector<256x32xf32>
    %c0_8 = arith.constant 0 : index
    %c0_9 = arith.constant 0 : index
    %23 = vector.load %arg6[%c0_8, %c0_9] : memref<16x32xf32, #tpu.memory_space<vmem>>, vector<16x32xf32>
    %cst_10 = arith.constant dense<0.000000e+00> : vector<256x32xf32>
    %24 = tpu.matmul %14, %23, %cst_10 {dimension_numbers = #tpu.dot_dimension_numbers<[1], [0], [0], [1], [0, 0, 1, 1], [], []>} : vector<256x16xf32>, vector<16x32xf32>, vector<256x32xf32> -> vector<256x32xf32>
    %c0_11 = arith.constant 0 : index
    %c0_12 = arith.constant 0 : index
    %25 = vector.load %arg7[%c0_11, %c0_12] : memref<4x32xf32, #tpu.memory_space<vmem>>, vector<4x32xf32>
    %cst_13 = arith.constant dense<0.000000e+00> : vector<256x32xf32>
    %26 = tpu.matmul %20, %25, %cst_13 {dimension_numbers = #tpu.dot_dimension_numbers<[1], [0], [0], [1], [0, 0, 1, 1], [], []>} : vector<256x4xf32>, vector<4x32xf32>, vector<256x32xf32> -> vector<256x32xf32>
    %c0_14 = arith.constant 0 : index
    %c0_15 = arith.constant 0 : index
    %27 = vector.load %arg8[%c0_14, %c0_15] : memref<4x32xf32, #tpu.memory_space<vmem>>, vector<4x32xf32>
    %cst_16 = arith.constant dense<0.000000e+00> : vector<256x32xf32>
    %28 = tpu.matmul %20, %27, %cst_16 {dimension_numbers = #tpu.dot_dimension_numbers<[1], [0], [0], [1], [0, 0, 1, 1], [], []>} : vector<256x4xf32>, vector<4x32xf32>, vector<256x32xf32> -> vector<256x32xf32>
    %29 = arith.mulf %22, %26 : vector<256x32xf32>
    %30 = arith.mulf %24, %28 : vector<256x32xf32>
    %31 = arith.addf %29, %30 : vector<256x32xf32>
    %cst_17 = arith.constant dense<0.000000e+00> : vector<256xf32>
    %32 = vector.multi_reduction <add>, %31, %cst_17 [1] : vector<256x32xf32> to vector<256xf32>
    %33 = vector.shape_cast %32 : vector<256xf32> to vector<256x1xf32>
    %cst_18 = arith.constant 0.000000e+00 : f32
    %34 = vector.broadcast %cst_18 : f32 to vector<256x1xf32>
    %35 = arith.cmpf oge, %33, %34 : vector<256x1xf32>
    %cst_19 = arith.constant 2.000000e-01 : f32
    %36 = vector.broadcast %cst_19 : f32 to vector<256x1xf32>
    %37 = arith.mulf %36, %33 : vector<256x1xf32>
    %38 = arith.select %35, %33, %37 : vector<256x1xi1>, vector<256x1xf32>
    %c2_i32 = arith.constant 2 : i32
    %39 = arith.muli %arg0, %c2_i32 : i32
    %40 = arith.addi %39, %arg1 : i32
    %c256_i32 = arith.constant 256 : i32
    %41 = arith.muli %40, %c256_i32 : i32
    %42 = tpu.iota {dimensions = array<i32: 0>} : vector<256x1xi32>
    %43 = vector.broadcast %41 : i32 to vector<256x1xi32>
    %44 = arith.addi %43, %42 : vector<256x1xi32>
    %c600_i32 = arith.constant 600 : i32
    %45 = vector.broadcast %c600_i32 : i32 to vector<256x1xi32>
    %46 = arith.cmpi slt, %44, %45 : vector<256x1xi32>
    %47 = arith.extui %46 : vector<256x1xi1> to vector<256x1xi32>
    %48 = arith.sitofp %47 : vector<256x1xi32> to vector<256x1xf32>
    %49 = math.exp %38 : vector<256x1xf32>
    %50 = arith.mulf %49, %48 : vector<256x1xf32>
    %51 = vector.broadcast %50 : vector<256x1xf32> to vector<256x32xf32>
    %52 = arith.mulf %24, %51 : vector<256x32xf32>
    %53 = tpu.concatenate %52, %50 in 1 : vector<256x32xf32>, vector<256x1xf32> -> vector<256x33xf32>
    %54 = vector.broadcast %50 : vector<256x1xf32> to vector<256x32xf32>
    %55 = arith.mulf %22, %54 : vector<256x32xf32>
    %56 = tpu.concatenate %55, %50 in 1 : vector<256x32xf32>, vector<256x1xf32> -> vector<256x33xf32>
    %cst_20 = arith.constant dense<0.000000e+00> : vector<8x33xf32>
    %57 = tpu.matmul %8, %53, %cst_20 {dimension_numbers = #tpu.dot_dimension_numbers<[0], [0], [1], [1], [0, 1, 1, 1], [], []>} : vector<256x8xf32>, vector<256x33xf32>, vector<8x33xf32> -> vector<8x33xf32>
    %cst_21 = arith.constant dense<0.000000e+00> : vector<16x33xf32>
    %58 = tpu.matmul %14, %56, %cst_21 {dimension_numbers = #tpu.dot_dimension_numbers<[0], [0], [1], [1], [0, 1, 1, 1], [], []>} : vector<256x16xf32>, vector<256x33xf32>, vector<16x33xf32> -> vector<16x33xf32>
    %c0_22 = arith.constant 0 : index
    %c0_23 = arith.constant 0 : index
    %c0_24 = arith.constant 0 : index
    %59 = vector.load %arg9[%c0_22, %c0_23, %c0_24] : memref<1x8x33xf32, #tpu.memory_space<vmem>>, vector<1x8x33xf32>
    %60 = vector.shape_cast %57 : vector<8x33xf32> to vector<1x8x33xf32>
    %61 = arith.addf %59, %60 : vector<1x8x33xf32>
    %c0_25 = arith.constant 0 : index
    %c0_26 = arith.constant 0 : index
    %c0_27 = arith.constant 0 : index
    %62 = vector.load %arg9[%c0_25, %c0_26, %c0_27] : memref<1x8x33xf32, #tpu.memory_space<vmem>>, vector<1x8x33xf32>
    tpu.vector_store %arg9[%c0_25, %c0_26, %c0_27], %61 {strides = array<i32>} : memref<1x8x33xf32, #tpu.memory_space<vmem>>, vector<1x8x33xf32>,
    %c0_28 = arith.constant 0 : index
    %c0_29 = arith.constant 0 : index
    %c0_30 = arith.constant 0 : index
    %63 = vector.load %arg10[%c0_28, %c0_29, %c0_30] : memref<1x16x33xf32, #tpu.memory_space<vmem>>, vector<1x16x33xf32>
    %64 = vector.shape_cast %58 : vector<16x33xf32> to vector<1x16x33xf32>
    %65 = arith.addf %63, %64 : vector<1x16x33xf32>
    %c0_31 = arith.constant 0 : index
    %c0_32 = arith.constant 0 : index
    %c0_33 = arith.constant 0 : index
    %66 = vector.load %arg10[%c0_31, %c0_32, %c0_33] : memref<1x16x33xf32, #tpu.memory_space<vmem>>, vector<1x16x33xf32>
    tpu.vector_store %arg10[%c0_31, %c0_32, %c0_33], %65 {strides = array<i32>} : memref<1x16x33xf32, #tpu.memory_space<vmem>>, vector<1x16x33xf32>,
    return
  }
  func.func @transform_0(%arg0: i32, %arg1: i32) -> (i32, i32) {
    %c2_i32 = arith.constant 2 : i32
    %0 = arith.muli %arg0, %c2_i32 : i32
    %1 = arith.addi %0, %arg1 : i32
    %c0_i32 = arith.constant 0 : i32
    %c0_i32_0 = arith.constant 0 : i32
    return %1, %c0_i32 : i32, i32
  }
  func.func @transform_1(%arg0: i32, %arg1: i32) -> (i32, i32) {
    %c2_i32 = arith.constant 2 : i32
    %0 = arith.muli %arg0, %c2_i32 : i32
    %1 = arith.addi %0, %arg1 : i32
    %c0_i32 = arith.constant 0 : i32
    %c0_i32_0 = arith.constant 0 : i32
    return %1, %c0_i32 : i32, i32
  }
  func.func @transform_2(%arg0: i32, %arg1: i32) -> (i32, i32) {
    %c2_i32 = arith.constant 2 : i32
    %0 = arith.muli %arg0, %c2_i32 : i32
    %1 = arith.addi %0, %arg1 : i32
    %c0_i32 = arith.constant 0 : i32
    %c0_i32_0 = arith.constant 0 : i32
    return %1, %c0_i32 : i32, i32
  }
  func.func @transform_3(%arg0: i32, %arg1: i32) -> (i32, i32) {
    %c0_i32 = arith.constant 0 : i32
    %c0_i32_0 = arith.constant 0 : i32
    %c0_i32_1 = arith.constant 0 : i32
    return %c0_i32, %c0_i32_0 : i32, i32
  }
  func.func @transform_4(%arg0: i32, %arg1: i32) -> (i32, i32) {
    %c0_i32 = arith.constant 0 : i32
    %c0_i32_0 = arith.constant 0 : i32
    %c0_i32_1 = arith.constant 0 : i32
    return %c0_i32, %c0_i32_0 : i32, i32
  }
  func.func @transform_5(%arg0: i32, %arg1: i32) -> (i32, i32) {
    %c0_i32 = arith.constant 0 : i32
    %c0_i32_0 = arith.constant 0 : i32
    %c0_i32_1 = arith.constant 0 : i32
    return %c0_i32, %c0_i32_0 : i32, i32
  }
  func.func @transform_6(%arg0: i32, %arg1: i32) -> (i32, i32) {
    %c0_i32 = arith.constant 0 : i32
    %c0_i32_0 = arith.constant 0 : i32
    %c0_i32_1 = arith.constant 0 : i32
    return %c0_i32, %c0_i32_0 : i32, i32
  }
  func.func @transform_7(%arg0: i32, %arg1: i32) -> (i32, i32, i32) {
    %c0_i32 = arith.constant 0 : i32
    %c0_i32_0 = arith.constant 0 : i32
    %c0_i32_1 = arith.constant 0 : i32
    return %arg0, %c0_i32, %c0_i32_0 : i32, i32, i32
  }
  func.func @transform_8(%arg0: i32, %arg1: i32) -> (i32, i32, i32) {
    %c0_i32 = arith.constant 0 : i32
    %c0_i32_0 = arith.constant 0 : i32
    %c0_i32_1 = arith.constant 0 : i32
    return %arg0, %c0_i32, %c0_i32_0 : i32, i32, i32
  }
}

</mosaic_0001>

<llo_original>
// kernel: tpu_custom_call.1
$region0: #{tpu_custom_call.1}
  #allocation0 [shape = 'u32[]', space=smem, size = 0x4, offset = 0x4, fixed_abs, tag = 'smem constant byte address 0x4 - core index']
  #allocation1 [shape = 'u32[144,128]{1,0:T(1,128)}', space=vmem, size = 0x12000, scoped, tag = 'internal scratch']
  %s0 = inlined_call_operand.vmem [shape: s32[1024,1], index: 0, kind: input, shape index: {}]
  %s1 = inlined_call_operand.vmem [shape: s32[1024,1], index: 1, kind: input, shape index: {}]
  %s2 = inlined_call_operand.vmem [shape: s32[1024,1], index: 2, kind: input, shape index: {}]
  %s3 = inlined_call_operand.vmem [shape: f32[8,32], index: 3, kind: input, shape index: {}]
  %s4 = inlined_call_operand.vmem [shape: f32[16,32], index: 4, kind: input, shape index: {}]
  %s5 = inlined_call_operand.vmem [shape: f32[4,32], index: 5, kind: input, shape index: {}]
  %s6 = inlined_call_operand.vmem [shape: f32[4,32], index: 6, kind: input, shape index: {}]
  %s7 = inlined_call_operand.hbm [shape: f32[2,8,33], index: 7, kind: output, shape index: {0}]
  %s8 = inlined_call_operand.hbm [shape: f32[2,16,33], index: 8, kind: output, shape index: {1}]
  %9 = xla_tuple %s7, %s8
  %s10 = sld [smem:[#allocation0]]
  $region73: #{tpu_custom_call.1} parent=0
    _
  %s12 = ssub.s32 1, %s10
  %s13 = scalar_select 0, %s12, %s10
  $region1: #{tpu_custom_call.1} parent=0
    #allocation2 [shape = 'u8[8192]{0}', space=vmem, size = 0x2000, scoped, tag = 'output window, operand 0']
    #allocation3 [shape = 's32[2]{0}', space=sflag, size = 0x8, scoped, tag = 'scoped memory for tpu_custom_call.1']
    #allocation4 [shape = 'u8[16384]{0}', space=vmem, size = 0x4000, scoped, tag = 'output window, operand 1']
    #allocation5 [shape = 's32[2]{0}', space=sflag, size = 0x8, scoped, tag = 'scoped memory for tpu_custom_call.1']
    %14 = vsyncpa [#allocation3], 0
    %s15 = scalar_lea.sflag [#allocation3], 1
    %16 = vsyncpa %s15, 0
    %17 = vsyncpa [#allocation5], 0
    %s18 = scalar_lea.sflag [#allocation5], 1
    %19 = vsyncpa %s18, 0
    loop: start=0, step=1, limit=6
    $region2: #{tpu_custom_call.1} parent=1 // loop_pre_header
      _
    $region3: #{tpu_custom_call.1} parent=1 // loop_header
      %s21 = sphi 0, %s25
      %p22 = scmp.ge.s32.totalorder %s21, 6
      %s28 = sphi 0, %s40
      %s29 = sphi 0, %s36
      %s30 = sphi 0, %s28
      %s31 = sphi 0, %s29
      %s32 = sphi 0, %s30
      %s33 = sphi 0, %s31
      %s47 = sphi 0, %s49
      %s50 = sphi 0, %s47
      %s51 = sphi 0, %s50
      %s67 = sphi 0, %s51
      %s77 = sphi 0, %s79
      %s80 = sphi 0, %s77
      %s81 = sphi 0, %s80
      %s97 = sphi 0, %s81
      %s107 = sphi 0, %s109
      %s110 = sphi 0, %s107
      %s111 = sphi 0, %s110
      %s127 = sphi 0, %s111
      %s131 = sphi 0, %s131
      %s133 = sphi 0, %s131
      %s134 = sphi 0, %s133
      %s148 = sphi 0, %s134
      %s152 = sphi 0, %s152
      %s154 = sphi 0, %s152
      %s155 = sphi 0, %s154
      %s169 = sphi 0, %s155
      %s173 = sphi 0, %s173
      %s175 = sphi 0, %s173
      %s176 = sphi 0, %s175
      %s190 = sphi 0, %s176
      %s194 = sphi 0, %s194
      %s196 = sphi 0, %s194
      %s197 = sphi 0, %s196
      %s211 = sphi 0, %s197
      %s217 = sphi 0, %s219
      %s220 = sphi 0, %s217
      %s221 = sphi 0, %s220
      %s237 = sphi 0, %s221
      %s243 = sphi 0, %s245
      %s246 = sphi 0, %s243
      %s247 = sphi 0, %s246
      %s263 = sphi 0, %s247
    $region4: #{tpu_custom_call.1} parent=1 // loop_header_branch
      %24 = sbr.rel (%p22) target = $region8
    $region5: #{tpu_custom_call.1} parent=1 // loop_body
      %s26 = ssub.s32 %s21, 1
      %s27 = ssub.s32 %s21, 2
      %s34 = sadd.s32 1, %s29
      %p35 = scmp.ge.s32.totalorder %s34, 2
      %s36 = scalar_select %p35, 0, %s34
      %s37 = sadd.s32 1, %s28
      %s38 = scalar_select %p35, %s37, %s28
      %p39 = scmp.ge.s32.totalorder %s38, 2
      %s40 = scalar_select %p39, 0, %s38
      %s41 = smul.u32 %s28, 2
      %s42 = sadd.s32 %s41, %s29
      %s43 = smul.u32 %s40, 2
      %s44 = sadd.s32 %s43, %s36
      %s45 = ssub.s32 %s42, %s44
      %p46 = scmp.eq.s32.totalorder %s45, 0
      %s48 = sadd.s32 %s47, 1
      %s49 = scalar_select %p46, %s47, %s48
      %p52 = pneg %p46
      %p53 = scmp.eq.s32.totalorder %s21, 3
      %p54 = por %p52, %p53
      %p55 = scmp.ne.s32.totalorder %s47, %s50
      %p56 = scmp.eq.s32.totalorder %s21, 0
      %p57 = por %p55, %p56
      %p58 = scmp.ne.s32.totalorder %s47, %s50
      %p59 = scmp.eq.s32.totalorder %s26, 3
      %p60 = por %p58, %p59
      %p61 = scmp.ne.s32.totalorder %s50, %s51
      %p62 = scmp.eq.s32.totalorder %s26, 0
      %p63 = por %p61, %p62
      %p64 = scmp.ne.s32.totalorder %s50, %s51
      %p65 = scmp.eq.s32.totalorder %s27, 3
      %p66 = por %p64, %p65
      %p68 = scmp.ne.s32.totalorder %s51, %s67
      %p69 = scmp.eq.s32.totalorder %s27, 0
      %p70 = por %p68, %p69
      %s71 = smul.u32 %s28, 2
      %s72 = sadd.s32 %s71, %s29
      %s73 = smul.u32 %s40, 2
      %s74 = sadd.s32 %s73, %s36
      %s75 = ssub.s32 %s72, %s74
      %p76 = scmp.eq.s32.totalorder %s75, 0
      %s78 = sadd.s32 %s77, 1
      %s79 = scalar_select %p76, %s77, %s78
      %p82 = pneg %p76
      %p83 = scmp.eq.s32.totalorder %s21, 3
      %p84 = por %p82, %p83
      %p85 = scmp.ne.s32.totalorder %s77, %s80
      %p86 = scmp.eq.s32.totalorder %s21, 0
      %p87 = por %p85, %p86
      %p88 = scmp.ne.s32.totalorder %s77, %s80
      %p89 = scmp.eq.s32.totalorder %s26, 3
      %p90 = por %p88, %p89
      %p91 = scmp.ne.s32.totalorder %s80, %s81
      %p92 = scmp.eq.s32.totalorder %s26, 0
      %p93 = por %p91, %p92
      %p94 = scmp.ne.s32.totalorder %s80, %s81
      %p95 = scmp.eq.s32.totalorder %s27, 3
      %p96 = por %p94, %p95
      %p98 = scmp.ne.s32.totalorder %s81, %s97
      %p99 = scmp.eq.s32.totalorder %s27, 0
      %p100 = por %p98, %p99
      %s101 = smul.u32 %s28, 2
      %s102 = sadd.s32 %s101, %s29
      %s103 = smul.u32 %s40, 2
      %s104 = sadd.s32 %s103, %s36
      %s105 = ssub.s32 %s102, %s104
      %p106 = scmp.eq.s32.totalorder %s105, 0
      %s108 = sadd.s32 %s107, 1
      %s109 = scalar_select %p106, %s107, %s108
      %p112 = pneg %p106
      %p113 = scmp.eq.s32.totalorder %s21, 3
      %p114 = por %p112, %p113
      %p115 = scmp.ne.s32.totalorder %s107, %s110
      %p116 = scmp.eq.s32.totalorder %s21, 0
      %p117 = por %p115, %p116
      %p118 = scmp.ne.s32.totalorder %s107, %s110
      %p119 = scmp.eq.s32.totalorder %s26, 3
      %p120 = por %p118, %p119
      %p121 = scmp.ne.s32.totalorder %s110, %s111
      %p122 = scmp.eq.s32.totalorder %s26, 0
      %p123 = por %p121, %p122
      %p124 = scmp.ne.s32.totalorder %s110, %s111
      %p125 = scmp.eq.s32.totalorder %s27, 3
      %p126 = por %p124, %p125
      %p128 = scmp.ne.s32.totalorder %s111, %s127
      %p129 = scmp.eq.s32.totalorder %s27, 0
      %p130 = por %p128, %p129
      %s132 = sadd.s32 %s131, 1
      %p135 = scmp.eq.s32.totalorder %s21, 3
      %p136 = scmp.ne.s32.totalorder %s131, %s133
      %p137 = scmp.eq.s32.totalorder %s21, 0
      %p138 = por %p136, %p137
      %p139 = scmp.ne.s32.totalorder %s131, %s133
      %p140 = scmp.eq.s32.totalorder %s26, 3
      %p141 = por %p139, %p140
      %p142 = scmp.ne.s32.totalorder %s133, %s134
      %p143 = scmp.eq.s32.totalorder %s26, 0
      %p144 = por %p142, %p143
      %p145 = scmp.ne.s32.totalorder %s133, %s134
      %p146 = scmp.eq.s32.totalorder %s27, 3
      %p147 = por %p145, %p146
      %p149 = scmp.ne.s32.totalorder %s134, %s148
      %p150 = scmp.eq.s32.totalorder %s27, 0
      %p151 = por %p149, %p150
      %s153 = sadd.s32 %s152, 1
      %p156 = scmp.eq.s32.totalorder %s21, 3
      %p157 = scmp.ne.s32.totalorder %s152, %s154
      %p158 = scmp.eq.s32.totalorder %s21, 0
      %p159 = por %p157, %p158
      %p160 = scmp.ne.s32.totalorder %s152, %s154
      %p161 = scmp.eq.s32.totalorder %s26, 3
      %p162 = por %p160, %p161
      %p163 = scmp.ne.s32.totalorder %s154, %s155
      %p164 = scmp.eq.s32.totalorder %s26, 0
      %p165 = por %p163, %p164
      %p166 = scmp.ne.s32.totalorder %s154, %s155
      %p167 = scmp.eq.s32.totalorder %s27, 3
      %p168 = por %p166, %p167
      %p170 = scmp.ne.s32.totalorder %s155, %s169
      %p171 = scmp.eq.s32.totalorder %s27, 0
      %p172 = por %p170, %p171
      %s174 = sadd.s32 %s173, 1
      %p177 = scmp.eq.s32.totalorder %s21, 3
      %p178 = scmp.ne.s32.totalorder %s173, %s175
      %p179 = scmp.eq.s32.totalorder %s21, 0
      %p180 = por %p178, %p179
      %p181 = scmp.ne.s32.totalorder %s173, %s175
      %p182 = scmp.eq.s32.totalorder %s26, 3
      %p183 = por %p181, %p182
      %p184 = scmp.ne.s32.totalorder %s175, %s176
      %p185 = scmp.eq.s32.totalorder %s26, 0
      %p186 = por %p184, %p185
      %p187 = scmp.ne.s32.totalorder %s175, %s176
      %p188 = scmp.eq.s32.totalorder %s27, 3
      %p189 = por %p187, %p188
      %p191 = scmp.ne.s32.totalorder %s176, %s190
      %p192 = scmp.eq.s32.totalorder %s27, 0
      %p193 = por %p191, %p192
      %s195 = sadd.s32 %s194, 1
      %p198 = scmp.eq.s32.totalorder %s21, 3
      %p199 = scmp.ne.s32.totalorder %s194, %s196
      %p200 = scmp.eq.s32.totalorder %s21, 0
      %p201 = por %p199, %p200
      %p202 = scmp.ne.s32.totalorder %s194, %s196
      %p203 = scmp.eq.s32.totalorder %s26, 3
      %p204 = por %p202, %p203
      %p205 = scmp.ne.s32.totalorder %s196, %s197
      %p206 = scmp.eq.s32.totalorder %s26, 0
      %p207 = por %p205, %p206
      %p208 = scmp.ne.s32.totalorder %s196, %s197
      %p209 = scmp.eq.s32.totalorder %s27, 3
      %p210 = por %p208, %p209
      %p212 = scmp.ne.s32.totalorder %s197, %s211
      %p213 = scmp.eq.s32.totalorder %s27, 0
      %p214 = por %p212, %p213
      %s215 = ssub.s32 %s28, %s40
      %p216 = scmp.eq.s32.totalorder %s215, 0
      %s218 = sadd.s32 %s217, 1
      %s219 = scalar_select %p216, %s217, %s218
      %p222 = pneg %p216
      %p223 = scmp.eq.s32.totalorder %s21, 3
      %p224 = por %p222, %p223
      %p225 = scmp.ne.s32.totalorder %s217, %s220
      %p226 = scmp.eq.s32.totalorder %s21, 0
      %p227 = por %p225, %p226
      %p228 = scmp.ne.s32.totalorder %s217, %s220
      %p229 = scmp.eq.s32.totalorder %s26, 3
      %p230 = por %p228, %p229
      %p231 = scmp.ne.s32.totalorder %s220, %s221
      %p232 = scmp.eq.s32.totalorder %s26, 0
      %p233 = por %p231, %p232
      %p234 = scmp.ne.s32.totalorder %s220, %s221
      %p235 = scmp.eq.s32.totalorder %s27, 3
      %p236 = por %p234, %p235
      %p238 = scmp.ne.s32.totalorder %s221, %s237
      %p239 = scmp.eq.s32.totalorder %s27, 0
      %p240 = por %p238, %p239
      %s241 = ssub.s32 %s28, %s40
      %p242 = scmp.eq.s32.totalorder %s241, 0
      %s244 = sadd.s32 %s243, 1
      %s245 = scalar_select %p242, %s243, %s244
      %p248 = pneg %p242
      %p249 = scmp.eq.s32.totalorder %s21, 3
      %p250 = por %p248, %p249
      %p251 = scmp.ne.s32.totalorder %s243, %s246
      %p252 = scmp.eq.s32.totalorder %s21, 0
      %p253 = por %p251, %p252
      %p254 = scmp.ne.s32.totalorder %s243, %s246
      %p255 = scmp.eq.s32.totalorder %s26, 3
      %p256 = por %p254, %p255
      %p257 = scmp.ne.s32.totalorder %s246, %s247
      %p258 = scmp.eq.s32.totalorder %s26, 0
      %p259 = por %p257, %p258
      %p260 = scmp.ne.s32.totalorder %s246, %s247
      %p261 = scmp.eq.s32.totalorder %s27, 3
      %p262 = por %p260, %p261
      %p264 = scmp.ne.s32.totalorder %s247, %s263
      %p265 = scmp.eq.s32.totalorder %s27, 0
      %p266 = por %p264, %p265
      %p267 = scmp.le.s32.totalorder 1, %s21
      %p268 = scmp.lt.s32.totalorder %s21, 5
      %p269 = pnand %p267, %p268
      %p270 = pneg %p269
      // Predicated region
      $region9: #{tpu_custom_call.1} parent=5 // pred_check
        _
      $region10: #{tpu_custom_call.1} parent=5 // pred_check_branch
        %272 = sbr.rel (%p269) target = $region12
      $region11: #{tpu_custom_call.1} parent=5 // pred_region
        %s273 = ssub.s32 %s21, 1
        // Predicated region
        $region13: #{tpu_custom_call.1} parent=11 // pred_check
          %p274 = pneg %p144
        $region14: #{tpu_custom_call.1} parent=11 // pred_check_branch
          %276 = sbr.rel (%p274) target = $region16
        $region15: #{tpu_custom_call.1} parent=11 // pred_region
          _
        $region16: #{tpu_custom_call.1} parent=11 // pred_fallthru
          _
        // Predicated region
        $region17: #{tpu_custom_call.1} parent=11 // pred_check
          %p277 = pneg %p165
        $region18: #{tpu_custom_call.1} parent=11 // pred_check_branch
          %279 = sbr.rel (%p277) target = $region20
        $region19: #{tpu_custom_call.1} parent=11 // pred_region
          _
        $region20: #{tpu_custom_call.1} parent=11 // pred_fallthru
          _
        // Predicated region
        $region21: #{tpu_custom_call.1} parent=11 // pred_check
          %p280 = pneg %p186
        $region22: #{tpu_custom_call.1} parent=11 // pred_check_branch
          %282 = sbr.rel (%p280) target = $region24
        $region23: #{tpu_custom_call.1} parent=11 // pred_region
          _
        $region24: #{tpu_custom_call.1} parent=11 // pred_fallthru
          _
        // Predicated region
        $region25: #{tpu_custom_call.1} parent=11 // pred_check
          %p283 = pneg %p207
        $region26: #{tpu_custom_call.1} parent=11 // pred_check_branch
          %285 = sbr.rel (%p283) target = $region28
        $region27: #{tpu_custom_call.1} parent=11 // pred_region
          _
        $region28: #{tpu_custom_call.1} parent=11 // pred_fallthru
          _
      $region12: #{tpu_custom_call.1} parent=5 // pred_fallthru
        _
      %p286 = scmp.lt.s32.totalorder %s21, 4
      // Predicated region
      $region29: #{tpu_custom_call.1} parent=5 // pred_check
        %p287 = pneg %p286
      $region30: #{tpu_custom_call.1} parent=5 // pred_check_branch
        %289 = sbr.rel (%p287) target = $region32
      $region31: #{tpu_custom_call.1} parent=5 // pred_region
        // Predicated region
        $region33: #{tpu_custom_call.1} parent=31 // pred_check
          %p290 = pneg %p57
        $region34: #{tpu_custom_call.1} parent=31 // pred_check_branch
          %292 = sbr.rel (%p290) target = $region36
        $region35: #{tpu_custom_call.1} parent=31 // pred_region
          %s293 = smul.u32 %s28, 2
          %s294 = sadd.s32 %s293, %s29
          %s295 = smul.u32 32, %s294
          %p296 = scmp.lt.s32.totalorder %s295, 127
          %s297 = scalar_select %p296, %s295, 127
          %s298 = smul.addr %s297, 8
          %s299 = scalar_lea.vmem %s0, %s298
          %s300 = smul.u32 %s28, 2
          %s301 = sadd.s32 %s300, %s29
          %s302 = smul.u32 32, %s301
        $region36: #{tpu_custom_call.1} parent=31 // pred_fallthru
          _
        // Predicated region
        $region37: #{tpu_custom_call.1} parent=31 // pred_check
          %p303 = pneg %p87
        $region38: #{tpu_custom_call.1} parent=31 // pred_check_branch
          %305 = sbr.rel (%p303) target = $region40
        $region39: #{tpu_custom_call.1} parent=31 // pred_region
          %s306 = smul.u32 %s28, 2
          %s307 = sadd.s32 %s306, %s29
          %s308 = smul.u32 32, %s307
          %p309 = scmp.lt.s32.totalorder %s308, 127
          %s310 = scalar_select %p309, %s308, 127
          %s311 = smul.addr %s310, 8
          %s312 = scalar_lea.vmem %s1, %s311
          %s313 = smul.u32 %s28, 2
          %s314 = sadd.s32 %s313, %s29
          %s315 = smul.u32 32, %s314
        $region40: #{tpu_custom_call.1} parent=31 // pred_fallthru
          _
        // Predicated region
        $region41: #{tpu_custom_call.1} parent=31 // pred_check
          %p316 = pneg %p117
        $region42: #{tpu_custom_call.1} parent=31 // pred_check_branch
          %318 = sbr.rel (%p316) target = $region44
        $region43: #{tpu_custom_call.1} parent=31 // pred_region
          %s319 = smul.u32 %s28, 2
          %s320 = sadd.s32 %s319, %s29
          %s321 = smul.u32 32, %s320
          %p322 = scmp.lt.s32.totalorder %s321, 127
          %s323 = scalar_select %p322, %s321, 127
          %s324 = smul.addr %s323, 8
          %s325 = scalar_lea.vmem %s2, %s324
          %s326 = smul.u32 %s28, 2
          %s327 = sadd.s32 %s326, %s29
          %s328 = smul.u32 32, %s327
        $region44: #{tpu_custom_call.1} parent=31 // pred_fallthru
          _
      $region32: #{tpu_custom_call.1} parent=5 // pred_fallthru
        _
      %p329 = scmp.le.s32.totalorder 1, %s21
      %p330 = scmp.lt.s32.totalorder %s21, 5
      %p331 = pnand %p329, %p330
      %p332 = pneg %p331
      // Predicated region
      $region45: #{tpu_custom_call.1} parent=5 // pred_check
        _
      $region46: #{tpu_custom_call.1} parent=5 // pred_check_branch
        %334 = sbr.rel (%p331) target = $region48
      $region47: #{tpu_custom_call.1} parent=5 // pred_region
        %s335 = ssub.s32 %s21, 1
        %s336 = smul.u32 %s30, 2
        %s337 = sadd.s32 %s336, %s31
        %s338 = smul.u32 32, %s337
        %p339 = scmp.lt.s32.totalorder %s338, 127
        %s340 = scalar_select %p339, %s338, 127
        %s341 = smul.addr %s340, 8
        %s342 = scalar_lea.vmem %s0, %s341
        %p343 = pneg %p63
        %p344 = pneg %p60
        %s345 = smul.u32 %s30, 2
        %s346 = sadd.s32 %s345, %s31
        %s347 = smul.u32 32, %s346
        %p348 = scmp.lt.s32.totalorder %s347, 127
        %s349 = scalar_select %p348, %s347, 127
        %s350 = smul.addr %s349, 8
        %s351 = scalar_lea.vmem %s1, %s350
        %p352 = pneg %p93
        %p353 = pneg %p90
        %s354 = smul.u32 %s30, 2
        %s355 = sadd.s32 %s354, %s31
        %s356 = smul.u32 32, %s355
        %p357 = scmp.lt.s32.totalorder %s356, 127
        %s358 = scalar_select %p357, %s356, 127
        %s359 = smul.addr %s358, 8
        %s360 = scalar_lea.vmem %s2, %s359
        %p361 = pneg %p123
        %p362 = pneg %p120
        %p363 = pneg %p144
        %p364 = pneg %p141
        %p365 = pneg %p165
        %p366 = pneg %p162
        %p367 = pneg %p186
        %p368 = pneg %p183
        %p369 = pneg %p207
        %p370 = pneg %p204
        %p371 = pneg %p233
        %p372 = pneg %p230
        %s373 = sand.u32 %s220, 1
        %s374 = scalar_lea.sflag [#allocation3], %s373
        %s375 = sand.u32 %s220, 1
        %s376 = smul.addr %s375, 8
        %s377 = scalar_lea.vmem [#allocation2], %s376
        %p378 = pneg %p259
        %p379 = pneg %p256
        %s380 = sand.u32 %s246, 1
        %s381 = scalar_lea.sflag [#allocation5], %s380
        %s382 = sand.u32 %s246, 1
        %s383 = smul.addr %s382, 16
        %s384 = scalar_lea.vmem [#allocation4], %s383
        %s385 = smul.u32 %s30, 2
        %s386 = sadd.s32 %s385, %s31
        %s387 = smul.u32 32, %s386
        %p388 = scmp.lt.s32.totalorder %s387, 127
        %s389 = scalar_select %p388, %s387, 127
        %s390 = smul.addr %s389, 8
        %s391 = scalar_lea.vmem %s0, %s390
        %s392 = smul.u32 %s30, 2
        %s393 = sadd.s32 %s392, %s31
        %s394 = smul.u32 32, %s393
        %s395 = smul.u32 %s30, 2
        %s396 = sadd.s32 %s395, %s31
        %s397 = smul.u32 32, %s396
        %p398 = scmp.lt.s32.totalorder %s397, 127
        %s399 = scalar_select %p398, %s397, 127
        %s400 = smul.addr %s399, 8
        %s401 = scalar_lea.vmem %s1, %s400
        %s402 = smul.u32 %s30, 2
        %s403 = sadd.s32 %s402, %s31
        %s404 = smul.u32 32, %s403
        %s405 = smul.u32 %s30, 2
        %s406 = sadd.s32 %s405, %s31
        %s407 = smul.u32 32, %s406
        %p408 = scmp.lt.s32.totalorder %s407, 127
        %s409 = scalar_select %p408, %s407, 127
        %s410 = smul.addr %s409, 8
        %s411 = scalar_lea.vmem %s2, %s410
        %s412 = smul.u32 %s30, 2
        %s413 = sadd.s32 %s412, %s31
        %s414 = smul.u32 32, %s413
        %p415 = scmp.eq.s32.totalorder %s31, 0
        // Predicated region
        $region49: #{tpu_custom_call.1} parent=47 // pred_check
          %p416 = pneg %p415
        $region50: #{tpu_custom_call.1} parent=47 // pred_check_branch
          %418 = sbr.rel (%p416) target = $region52
        $region51: #{tpu_custom_call.1} parent=47 // pred_region
          %vm419 = vcmask 269312
          %420 = vst.msk [vmem:[%s377] sm:$0xff] %vm419, 0.0
          %421 = vst.msk [vmem:[%s384] sm:$0xff] %vm419, 0.0
          %422 = vst.msk [vmem:[%s384 + $0x8] sm:$0xff] %vm419, 0.0
        $region52: #{tpu_custom_call.1} parent=47 // pred_fallthru
          _
        %v423 = vld [vmem:[%s391] sm:$0xff]
        %v424 = vld [vmem:[%s391 + $0x8] sm:$0xff]
        %v425 = vld [vmem:[%s391 + $0x10] sm:$0xff]
        %v426 = vld [vmem:[%s391 + $0x18] sm:$0xff]
        %v427 = vld [vmem:[%s391 + $0x20] sm:$0xff]
        %v428 = vld [vmem:[%s391 + $0x28] sm:$0xff]
        %v429 = vld [vmem:[%s391 + $0x30] sm:$0xff]
        %v430 = vld [vmem:[%s391 + $0x38] sm:$0xff]
        %v431 = vld [vmem:[%s391 + $0x40] sm:$0xff]
        %v432 = vld [vmem:[%s391 + $0x48] sm:$0xff]
        %v433 = vld [vmem:[%s391 + $0x50] sm:$0xff]
        %v434 = vld [vmem:[%s391 + $0x58] sm:$0xff]
        %v435 = vld [vmem:[%s391 + $0x60] sm:$0xff]
        %v436 = vld [vmem:[%s391 + $0x68] sm:$0xff]
        %v437 = vld [vmem:[%s391 + $0x70] sm:$0xff]
        %v438 = vld [vmem:[%s391 + $0x78] sm:$0xff]
        %v439 = vld [vmem:[%s391 + $0x80] sm:$0xff]
        %v440 = vld [vmem:[%s391 + $0x88] sm:$0xff]
        %v441 = vld [vmem:[%s391 + $0x90] sm:$0xff]
        %v442 = vld [vmem:[%s391 + $0x98] sm:$0xff]
        %v443 = vld [vmem:[%s391 + $0xa0] sm:$0xff]
        %v444 = vld [vmem:[%s391 + $0xa8] sm:$0xff]
        %v445 = vld [vmem:[%s391 + $0xb0] sm:$0xff]
        %v446 = vld [vmem:[%s391 + $0xb8] sm:$0xff]
        %v447 = vld [vmem:[%s391 + $0xc0] sm:$0xff]
        %v448 = vld [vmem:[%s391 + $0xc8] sm:$0xff]
        %v449 = vld [vmem:[%s391 + $0xd0] sm:$0xff]
        %v450 = vld [vmem:[%s391 + $0xd8] sm:$0xff]
        %v451 = vld [vmem:[%s391 + $0xe0] sm:$0xff]
        %v452 = vld [vmem:[%s391 + $0xe8] sm:$0xff]
        %v453 = vld [vmem:[%s391 + $0xf0] sm:$0xff]
        %v454 = vld [vmem:[%s391 + $0xf8] sm:$0xff]
        %v455 = vlaneseq
        %v456 = vand.u32 %v455, 127
        %457 = vset.pattern.permute.xlu0 0
        %458 = vperm.xlu0 %457, %v423
        %v459 = vpop.permute.xlu0 %458
        %460 = vset.pattern.permute.xlu0 0
        %461 = vperm.xlu0 %460, %v424
        %v462 = vpop.permute.xlu0 %461
        %463 = vset.pattern.permute.xlu0 0
        %464 = vperm.xlu0 %463, %v425
        %v465 = vpop.permute.xlu0 %464
        %466 = vset.pattern.permute.xlu0 0
        %467 = vperm.xlu0 %466, %v426
        %v468 = vpop.permute.xlu0 %467
        %469 = vset.pattern.permute.xlu0 0
        %470 = vperm.xlu0 %469, %v427
        %v471 = vpop.permute.xlu0 %470
        %472 = vset.pattern.permute.xlu0 0
        %473 = vperm.xlu0 %472, %v428
        %v474 = vpop.permute.xlu0 %473
        %475 = vset.pattern.permute.xlu0 0
        %476 = vperm.xlu0 %475, %v429
        %v477 = vpop.permute.xlu0 %476
        %478 = vset.pattern.permute.xlu0 0
        %479 = vperm.xlu0 %478, %v430
        %v480 = vpop.permute.xlu0 %479
        %481 = vset.pattern.permute.xlu0 0
        %482 = vperm.xlu0 %481, %v431
        %v483 = vpop.permute.xlu0 %482
        %484 = vset.pattern.permute.xlu0 0
        %485 = vperm.xlu0 %484, %v432
        %v486 = vpop.permute.xlu0 %485
        %487 = vset.pattern.permute.xlu0 0
        %488 = vperm.xlu0 %487, %v433
        %v489 = vpop.permute.xlu0 %488
        %490 = vset.pattern.permute.xlu0 0
        %491 = vperm.xlu0 %490, %v434
        %v492 = vpop.permute.xlu0 %491
        %493 = vset.pattern.permute.xlu0 0
        %494 = vperm.xlu0 %493, %v435
        %v495 = vpop.permute.xlu0 %494
        %496 = vset.pattern.permute.xlu0 0
        %497 = vperm.xlu0 %496, %v436
        %v498 = vpop.permute.xlu0 %497
        %499 = vset.pattern.permute.xlu0 0
        %500 = vperm.xlu0 %499, %v437
        %v501 = vpop.permute.xlu0 %500
        %502 = vset.pattern.permute.xlu0 0
        %503 = vperm.xlu0 %502, %v438
        %v504 = vpop.permute.xlu0 %503
        %505 = vset.pattern.permute.xlu0 0
        %506 = vperm.xlu0 %505, %v439
        %v507 = vpop.permute.xlu0 %506
        %508 = vset.pattern.permute.xlu0 0
        %509 = vperm.xlu0 %508, %v440
        %v510 = vpop.permute.xlu0 %509
        %511 = vset.pattern.permute.xlu0 0
        %512 = vperm.xlu0 %511, %v441
        %v513 = vpop.permute.xlu0 %512
        %514 = vset.pattern.permute.xlu0 0
        %515 = vperm.xlu0 %514, %v442
        %v516 = vpop.permute.xlu0 %515
        %517 = vset.pattern.permute.xlu0 0
        %518 = vperm.xlu0 %517, %v443
        %v519 = vpop.permute.xlu0 %518
        %520 = vset.pattern.permute.xlu0 0
        %521 = vperm.xlu0 %520, %v444
        %v522 = vpop.permute.xlu0 %521
        %523 = vset.pattern.permute.xlu0 0
        %524 = vperm.xlu0 %523, %v445
        %v525 = vpop.permute.xlu0 %524
        %526 = vset.pattern.permute.xlu0 0
        %527 = vperm.xlu0 %526, %v446
        %v528 = vpop.permute.xlu0 %527
        %529 = vset.pattern.permute.xlu0 0
        %530 = vperm.xlu0 %529, %v447
        %v531 = vpop.permute.xlu0 %530
        %532 = vset.pattern.permute.xlu0 0
        %533 = vperm.xlu0 %532, %v448
        %v534 = vpop.permute.xlu0 %533
        %535 = vset.pattern.permute.xlu0 0
        %536 = vperm.xlu0 %535, %v449
        %v537 = vpop.permute.xlu0 %536
        %538 = vset.pattern.permute.xlu0 0
        %539 = vperm.xlu0 %538, %v450
        %v540 = vpop.permute.xlu0 %539
        %541 = vset.pattern.permute.xlu0 0
        %542 = vperm.xlu0 %541, %v451
        %v543 = vpop.permute.xlu0 %542
        %544 = vset.pattern.permute.xlu0 0
        %545 = vperm.xlu0 %544, %v452
        %v546 = vpop.permute.xlu0 %545
        %547 = vset.pattern.permute.xlu0 0
        %548 = vperm.xlu0 %547, %v453
        %v549 = vpop.permute.xlu0 %548
        %550 = vset.pattern.permute.xlu0 0
        %551 = vperm.xlu0 %550, %v454
        %v552 = vpop.permute.xlu0 %551
        %vm553 = vcmp.eq.s32.totalorder %v459, %v456
        %vm554 = vcmp.eq.s32.totalorder %v462, %v456
        %vm555 = vcmp.eq.s32.totalorder %v465, %v456
        %vm556 = vcmp.eq.s32.totalorder %v468, %v456
        %vm557 = vcmp.eq.s32.totalorder %v471, %v456
        %vm558 = vcmp.eq.s32.totalorder %v474, %v456
        %vm559 = vcmp.eq.s32.totalorder %v477, %v456
        %vm560 = vcmp.eq.s32.totalorder %v480, %v456
        %vm561 = vcmp.eq.s32.totalorder %v483, %v456
        %vm562 = vcmp.eq.s32.totalorder %v486, %v456
        %vm563 = vcmp.eq.s32.totalorder %v489, %v456
        %vm564 = vcmp.eq.s32.totalorder %v492, %v456
        %vm565 = vcmp.eq.s32.totalorder %v495, %v456
        %vm566 = vcmp.eq.s32.totalorder %v498, %v456
        %vm567 = vcmp.eq.s32.totalorder %v501, %v456
        %vm568 = vcmp.eq.s32.totalorder %v504, %v456
        %vm569 = vcmp.eq.s32.totalorder %v507, %v456
        %vm570 = vcmp.eq.s32.totalorder %v510, %v456
        %vm571 = vcmp.eq.s32.totalorder %v513, %v456
        %vm572 = vcmp.eq.s32.totalorder %v516, %v456
        %vm573 = vcmp.eq.s32.totalorder %v519, %v456
        %vm574 = vcmp.eq.s32.totalorder %v522, %v456
        %vm575 = vcmp.eq.s32.totalorder %v525, %v456
        %vm576 = vcmp.eq.s32.totalorder %v528, %v456
        %vm577 = vcmp.eq.s32.totalorder %v531, %v456
        %vm578 = vcmp.eq.s32.totalorder %v534, %v456
        %vm579 = vcmp.eq.s32.totalorder %v537, %v456
        %vm580 = vcmp.eq.s32.totalorder %v540, %v456
        %vm581 = vcmp.eq.s32.totalorder %v543, %v456
        %vm582 = vcmp.eq.s32.totalorder %v546, %v456
        %vm583 = vcmp.eq.s32.totalorder %v549, %v456
        %vm584 = vcmp.eq.s32.totalorder %v552, %v456
        %v585 = vsel %vm553, 1, 0
        %v586 = vsel %vm554, 1, 0
        %v587 = vsel %vm555, 1, 0
        %v588 = vsel %vm556, 1, 0
        %v589 = vsel %vm557, 1, 0
        %v590 = vsel %vm558, 1, 0
        %v591 = vsel %vm559, 1, 0
        %v592 = vsel %vm560, 1, 0
        %v593 = vsel %vm561, 1, 0
        %v594 = vsel %vm562, 1, 0
        %v595 = vsel %vm563, 1, 0
        %v596 = vsel %vm564, 1, 0
        %v597 = vsel %vm565, 1, 0
        %v598 = vsel %vm566, 1, 0
        %v599 = vsel %vm567, 1, 0
        %v600 = vsel %vm568, 1, 0
        %v601 = vsel %vm569, 1, 0
        %v602 = vsel %vm570, 1, 0
        %v603 = vsel %vm571, 1, 0
        %v604 = vsel %vm572, 1, 0
        %v605 = vsel %vm573, 1, 0
        %v606 = vsel %vm574, 1, 0
        %v607 = vsel %vm575, 1, 0
        %v608 = vsel %vm576, 1, 0
        %v609 = vsel %vm577, 1, 0
        %v610 = vsel %vm578, 1, 0
        %v611 = vsel %vm579, 1, 0
        %v612 = vsel %vm580, 1, 0
        %v613 = vsel %vm581, 1, 0
        %v614 = vsel %vm582, 1, 0
        %v615 = vsel %vm583, 1, 0
        %v616 = vsel %vm584, 1, 0
        %v617 = vcvt.s32.f32 %v585
        %v618 = vcvt.s32.f32 %v586
        %v619 = vcvt.s32.f32 %v587
        %v620 = vcvt.s32.f32 %v588
        %v621 = vcvt.s32.f32 %v589
        %v622 = vcvt.s32.f32 %v590
        %v623 = vcvt.s32.f32 %v591
        %v624 = vcvt.s32.f32 %v592
        %v625 = vcvt.s32.f32 %v593
        %v626 = vcvt.s32.f32 %v594
        %v627 = vcvt.s32.f32 %v595
        %v628 = vcvt.s32.f32 %v596
        %v629 = vcvt.s32.f32 %v597
        %v630 = vcvt.s32.f32 %v598
        %v631 = vcvt.s32.f32 %v599
        %v632 = vcvt.s32.f32 %v600
        %v633 = vcvt.s32.f32 %v601
        %v634 = vcvt.s32.f32 %v602
        %v635 = vcvt.s32.f32 %v603
        %v636 = vcvt.s32.f32 %v604
        %v637 = vcvt.s32.f32 %v605
        %v638 = vcvt.s32.f32 %v606
        %v639 = vcvt.s32.f32 %v607
        %v640 = vcvt.s32.f32 %v608
        %v641 = vcvt.s32.f32 %v609
        %v642 = vcvt.s32.f32 %v610
        %v643 = vcvt.s32.f32 %v611
        %v644 = vcvt.s32.f32 %v612
        %v645 = vcvt.s32.f32 %v613
        %v646 = vcvt.s32.f32 %v614
        %v647 = vcvt.s32.f32 %v615
        %v648 = vcvt.s32.f32 %v616
        %v649 = vld [vmem:[%s401] sm:$0xff]
        %v650 = vld [vmem:[%s401 + $0x8] sm:$0xff]
        %v651 = vld [vmem:[%s401 + $0x10] sm:$0xff]
        %v652 = vld [vmem:[%s401 + $0x18] sm:$0xff]
        %v653 = vld [vmem:[%s401 + $0x20] sm:$0xff]
        %v654 = vld [vmem:[%s401 + $0x28] sm:$0xff]
        %v655 = vld [vmem:[%s401 + $0x30] sm:$0xff]
        %v656 = vld [vmem:[%s401 + $0x38] sm:$0xff]
        %v657 = vld [vmem:[%s401 + $0x40] sm:$0xff]
        %v658 = vld [vmem:[%s401 + $0x48] sm:$0xff]
        %v659 = vld [vmem:[%s401 + $0x50] sm:$0xff]
        %v660 = vld [vmem:[%s401 + $0x58] sm:$0xff]
        %v661 = vld [vmem:[%s401 + $0x60] sm:$0xff]
        %v662 = vld [vmem:[%s401 + $0x68] sm:$0xff]
        %v663 = vld [vmem:[%s401 + $0x70] sm:$0xff]
        %v664 = vld [vmem:[%s401 + $0x78] sm:$0xff]
        %v665 = vld [vmem:[%s401 + $0x80] sm:$0xff]
        %v666 = vld [vmem:[%s401 + $0x88] sm:$0xff]
        %v667 = vld [vmem:[%s401 + $0x90] sm:$0xff]
        %v668 = vld [vmem:[%s401 + $0x98] sm:$0xff]
        %v669 = vld [vmem:[%s401 + $0xa0] sm:$0xff]
        %v670 = vld [vmem:[%s401 + $0xa8] sm:$0xff]
        %v671 = vld [vmem:[%s401 + $0xb0] sm:$0xff]
        %v672 = vld [vmem:[%s401 + $0xb8] sm:$0xff]
        %v673 = vld [vmem:[%s401 + $0xc0] sm:$0xff]
        %v674 = vld [vmem:[%s401 + $0xc8] sm:$0xff]
        %v675 = vld [vmem:[%s401 + $0xd0] sm:$0xff]
        %v676 = vld [vmem:[%s401 + $0xd8] sm:$0xff]
        %v677 = vld [vmem:[%s401 + $0xe0] sm:$0xff]
        %v678 = vld [vmem:[%s401 + $0xe8] sm:$0xff]
        %v679 = vld [vmem:[%s401 + $0xf0] sm:$0xff]
        %v680 = vld [vmem:[%s401 + $0xf8] sm:$0xff]
        %681 = vset.pattern.permute.xlu0 0
        %682 = vperm.xlu0 %681, %v649
        %v683 = vpop.permute.xlu0 %682
        %684 = vset.pattern.permute.xlu0 0
        %685 = vperm.xlu0 %684, %v650
        %v686 = vpop.permute.xlu0 %685
        %687 = vset.pattern.permute.xlu0 0
        %688 = vperm.xlu0 %687, %v651
        %v689 = vpop.permute.xlu0 %688
        %690 = vset.pattern.permute.xlu0 0
        %691 = vperm.xlu0 %690, %v652
        %v692 = vpop.permute.xlu0 %691
        %693 = vset.pattern.permute.xlu0 0
        %694 = vperm.xlu0 %693, %v653
        %v695 = vpop.permute.xlu0 %694
        %696 = vset.pattern.permute.xlu0 0
        %697 = vperm.xlu0 %696, %v654
        %v698 = vpop.permute.xlu0 %697
        %699 = vset.pattern.permute.xlu0 0
        %700 = vperm.xlu0 %699, %v655
        %v701 = vpop.permute.xlu0 %700
        %702 = vset.pattern.permute.xlu0 0
        %703 = vperm.xlu0 %702, %v656
        %v704 = vpop.permute.xlu0 %703
        %705 = vset.pattern.permute.xlu0 0
        %706 = vperm.xlu0 %705, %v657
        %v707 = vpop.permute.xlu0 %706
        %708 = vset.pattern.permute.xlu0 0
        %709 = vperm.xlu0 %708, %v658
        %v710 = vpop.permute.xlu0 %709
        %711 = vset.pattern.permute.xlu0 0
        %712 = vperm.xlu0 %711, %v659
        %v713 = vpop.permute.xlu0 %712
        %714 = vset.pattern.permute.xlu0 0
        %715 = vperm.xlu0 %714, %v660
        %v716 = vpop.permute.xlu0 %715
        %717 = vset.pattern.permute.xlu0 0
        %718 = vperm.xlu0 %717, %v661
        %v719 = vpop.permute.xlu0 %718
        %720 = vset.pattern.permute.xlu0 0
        %721 = vperm.xlu0 %720, %v662
        %v722 = vpop.permute.xlu0 %721
        %723 = vset.pattern.permute.xlu0 0
        %724 = vperm.xlu0 %723, %v663
        %v725 = vpop.permute.xlu0 %724
        %726 = vset.pattern.permute.xlu0 0
        %727 = vperm.xlu0 %726, %v664
        %v728 = vpop.permute.xlu0 %727
        %729 = vset.pattern.permute.xlu0 0
        %730 = vperm.xlu0 %729, %v665
        %v731 = vpop.permute.xlu0 %730
        %732 = vset.pattern.permute.xlu0 0
        %733 = vperm.xlu0 %732, %v666
        %v734 = vpop.permute.xlu0 %733
        %735 = vset.pattern.permute.xlu0 0
        %736 = vperm.xlu0 %735, %v667
        %v737 = vpop.permute.xlu0 %736
        %738 = vset.pattern.permute.xlu0 0
        %739 = vperm.xlu0 %738, %v668
        %v740 = vpop.permute.xlu0 %739
        %741 = vset.pattern.permute.xlu0 0
        %742 = vperm.xlu0 %741, %v669
        %v743 = vpop.permute.xlu0 %742
        %744 = vset.pattern.permute.xlu0 0
        %745 = vperm.xlu0 %744, %v670
        %v746 = vpop.permute.xlu0 %745
        %747 = vset.pattern.permute.xlu0 0
        %748 = vperm.xlu0 %747, %v671
        %v749 = vpop.permute.xlu0 %748
        %750 = vset.pattern.permute.xlu0 0
        %751 = vperm.xlu0 %750, %v672
        %v752 = vpop.permute.xlu0 %751
        %753 = vset.pattern.permute.xlu0 0
        %754 = vperm.xlu0 %753, %v673
        %v755 = vpop.permute.xlu0 %754
        %756 = vset.pattern.permute.xlu0 0
        %757 = vperm.xlu0 %756, %v674
        %v758 = vpop.permute.xlu0 %757
        %759 = vset.pattern.permute.xlu0 0
        %760 = vperm.xlu0 %759, %v675
        %v761 = vpop.permute.xlu0 %760
        %762 = vset.pattern.permute.xlu0 0
        %763 = vperm.xlu0 %762, %v676
        %v764 = vpop.permute.xlu0 %763
        %765 = vset.pattern.permute.xlu0 0
        %766 = vperm.xlu0 %765, %v677
        %v767 = vpop.permute.xlu0 %766
        %768 = vset.pattern.permute.xlu0 0
        %769 = vperm.xlu0 %768, %v678
        %v770 = vpop.permute.xlu0 %769
        %771 = vset.pattern.permute.xlu0 0
        %772 = vperm.xlu0 %771, %v679
        %v773 = vpop.permute.xlu0 %772
        %774 = vset.pattern.permute.xlu0 0
        %775 = vperm.xlu0 %774, %v680
        %v776 = vpop.permute.xlu0 %775
        %vm777 = vcmp.eq.s32.totalorder %v683, %v456
        %vm778 = vcmp.eq.s32.totalorder %v686, %v456
        %vm779 = vcmp.eq.s32.totalorder %v689, %v456
        %vm780 = vcmp.eq.s32.totalorder %v692, %v456
        %vm781 = vcmp.eq.s32.totalorder %v695, %v456
        %vm782 = vcmp.eq.s32.totalorder %v698, %v456
        %vm783 = vcmp.eq.s32.totalorder %v701, %v456
        %vm784 = vcmp.eq.s32.totalorder %v704, %v456
        %vm785 = vcmp.eq.s32.totalorder %v707, %v456
        %vm786 = vcmp.eq.s32.totalorder %v710, %v456
        %vm787 = vcmp.eq.s32.totalorder %v713, %v456
        %vm788 = vcmp.eq.s32.totalorder %v716, %v456
        %vm789 = vcmp.eq.s32.totalorder %v719, %v456
        %vm790 = vcmp.eq.s32.totalorder %v722, %v456
        %vm791 = vcmp.eq.s32.totalorder %v725, %v456
        %vm792 = vcmp.eq.s32.totalorder %v728, %v456
        %vm793 = vcmp.eq.s32.totalorder %v731, %v456
        %vm794 = vcmp.eq.s32.totalorder %v734, %v456
        %vm795 = vcmp.eq.s32.totalorder %v737, %v456
        %vm796 = vcmp.eq.s32.totalorder %v740, %v456
        %vm797 = vcmp.eq.s32.totalorder %v743, %v456
        %vm798 = vcmp.eq.s32.totalorder %v746, %v456
        %vm799 = vcmp.eq.s32.totalorder %v749, %v456
        %vm800 = vcmp.eq.s32.totalorder %v752, %v456
        %vm801 = vcmp.eq.s32.totalorder %v755, %v456
        %vm802 = vcmp.eq.s32.totalorder %v758, %v456
        %vm803 = vcmp.eq.s32.totalorder %v761, %v456
        %vm804 = vcmp.eq.s32.totalorder %v764, %v456
        %vm805 = vcmp.eq.s32.totalorder %v767, %v456
        %vm806 = vcmp.eq.s32.totalorder %v770, %v456
        %vm807 = vcmp.eq.s32.totalorder %v773, %v456
        %vm808 = vcmp.eq.s32.totalorder %v776, %v456
        %v809 = vsel %vm777, 1, 0
        %v810 = vsel %vm778, 1, 0
        %v811 = vsel %vm779, 1, 0
        %v812 = vsel %vm780, 1, 0
        %v813 = vsel %vm781, 1, 0
        %v814 = vsel %vm782, 1, 0
        %v815 = vsel %vm783, 1, 0
        %v816 = vsel %vm784, 1, 0
        %v817 = vsel %vm785, 1, 0
        %v818 = vsel %vm786, 1, 0
        %v819 = vsel %vm787, 1, 0
        %v820 = vsel %vm788, 1, 0
        %v821 = vsel %vm789, 1, 0
        %v822 = vsel %vm790, 1, 0
        %v823 = vsel %vm791, 1, 0
        %v824 = vsel %vm792, 1, 0
        %v825 = vsel %vm793, 1, 0
        %v826 = vsel %vm794, 1, 0
        %v827 = vsel %vm795, 1, 0
        %v828 = vsel %vm796, 1, 0
        %v829 = vsel %vm797, 1, 0
        %v830 = vsel %vm798, 1, 0
        %v831 = vsel %vm799, 1, 0
        %v832 = vsel %vm800, 1, 0
        %v833 = vsel %vm801, 1, 0
        %v834 = vsel %vm802, 1, 0
        %v835 = vsel %vm803, 1, 0
        %v836 = vsel %vm804, 1, 0
        %v837 = vsel %vm805, 1, 0
        %v838 = vsel %vm806, 1, 0
        %v839 = vsel %vm807, 1, 0
        %v840 = vsel %vm808, 1, 0
        %v841 = vcvt.s32.f32 %v809
        %v842 = vcvt.s32.f32 %v810
        %v843 = vcvt.s32.f32 %v811
        %v844 = vcvt.s32.f32 %v812
        %v845 = vcvt.s32.f32 %v813
        %v846 = vcvt.s32.f32 %v814
        %v847 = vcvt.s32.f32 %v815
        %v848 = vcvt.s32.f32 %v816
        %v849 = vcvt.s32.f32 %v817
        %v850 = vcvt.s32.f32 %v818
        %v851 = vcvt.s32.f32 %v819
        %v852 = vcvt.s32.f32 %v820
        %v853 = vcvt.s32.f32 %v821
        %v854 = vcvt.s32.f32 %v822
        %v855 = vcvt.s32.f32 %v823
        %v856 = vcvt.s32.f32 %v824
        %v857 = vcvt.s32.f32 %v825
        %v858 = vcvt.s32.f32 %v826
        %v859 = vcvt.s32.f32 %v827
        %v860 = vcvt.s32.f32 %v828
        %v861 = vcvt.s32.f32 %v829
        %v862 = vcvt.s32.f32 %v830
        %v863 = vcvt.s32.f32 %v831
        %v864 = vcvt.s32.f32 %v832
        %v865 = vcvt.s32.f32 %v833
        %v866 = vcvt.s32.f32 %v834
        %v867 = vcvt.s32.f32 %v835
        %v868 = vcvt.s32.f32 %v836
        %v869 = vcvt.s32.f32 %v837
        %v870 = vcvt.s32.f32 %v838
        %v871 = vcvt.s32.f32 %v839
        %v872 = vcvt.s32.f32 %v840
        %v873 = vld [vmem:[%s411] sm:$0xff]
        %v874 = vld [vmem:[%s411 + $0x8] sm:$0xff]
        %v875 = vld [vmem:[%s411 + $0x10] sm:$0xff]
        %v876 = vld [vmem:[%s411 + $0x18] sm:$0xff]
        %v877 = vld [vmem:[%s411 + $0x20] sm:$0xff]
        %v878 = vld [vmem:[%s411 + $0x28] sm:$0xff]
        %v879 = vld [vmem:[%s411 + $0x30] sm:$0xff]
        %v880 = vld [vmem:[%s411 + $0x38] sm:$0xff]
        %v881 = vld [vmem:[%s411 + $0x40] sm:$0xff]
        %v882 = vld [vmem:[%s411 + $0x48] sm:$0xff]
        %v883 = vld [vmem:[%s411 + $0x50] sm:$0xff]
        %v884 = vld [vmem:[%s411 + $0x58] sm:$0xff]
        %v885 = vld [vmem:[%s411 + $0x60] sm:$0xff]
        %v886 = vld [vmem:[%s411 + $0x68] sm:$0xff]
        %v887 = vld [vmem:[%s411 + $0x70] sm:$0xff]
        %v888 = vld [vmem:[%s411 + $0x78] sm:$0xff]
        %v889 = vld [vmem:[%s411 + $0x80] sm:$0xff]
        %v890 = vld [vmem:[%s411 + $0x88] sm:$0xff]
        %v891 = vld [vmem:[%s411 + $0x90] sm:$0xff]
        %v892 = vld [vmem:[%s411 + $0x98] sm:$0xff]
        %v893 = vld [vmem:[%s411 + $0xa0] sm:$0xff]
        %v894 = vld [vmem:[%s411 + $0xa8] sm:$0xff]
        %v895 = vld [vmem:[%s411 + $0xb0] sm:$0xff]
        %v896 = vld [vmem:[%s411 + $0xb8] sm:$0xff]
        %v897 = vld [vmem:[%s411 + $0xc0] sm:$0xff]
        %v898 = vld [vmem:[%s411 + $0xc8] sm:$0xff]
        %v899 = vld [vmem:[%s411 + $0xd0] sm:$0xff]
        %v900 = vld [vmem:[%s411 + $0xd8] sm:$0xff]
        %v901 = vld [vmem:[%s411 + $0xe0] sm:$0xff]
        %v902 = vld [vmem:[%s411 + $0xe8] sm:$0xff]
        %v903 = vld [vmem:[%s411 + $0xf0] sm:$0xff]
        %v904 = vld [vmem:[%s411 + $0xf8] sm:$0xff]
        %905 = vset.pattern.permute.xlu0 0
        %906 = vperm.xlu0 %905, %v873
        %v907 = vpop.permute.xlu0 %906
        %908 = vset.pattern.permute.xlu0 0
        %909 = vperm.xlu0 %908, %v874
        %v910 = vpop.permute.xlu0 %909
        %911 = vset.pattern.permute.xlu0 0
        %912 = vperm.xlu0 %911, %v875
        %v913 = vpop.permute.xlu0 %912
        %914 = vset.pattern.permute.xlu0 0
        %915 = vperm.xlu0 %914, %v876
        %v916 = vpop.permute.xlu0 %915
        %917 = vset.pattern.permute.xlu0 0
        %918 = vperm.xlu0 %917, %v877
        %v919 = vpop.permute.xlu0 %918
        %920 = vset.pattern.permute.xlu0 0
        %921 = vperm.xlu0 %920, %v878
        %v922 = vpop.permute.xlu0 %921
        %923 = vset.pattern.permute.xlu0 0
        %924 = vperm.xlu0 %923, %v879
        %v925 = vpop.permute.xlu0 %924
        %926 = vset.pattern.permute.xlu0 0
        %927 = vperm.xlu0 %926, %v880
        %v928 = vpop.permute.xlu0 %927
        %929 = vset.pattern.permute.xlu0 0
        %930 = vperm.xlu0 %929, %v881
        %v931 = vpop.permute.xlu0 %930
        %932 = vset.pattern.permute.xlu0 0
        %933 = vperm.xlu0 %932, %v882
        %v934 = vpop.permute.xlu0 %933
        %935 = vset.pattern.permute.xlu0 0
        %936 = vperm.xlu0 %935, %v883
        %v937 = vpop.permute.xlu0 %936
        %938 = vset.pattern.permute.xlu0 0
        %939 = vperm.xlu0 %938, %v884
        %v940 = vpop.permute.xlu0 %939
        %941 = vset.pattern.permute.xlu0 0
        %942 = vperm.xlu0 %941, %v885
        %v943 = vpop.permute.xlu0 %942
        %944 = vset.pattern.permute.xlu0 0
        %945 = vperm.xlu0 %944, %v886
        %v946 = vpop.permute.xlu0 %945
        %947 = vset.pattern.permute.xlu0 0
        %948 = vperm.xlu0 %947, %v887
        %v949 = vpop.permute.xlu0 %948
        %950 = vset.pattern.permute.xlu0 0
        %951 = vperm.xlu0 %950, %v888
        %v952 = vpop.permute.xlu0 %951
        %953 = vset.pattern.permute.xlu0 0
        %954 = vperm.xlu0 %953, %v889
        %v955 = vpop.permute.xlu0 %954
        %956 = vset.pattern.permute.xlu0 0
        %957 = vperm.xlu0 %956, %v890
        %v958 = vpop.permute.xlu0 %957
        %959 = vset.pattern.permute.xlu0 0
        %960 = vperm.xlu0 %959, %v891
        %v961 = vpop.permute.xlu0 %960
        %962 = vset.pattern.permute.xlu0 0
        %963 = vperm.xlu0 %962, %v892
        %v964 = vpop.permute.xlu0 %963
        %965 = vset.pattern.permute.xlu0 0
        %966 = vperm.xlu0 %965, %v893
        %v967 = vpop.permute.xlu0 %966
        %968 = vset.pattern.permute.xlu0 0
        %969 = vperm.xlu0 %968, %v894
        %v970 = vpop.permute.xlu0 %969
        %971 = vset.pattern.permute.xlu0 0
        %972 = vperm.xlu0 %971, %v895
        %v973 = vpop.permute.xlu0 %972
        %974 = vset.pattern.permute.xlu0 0
        %975 = vperm.xlu0 %974, %v896
        %v976 = vpop.permute.xlu0 %975
        %977 = vset.pattern.permute.xlu0 0
        %978 = vperm.xlu0 %977, %v897
        %v979 = vpop.permute.xlu0 %978
        %980 = vset.pattern.permute.xlu0 0
        %981 = vperm.xlu0 %980, %v898
        %v982 = vpop.permute.xlu0 %981
        %983 = vset.pattern.permute.xlu0 0
        %984 = vperm.xlu0 %983, %v899
        %v985 = vpop.permute.xlu0 %984
        %986 = vset.pattern.permute.xlu0 0
        %987 = vperm.xlu0 %986, %v900
        %v988 = vpop.permute.xlu0 %987
        %989 = vset.pattern.permute.xlu0 0
        %990 = vperm.xlu0 %989, %v901
        %v991 = vpop.permute.xlu0 %990
        %992 = vset.pattern.permute.xlu0 0
        %993 = vperm.xlu0 %992, %v902
        %v994 = vpop.permute.xlu0 %993
        %995 = vset.pattern.permute.xlu0 0
        %996 = vperm.xlu0 %995, %v903
        %v997 = vpop.permute.xlu0 %996
        %998 = vset.pattern.permute.xlu0 0
        %999 = vperm.xlu0 %998, %v904
        %v1000 = vpop.permute.xlu0 %999
        %vm1001 = vcmp.eq.s32.totalorder %v907, %v456
        %vm1002 = vcmp.eq.s32.totalorder %v910, %v456
        %vm1003 = vcmp.eq.s32.totalorder %v913, %v456
        %vm1004 = vcmp.eq.s32.totalorder %v916, %v456
        %vm1005 = vcmp.eq.s32.totalorder %v919, %v456
        %vm1006 = vcmp.eq.s32.totalorder %v922, %v456
        %vm1007 = vcmp.eq.s32.totalorder %v925, %v456
        %vm1008 = vcmp.eq.s32.totalorder %v928, %v456
        %vm1009 = vcmp.eq.s32.totalorder %v931, %v456
        %vm1010 = vcmp.eq.s32.totalorder %v934, %v456
        %vm1011 = vcmp.eq.s32.totalorder %v937, %v456
        %vm1012 = vcmp.eq.s32.totalorder %v940, %v456
        %vm1013 = vcmp.eq.s32.totalorder %v943, %v456
        %vm1014 = vcmp.eq.s32.totalorder %v946, %v456
        %vm1015 = vcmp.eq.s32.totalorder %v949, %v456
        %vm1016 = vcmp.eq.s32.totalorder %v952, %v456
        %vm1017 = vcmp.eq.s32.totalorder %v955, %v456
        %vm1018 = vcmp.eq.s32.totalorder %v958, %v456
        %vm1019 = vcmp.eq.s32.totalorder %v961, %v456
        %vm1020 = vcmp.eq.s32.totalorder %v964, %v456
        %vm1021 = vcmp.eq.s32.totalorder %v967, %v456
        %vm1022 = vcmp.eq.s32.totalorder %v970, %v456
        %vm1023 = vcmp.eq.s32.totalorder %v973, %v456
        %vm1024 = vcmp.eq.s32.totalorder %v976, %v456
        %vm1025 = vcmp.eq.s32.totalorder %v979, %v456
        %vm1026 = vcmp.eq.s32.totalorder %v982, %v456
        %vm1027 = vcmp.eq.s32.totalorder %v985, %v456
        %vm1028 = vcmp.eq.s32.totalorder %v988, %v456
        %vm1029 = vcmp.eq.s32.totalorder %v991, %v456
        %vm1030 = vcmp.eq.s32.totalorder %v994, %v456
        %vm1031 = vcmp.eq.s32.totalorder %v997, %v456
        %vm1032 = vcmp.eq.s32.totalorder %v1000, %v456
        %v1033 = vsel %vm1001, 1, 0
        %v1034 = vsel %vm1002, 1, 0
        %v1035 = vsel %vm1003, 1, 0
        %v1036 = vsel %vm1004, 1, 0
        %v1037 = vsel %vm1005, 1, 0
        %v1038 = vsel %vm1006, 1, 0
        %v1039 = vsel %vm1007, 1, 0
        %v1040 = vsel %vm1008, 1, 0
        %v1041 = vsel %vm1009, 1, 0
        %v1042 = vsel %vm1010, 1, 0
        %v1043 = vsel %vm1011, 1, 0
        %v1044 = vsel %vm1012, 1, 0
        %v1045 = vsel %vm1013, 1, 0
        %v1046 = vsel %vm1014, 1, 0
        %v1047 = vsel %vm1015, 1, 0
        %v1048 = vsel %vm1016, 1, 0
        %v1049 = vsel %vm1017, 1, 0
        %v1050 = vsel %vm1018, 1, 0
        %v1051 = vsel %vm1019, 1, 0
        %v1052 = vsel %vm1020, 1, 0
        %v1053 = vsel %vm1021, 1, 0
        %v1054 = vsel %vm1022, 1, 0
        %v1055 = vsel %vm1023, 1, 0
        %v1056 = vsel %vm1024, 1, 0
        %v1057 = vsel %vm1025, 1, 0
        %v1058 = vsel %vm1026, 1, 0
        %v1059 = vsel %vm1027, 1, 0
        %v1060 = vsel %vm1028, 1, 0
        %v1061 = vsel %vm1029, 1, 0
        %v1062 = vsel %vm1030, 1, 0
        %v1063 = vsel %vm1031, 1, 0
        %v1064 = vsel %vm1032, 1, 0
        %v1065 = vcvt.s32.f32 %v1033
        %v1066 = vcvt.s32.f32 %v1034
        %v1067 = vcvt.s32.f32 %v1035
        %v1068 = vcvt.s32.f32 %v1036
        %v1069 = vcvt.s32.f32 %v1037
        %v1070 = vcvt.s32.f32 %v1038
        %v1071 = vcvt.s32.f32 %v1039
        %v1072 = vcvt.s32.f32 %v1040
        %v1073 = vcvt.s32.f32 %v1041
        %v1074 = vcvt.s32.f32 %v1042
        %v1075 = vcvt.s32.f32 %v1043
        %v1076 = vcvt.s32.f32 %v1044
        %v1077 = vcvt.s32.f32 %v1045
        %v1078 = vcvt.s32.f32 %v1046
        %v1079 = vcvt.s32.f32 %v1047
        %v1080 = vcvt.s32.f32 %v1048
        %v1081 = vcvt.s32.f32 %v1049
        %v1082 = vcvt.s32.f32 %v1050
        %v1083 = vcvt.s32.f32 %v1051
        %v1084 = vcvt.s32.f32 %v1052
        %v1085 = vcvt.s32.f32 %v1053
        %v1086 = vcvt.s32.f32 %v1054
        %v1087 = vcvt.s32.f32 %v1055
        %v1088 = vcvt.s32.f32 %v1056
        %v1089 = vcvt.s32.f32 %v1057
        %v1090 = vcvt.s32.f32 %v1058
        %v1091 = vcvt.s32.f32 %v1059
        %v1092 = vcvt.s32.f32 %v1060
        %v1093 = vcvt.s32.f32 %v1061
        %v1094 = vcvt.s32.f32 %v1062
        %v1095 = vcvt.s32.f32 %v1063
        %v1096 = vcvt.s32.f32 %v1064
        %v1097 = vld [vmem:[%s3] sm:$0xff]
        %vm1098 = vcmask 64512
        %v1100 = vsel %vm1098, %v617, 0
        %v1103 = vsel %vm1098, %v618, 0
        %v1106 = vsel %vm1098, %v619, 0
        %v1109 = vsel %vm1098, %v620, 0
        %v1112 = vsel %vm1098, %v621, 0
        %v1115 = vsel %vm1098, %v622, 0
        %v1118 = vsel %vm1098, %v623, 0
        %v1121 = vsel %vm1098, %v624, 0
        %v1124 = vsel %vm1098, %v625, 0
        %v1127 = vsel %vm1098, %v626, 0
        %v1130 = vsel %vm1098, %v627, 0
        %v1133 = vsel %vm1098, %v628, 0
        %v1136 = vsel %vm1098, %v629, 0
        %v1139 = vsel %vm1098, %v630, 0
        %v1142 = vsel %vm1098, %v631, 0
        %v1145 = vsel %vm1098, %v632, 0
        %v1148 = vsel %vm1098, %v633, 0
        %v1151 = vsel %vm1098, %v634, 0
        %v1154 = vsel %vm1098, %v635, 0
        %v1157 = vsel %vm1098, %v636, 0
        %v1160 = vsel %vm1098, %v637, 0
        %v1163 = vsel %vm1098, %v638, 0
        %v1166 = vsel %vm1098, %v639, 0
        %v1169 = vsel %vm1098, %v640, 0
        %v1172 = vsel %vm1098, %v641, 0
        %v1175 = vsel %vm1098, %v642, 0
        %v1178 = vsel %vm1098, %v643, 0
        %v1181 = vsel %vm1098, %v644, 0
        %v1184 = vsel %vm1098, %v645, 0
        %v1187 = vsel %vm1098, %v646, 0
        %v1190 = vsel %vm1098, %v647, 0
        %v1193 = vsel %vm1098, %v648, 0
        %1195 = vmatprep.subr.mxu0 0.0
        %1196 = vmatpush1.msra.mxu0 %v1097
        %1197 = vmatprep.subr.mxu0 0.0
        %1198 = vmatpush1.msra.mxu0 0.0
        %1199 = vmatprep.subr.mxu0 0.0
        %1200 = vmatpush1.msra.mxu0 0.0
        %1201 = vmatprep.subr.mxu0 0.0
        %1202 = vmatpush1.msra.mxu0 0.0
        %1203 = vmatprep.subr.mxu0 0.0
        %1204 = vmatpush1.msra.mxu0 0.0
        %1205 = vmatprep.subr.mxu0 0.0
        %1206 = vmatpush1.msra.mxu0 0.0
        %1207 = vmatprep.subr.mxu0 0.0
        %1208 = vmatpush1.msra.mxu0 0.0
        %1209 = vmatprep.subr.mxu0 0.0
        %1210 = vmatpush1.msra.mxu0 0.0
        %1211 = vmatprep.subr.mxu0 0.0
        %1212 = vmatpush1.msra.mxu0 0.0
        %1213 = vmatprep.subr.mxu0 0.0
        %1214 = vmatpush1.msra.mxu0 0.0
        %1215 = vmatprep.subr.mxu0 0.0
        %1216 = vmatpush1.msra.mxu0 0.0
        %1217 = vmatprep.subr.mxu0 0.0
        %1218 = vmatpush1.msra.mxu0 0.0
        %1219 = vmatprep.subr.mxu0 0.0
        %1220 = vmatpush1.msra.mxu0 0.0
        %1221 = vmatprep.subr.mxu0 0.0
        %1222 = vmatpush1.msra.mxu0 0.0
        %1223 = vmatprep.subr.mxu0 0.0
        %1224 = vmatpush1.msra.mxu0 0.0
        %1225 = vmatprep.subr.mxu0 0.0
        %1226 = vmatpush1.msra.mxu0 0.0
        %1227 = vmatprep.subr.mxu0 0.0
        %1228 = vmatpush1.msra.mxu0 0.0
        %1229 = vmatprep.subr.mxu0 0.0
        %1230 = vmatpush1.msra.mxu0 0.0
        %1231 = vmatprep.subr.mxu0 0.0
        %1232 = vmatpush1.msra.mxu0 0.0
        %1233 = vmatprep.subr.mxu0 0.0
        %1234 = vmatpush1.msra.mxu0 0.0
        %1235 = vmatprep.subr.mxu0 0.0
        %1236 = vmatpush1.msra.mxu0 0.0
        %1237 = vmatprep.subr.mxu0 0.0
        %1238 = vmatpush1.msra.mxu0 0.0
        %1239 = vmatprep.subr.mxu0 0.0
        %1240 = vmatpush1.msra.mxu0 0.0
        %1241 = vmatprep.subr.mxu0 0.0
        %1242 = vmatpush1.msra.mxu0 0.0
        %1243 = vmatprep.subr.mxu0 0.0
        %1244 = vmatpush1.msra.mxu0 0.0
        %1245 = vmatprep.subr.mxu0 0.0
        %1246 = vmatpush1.msra.mxu0 0.0
        %1247 = vmatprep.subr.mxu0 0.0
        %1248 = vmatpush1.msra.mxu0 0.0
        %1249 = vmatprep.subr.mxu0 0.0
        %1250 = vmatpush1.msra.mxu0 0.0
        %1251 = vmatprep.subr.mxu0 0.0
        %1252 = vmatpush1.msra.mxu0 0.0
        %1253 = vmatprep.subr.mxu0 0.0
        %1254 = vmatpush1.msra.mxu0 0.0
        %1255 = vmatprep.subr.mxu0 0.0
        %1256 = vmatpush1.msra.mxu0 0.0
        %1257 = vmatprep.subr.mxu0 0.0
        %1258 = vmatpush1.msra.mxu0 0.0
        %1259 = vmatprep.mubr.f32.mxu0 0.0
        %1260 = vmatmul.mubr.f32.gmra.mrb[0].mxu0 %v1100
        %v1261 = vpop.f32.mrb[0].mxu0
        %v1262 = vadd.f32 0.0, %v1261
        %v1263 = vpop.f32.mrb[0].mxu0
        %1264 = vmatprep.mubr.f32.mxu0 0.0
        %1265 = vmatmul.mubr.f32.gmra.mrb[0].mxu0 %v1103
        %v1266 = vpop.f32.mrb[0].mxu0
        %v1267 = vadd.f32 0.0, %v1266
        %v1268 = vpop.f32.mrb[0].mxu0
        %1269 = vmatprep.mubr.f32.mxu0 0.0
        %1270 = vmatmul.mubr.f32.gmra.mrb[0].mxu0 %v1106
        %v1271 = vpop.f32.mrb[0].mxu0
        %v1272 = vadd.f32 0.0, %v1271
        %v1273 = vpop.f32.mrb[0].mxu0
        %1274 = vmatprep.mubr.f32.mxu0 0.0
        %1275 = vmatmul.mubr.f32.gmra.mrb[0].mxu0 %v1109
        %v1276 = vpop.f32.mrb[0].mxu0
        %v1277 = vadd.f32 0.0, %v1276
        %v1278 = vpop.f32.mrb[0].mxu0
        %1279 = vmatprep.mubr.f32.mxu0 0.0
        %1280 = vmatmul.mubr.f32.gmra.mrb[0].mxu0 %v1112
        %v1281 = vpop.f32.mrb[0].mxu0
        %v1282 = vadd.f32 0.0, %v1281
        %v1283 = vpop.f32.mrb[0].mxu0
        %1284 = vmatprep.mubr.f32.mxu0 0.0
        %1285 = vmatmul.mubr.f32.gmra.mrb[0].mxu0 %v1115
        %v1286 = vpop.f32.mrb[0].mxu0
        %v1287 = vadd.f32 0.0, %v1286
        %v1288 = vpop.f32.mrb[0].mxu0
        %1289 = vmatprep.mubr.f32.mxu0 0.0
        %1290 = vmatmul.mubr.f32.gmra.mrb[0].mxu0 %v1118
        %v1291 = vpop.f32.mrb[0].mxu0
        %v1292 = vadd.f32 0.0, %v1291
        %v1293 = vpop.f32.mrb[0].mxu0
        %1294 = vmatprep.mubr.f32.mxu0 0.0
        %1295 = vmatmul.mubr.f32.gmra.mrb[0].mxu0 %v1121
        %v1296 = vpop.f32.mrb[0].mxu0
        %v1297 = vadd.f32 0.0, %v1296
        %v1298 = vpop.f32.mrb[0].mxu0
        %1299 = vmatprep.mubr.f32.mxu0 0.0
        %1300 = vmatmul.mubr.f32.gmra.mrb[0].mxu0 %v1124
        %v1301 = vpop.f32.mrb[0].mxu0
        %v1302 = vadd.f32 0.0, %v1301
        %v1303 = vpop.f32.mrb[0].mxu0
        %1304 = vmatprep.mubr.f32.mxu0 0.0
        %1305 = vmatmul.mubr.f32.gmra.mrb[0].mxu0 %v1127
        %v1306 = vpop.f32.mrb[0].mxu0
        %v1307 = vadd.f32 0.0, %v1306
        %v1308 = vpop.f32.mrb[0].mxu0
        %1309 = vmatprep.mubr.f32.mxu0 0.0
        %1310 = vmatmul.mubr.f32.gmra.mrb[0].mxu0 %v1130
        %v1311 = vpop.f32.mrb[0].mxu0
        %v1312 = vadd.f32 0.0, %v1311
        %v1313 = vpop.f32.mrb[0].mxu0
        %1314 = vmatprep.mubr.f32.mxu0 0.0
        %1315 = vmatmul.mubr.f32.gmra.mrb[0].mxu0 %v1133
        %v1316 = vpop.f32.mrb[0].mxu0
        %v1317 = vadd.f32 0.0, %v1316
        %v1318 = vpop.f32.mrb[0].mxu0
        %1319 = vmatprep.mubr.f32.mxu0 0.0
        %1320 = vmatmul.mubr.f32.gmra.mrb[0].mxu0 %v1136
        %v1321 = vpop.f32.mrb[0].mxu0
        %v1322 = vadd.f32 0.0, %v1321
        %v1323 = vpop.f32.mrb[0].mxu0
        %1324 = vmatprep.mubr.f32.mxu0 0.0
        %1325 = vmatmul.mubr.f32.gmra.mrb[0].mxu0 %v1139
        %v1326 = vpop.f32.mrb[0].mxu0
        %v1327 = vadd.f32 0.0, %v1326
        %v1328 = vpop.f32.mrb[0].mxu0
        %1329 = vmatprep.mubr.f32.mxu0 0.0
        %1330 = vmatmul.mubr.f32.gmra.mrb[0].mxu0 %v1142
        %v1331 = vpop.f32.mrb[0].mxu0
        %v1332 = vadd.f32 0.0, %v1331
        %v1333 = vpop.f32.mrb[0].mxu0
        %1334 = vmatprep.mubr.f32.mxu0 0.0
        %1335 = vmatmul.mubr.f32.gmra.mrb[0].mxu0 %v1145
        %v1336 = vpop.f32.mrb[0].mxu0
        %v1337 = vadd.f32 0.0, %v1336
        %v1338 = vpop.f32.mrb[0].mxu0
        %1339 = vmatprep.mubr.f32.mxu0 0.0
        %1340 = vmatmul.mubr.f32.gmra.mrb[0].mxu0 %v1148
        %v1341 = vpop.f32.mrb[0].mxu0
        %v1342 = vadd.f32 0.0, %v1341
        %v1343 = vpop.f32.mrb[0].mxu0
        %1344 = vmatprep.mubr.f32.mxu0 0.0
        %1345 = vmatmul.mubr.f32.gmra.mrb[0].mxu0 %v1151
        %v1346 = vpop.f32.mrb[0].mxu0
        %v1347 = vadd.f32 0.0, %v1346
        %v1348 = vpop.f32.mrb[0].mxu0
        %1349 = vmatprep.mubr.f32.mxu0 0.0
        %1350 = vmatmul.mubr.f32.gmra.mrb[0].mxu0 %v1154
        %v1351 = vpop.f32.mrb[0].mxu0
        %v1352 = vadd.f32 0.0, %v1351
        %v1353 = vpop.f32.mrb[0].mxu0
        %1354 = vmatprep.mubr.f32.mxu0 0.0
        %1355 = vmatmul.mubr.f32.gmra.mrb[0].mxu0 %v1157
        %v1356 = vpop.f32.mrb[0].mxu0
        %v1357 = vadd.f32 0.0, %v1356
        %v1358 = vpop.f32.mrb[0].mxu0
        %1359 = vmatprep.mubr.f32.mxu0 0.0
        %1360 = vmatmul.mubr.f32.gmra.mrb[0].mxu0 %v1160
        %v1361 = vpop.f32.mrb[0].mxu0
        %v1362 = vadd.f32 0.0, %v1361
        %v1363 = vpop.f32.mrb[0].mxu0
        %1364 = vmatprep.mubr.f32.mxu0 0.0
        %1365 = vmatmul.mubr.f32.gmra.mrb[0].mxu0 %v1163
        %v1366 = vpop.f32.mrb[0].mxu0
        %v1367 = vadd.f32 0.0, %v1366
        %v1368 = vpop.f32.mrb[0].mxu0
        %1369 = vmatprep.mubr.f32.mxu0 0.0
        %1370 = vmatmul.mubr.f32.gmra.mrb[0].mxu0 %v1166
        %v1371 = vpop.f32.mrb[0].mxu0
        %v1372 = vadd.f32 0.0, %v1371
        %v1373 = vpop.f32.mrb[0].mxu0
        %1374 = vmatprep.mubr.f32.mxu0 0.0
        %1375 = vmatmul.mubr.f32.gmra.mrb[0].mxu0 %v1169
        %v1376 = vpop.f32.mrb[0].mxu0
        %v1377 = vadd.f32 0.0, %v1376
        %v1378 = vpop.f32.mrb[0].mxu0
        %1379 = vmatprep.mubr.f32.mxu0 0.0
        %1380 = vmatmul.mubr.f32.gmra.mrb[0].mxu0 %v1172
        %v1381 = vpop.f32.mrb[0].mxu0
        %v1382 = vadd.f32 0.0, %v1381
        %v1383 = vpop.f32.mrb[0].mxu0
        %1384 = vmatprep.mubr.f32.mxu0 0.0
        %1385 = vmatmul.mubr.f32.gmra.mrb[0].mxu0 %v1175
        %v1386 = vpop.f32.mrb[0].mxu0
        %v1387 = vadd.f32 0.0, %v1386
        %v1388 = vpop.f32.mrb[0].mxu0
        %1389 = vmatprep.mubr.f32.mxu0 0.0
        %1390 = vmatmul.mubr.f32.gmra.mrb[0].mxu0 %v1178
        %v1391 = vpop.f32.mrb[0].mxu0
        %v1392 = vadd.f32 0.0, %v1391
        %v1393 = vpop.f32.mrb[0].mxu0
        %1394 = vmatprep.mubr.f32.mxu0 0.0
        %1395 = vmatmul.mubr.f32.gmra.mrb[0].mxu0 %v1181
        %v1396 = vpop.f32.mrb[0].mxu0
        %v1397 = vadd.f32 0.0, %v1396
        %v1398 = vpop.f32.mrb[0].mxu0
        %1399 = vmatprep.mubr.f32.mxu0 0.0
        %1400 = vmatmul.mubr.f32.gmra.mrb[0].mxu0 %v1184
        %v1401 = vpop.f32.mrb[0].mxu0
        %v1402 = vadd.f32 0.0, %v1401
        %v1403 = vpop.f32.mrb[0].mxu0
        %1404 = vmatprep.mubr.f32.mxu0 0.0
        %1405 = vmatmul.mubr.f32.gmra.mrb[0].mxu0 %v1187
        %v1406 = vpop.f32.mrb[0].mxu0
        %v1407 = vadd.f32 0.0, %v1406
        %v1408 = vpop.f32.mrb[0].mxu0
        %1409 = vmatprep.mubr.f32.mxu0 0.0
        %1410 = vmatmul.mubr.f32.gmra.mrb[0].mxu0 %v1190
        %v1411 = vpop.f32.mrb[0].mxu0
        %v1412 = vadd.f32 0.0, %v1411
        %v1413 = vpop.f32.mrb[0].mxu0
        %1414 = vmatprep.mubr.f32.mxu0 0.0
        %1415 = vmatmul.mubr.f32.gmra.mrb[0].mxu0 %v1193
        %v1416 = vpop.f32.mrb[0].mxu0
        %v1417 = vadd.f32 0.0, %v1416
        %v1418 = vpop.f32.mrb[0].mxu0
        %1419 = vdwg.mxu0
        %v1420 = vld [vmem:[%s4] sm:$0xff]
        %v1421 = vld [vmem:[%s4 + $0x8] sm:$0xff]
        %vm1422 = vcmask 130048
        %v1424 = vsel %vm1422, %v841, 0
        %v1427 = vsel %vm1422, %v842, 0
        %v1430 = vsel %vm1422, %v843, 0
        %v1433 = vsel %vm1422, %v844, 0
        %v1436 = vsel %vm1422, %v845, 0
        %v1439 = vsel %vm1422, %v846, 0
        %v1442 = vsel %vm1422, %v847, 0
        %v1445 = vsel %vm1422, %v848, 0
        %v1448 = vsel %vm1422, %v849, 0
        %v1451 = vsel %vm1422, %v850, 0
        %v1454 = vsel %vm1422, %v851, 0
        %v1457 = vsel %vm1422, %v852, 0
        %v1460 = vsel %vm1422, %v853, 0
        %v1463 = vsel %vm1422, %v854, 0
        %v1466 = vsel %vm1422, %v855, 0
        %v1469 = vsel %vm1422, %v856, 0
        %v1472 = vsel %vm1422, %v857, 0
        %v1475 = vsel %vm1422, %v858, 0
        %v1478 = vsel %vm1422, %v859, 0
        %v1481 = vsel %vm1422, %v860, 0
        %v1484 = vsel %vm1422, %v861, 0
        %v1487 = vsel %vm1422, %v862, 0
        %v1490 = vsel %vm1422, %v863, 0
        %v1493 = vsel %vm1422, %v864, 0
        %v1496 = vsel %vm1422, %v865, 0
        %v1499 = vsel %vm1422, %v866, 0
        %v1502 = vsel %vm1422, %v867, 0
        %v1505 = vsel %vm1422, %v868, 0
        %v1508 = vsel %vm1422, %v869, 0
        %v1511 = vsel %vm1422, %v870, 0
        %v1514 = vsel %vm1422, %v871, 0
        %v1517 = vsel %vm1422, %v872, 0
        %1519 = vmatprep.subr.mxu0 0.0
        %1520 = vmatpush1.msra.mxu0 %v1420
        %1521 = vmatprep.subr.mxu0 0.0
        %1522 = vmatpush1.msra.mxu0 %v1421
        %1523 = vmatprep.subr.mxu0 0.0
        %1524 = vmatpush1.msra.mxu0 0.0
        %1525 = vmatprep.subr.mxu0 0.0
        %1526 = vmatpush1.msra.mxu0 0.0
        %1527 = vmatprep.subr.mxu0 0.0
        %1528 = vmatpush1.msra.mxu0 0.0
        %1529 = vmatprep.subr.mxu0 0.0
        %1530 = vmatpush1.msra.mxu0 0.0
        %1531 = vmatprep.subr.mxu0 0.0
        %1532 = vmatpush1.msra.mxu0 0.0
        %1533 = vmatprep.subr.mxu0 0.0
        %1534 = vmatpush1.msra.mxu0 0.0
        %1535 = vmatprep.subr.mxu0 0.0
        %1536 = vmatpush1.msra.mxu0 0.0
        %1537 = vmatprep.subr.mxu0 0.0
        %1538 = vmatpush1.msra.mxu0 0.0
        %1539 = vmatprep.subr.mxu0 0.0
        %1540 = vmatpush1.msra.mxu0 0.0
        %1541 = vmatprep.subr.mxu0 0.0
        %1542 = vmatpush1.msra.mxu0 0.0
        %1543 = vmatprep.subr.mxu0 0.0
        %1544 = vmatpush1.msra.mxu0 0.0
        %1545 = vmatprep.subr.mxu0 0.0
        %1546 = vmatpush1.msra.mxu0 0.0
        %1547 = vmatprep.subr.mxu0 0.0
        %1548 = vmatpush1.msra.mxu0 0.0
        %1549 = vmatprep.subr.mxu0 0.0
        %1550 = vmatpush1.msra.mxu0 0.0
        %1551 = vmatprep.subr.mxu0 0.0
        %1552 = vmatpush1.msra.mxu0 0.0
        %1553 = vmatprep.subr.mxu0 0.0
        %1554 = vmatpush1.msra.mxu0 0.0
        %1555 = vmatprep.subr.mxu0 0.0
        %1556 = vmatpush1.msra.mxu0 0.0
        %1557 = vmatprep.subr.mxu0 0.0
        %1558 = vmatpush1.msra.mxu0 0.0
        %1559 = vmatprep.subr.mxu0 0.0
        %1560 = vmatpush1.msra.mxu0 0.0
        %1561 = vmatprep.subr.mxu0 0.0
        %1562 = vmatpush1.msra.mxu0 0.0
        %1563 = vmatprep.subr.mxu0 0.0
        %1564 = vmatpush1.msra.mxu0 0.0
        %1565 = vmatprep.subr.mxu0 0.0
        %1566 = vmatpush1.msra.mxu0 0.0
        %1567 = vmatprep.subr.mxu0 0.0
        %1568 = vmatpush1.msra.mxu0 0.0
        %1569 = vmatprep.subr.mxu0 0.0
        %1570 = vmatpush1.msra.mxu0 0.0
        %1571 = vmatprep.subr.mxu0 0.0
        %1572 = vmatpush1.msra.mxu0 0.0
        %1573 = vmatprep.subr.mxu0 0.0
        %1574 = vmatpush1.msra.mxu0 0.0
        %1575 = vmatprep.subr.mxu0 0.0
        %1576 = vmatpush1.msra.mxu0 0.0
        %1577 = vmatprep.subr.mxu0 0.0
        %1578 = vmatpush1.msra.mxu0 0.0
        %1579 = vmatprep.subr.mxu0 0.0
        %1580 = vmatpush1.msra.mxu0 0.0
        %1581 = vmatprep.subr.mxu0 0.0
        %1582 = vmatpush1.msra.mxu0 0.0
        %1583 = vmatprep.mubr.f32.mxu0 0.0
        %1584 = vmatmul.mubr.f32.gmra.mrb[0].mxu0 %v1424
        %v1585 = vpop.f32.mrb[0].mxu0
        %v1586 = vadd.f32 0.0, %v1585
        %v1587 = vpop.f32.mrb[0].mxu0
        %1588 = vmatprep.mubr.f32.mxu0 0.0
        %1589 = vmatmul.mubr.f32.gmra.mrb[0].mxu0 %v1427
        %v1590 = vpop.f32.mrb[0].mxu0
        %v1591 = vadd.f32 0.0, %v1590
        %v1592 = vpop.f32.mrb[0].mxu0
        %1593 = vmatprep.mubr.f32.mxu0 0.0
        %1594 = vmatmul.mubr.f32.gmra.mrb[0].mxu0 %v1430
        %v1595 = vpop.f32.mrb[0].mxu0
        %v1596 = vadd.f32 0.0, %v1595
        %v1597 = vpop.f32.mrb[0].mxu0
        %1598 = vmatprep.mubr.f32.mxu0 0.0
        %1599 = vmatmul.mubr.f32.gmra.mrb[0].mxu0 %v1433
        %v1600 = vpop.f32.mrb[0].mxu0
        %v1601 = vadd.f32 0.0, %v1600
        %v1602 = vpop.f32.mrb[0].mxu0
        %1603 = vmatprep.mubr.f32.mxu0 0.0
        %1604 = vmatmul.mubr.f32.gmra.mrb[0].mxu0 %v1436
        %v1605 = vpop.f32.mrb[0].mxu0
        %v1606 = vadd.f32 0.0, %v1605
        %v1607 = vpop.f32.mrb[0].mxu0
        %1608 = vmatprep.mubr.f32.mxu0 0.0
        %1609 = vmatmul.mubr.f32.gmra.mrb[0].mxu0 %v1439
        %v1610 = vpop.f32.mrb[0].mxu0
        %v1611 = vadd.f32 0.0, %v1610
        %v1612 = vpop.f32.mrb[0].mxu0
        %1613 = vmatprep.mubr.f32.mxu0 0.0
        %1614 = vmatmul.mubr.f32.gmra.mrb[0].mxu0 %v1442
        %v1615 = vpop.f32.mrb[0].mxu0
        %v1616 = vadd.f32 0.0, %v1615
        %v1617 = vpop.f32.mrb[0].mxu0
        %1618 = vmatprep.mubr.f32.mxu0 0.0
        %1619 = vmatmul.mubr.f32.gmra.mrb[0].mxu0 %v1445
        %v1620 = vpop.f32.mrb[0].mxu0
        %v1621 = vadd.f32 0.0, %v1620
        %v1622 = vpop.f32.mrb[0].mxu0
        %1623 = vmatprep.mubr.f32.mxu0 0.0
        %1624 = vmatmul.mubr.f32.gmra.mrb[0].mxu0 %v1448
        %v1625 = vpop.f32.mrb[0].mxu0
        %v1626 = vadd.f32 0.0, %v1625
        %v1627 = vpop.f32.mrb[0].mxu0
        %1628 = vmatprep.mubr.f32.mxu0 0.0
        %1629 = vmatmul.mubr.f32.gmra.mrb[0].mxu0 %v1451
        %v1630 = vpop.f32.mrb[0].mxu0
        %v1631 = vadd.f32 0.0, %v1630
        %v1632 = vpop.f32.mrb[0].mxu0
        %1633 = vmatprep.mubr.f32.mxu0 0.0
        %1634 = vmatmul.mubr.f32.gmra.mrb[0].mxu0 %v1454
        %v1635 = vpop.f32.mrb[0].mxu0
        %v1636 = vadd.f32 0.0, %v1635
        %v1637 = vpop.f32.mrb[0].mxu0
        %1638 = vmatprep.mubr.f32.mxu0 0.0
        %1639 = vmatmul.mubr.f32.gmra.mrb[0].mxu0 %v1457
        %v1640 = vpop.f32.mrb[0].mxu0
        %v1641 = vadd.f32 0.0, %v1640
        %v1642 = vpop.f32.mrb[0].mxu0
        %1643 = vmatprep.mubr.f32.mxu0 0.0
        %1644 = vmatmul.mubr.f32.gmra.mrb[0].mxu0 %v1460
        %v1645 = vpop.f32.mrb[0].mxu0
        %v1646 = vadd.f32 0.0, %v1645
        %v1647 = vpop.f32.mrb[0].mxu0
        %1648 = vmatprep.mubr.f32.mxu0 0.0
        %1649 = vmatmul.mubr.f32.gmra.mrb[0].mxu0 %v1463
        %v1650 = vpop.f32.mrb[0].mxu0
        %v1651 = vadd.f32 0.0, %v1650
        %v1652 = vpop.f32.mrb[0].mxu0
        %1653 = vmatprep.mubr.f32.mxu0 0.0
        %1654 = vmatmul.mubr.f32.gmra.mrb[0].mxu0 %v1466
        %v1655 = vpop.f32.mrb[0].mxu0
        %v1656 = vadd.f32 0.0, %v1655
        %v1657 = vpop.f32.mrb[0].mxu0
        %1658 = vmatprep.mubr.f32.mxu0 0.0
        %1659 = vmatmul.mubr.f32.gmra.mrb[0].mxu0 %v1469
        %v1660 = vpop.f32.mrb[0].mxu0
        %v1661 = vadd.f32 0.0, %v1660
        %v1662 = vpop.f32.mrb[0].mxu0
        %1663 = vmatprep.mubr.f32.mxu0 0.0
        %1664 = vmatmul.mubr.f32.gmra.mrb[0].mxu0 %v1472
        %v1665 = vpop.f32.mrb[0].mxu0
        %v1666 = vadd.f32 0.0, %v1665
        %v1667 = vpop.f32.mrb[0].mxu0
        %1668 = vmatprep.mubr.f32.mxu0 0.0
        %1669 = vmatmul.mubr.f32.gmra.mrb[0].mxu0 %v1475
        %v1670 = vpop.f32.mrb[0].mxu0
        %v1671 = vadd.f32 0.0, %v1670
        %v1672 = vpop.f32.mrb[0].mxu0
        %1673 = vmatprep.mubr.f32.mxu0 0.0
        %1674 = vmatmul.mubr.f32.gmra.mrb[0].mxu0 %v1478
        %v1675 = vpop.f32.mrb[0].mxu0
        %v1676 = vadd.f32 0.0, %v1675
        %v1677 = vpop.f32.mrb[0].mxu0
        %1678 = vmatprep.mubr.f32.mxu0 0.0
        %1679 = vmatmul.mubr.f32.gmra.mrb[0].mxu0 %v1481
        %v1680 = vpop.f32.mrb[0].mxu0
        %v1681 = vadd.f32 0.0, %v1680
        %v1682 = vpop.f32.mrb[0].mxu0
        %1683 = vmatprep.mubr.f32.mxu0 0.0
        %1684 = vmatmul.mubr.f32.gmra.mrb[0].mxu0 %v1484
        %v1685 = vpop.f32.mrb[0].mxu0
        %v1686 = vadd.f32 0.0, %v1685
        %v1687 = vpop.f32.mrb[0].mxu0
        %1688 = vmatprep.mubr.f32.mxu0 0.0
        %1689 = vmatmul.mubr.f32.gmra.mrb[0].mxu0 %v1487
        %v1690 = vpop.f32.mrb[0].mxu0
        %v1691 = vadd.f32 0.0, %v1690
        %v1692 = vpop.f32.mrb[0].mxu0
        %1693 = vmatprep.mubr.f32.mxu0 0.0
        %1694 = vmatmul.mubr.f32.gmra.mrb[0].mxu0 %v1490
        %v1695 = vpop.f32.mrb[0].mxu0
        %v1696 = vadd.f32 0.0, %v1695
        %v1697 = vpop.f32.mrb[0].mxu0
        %1698 = vmatprep.mubr.f32.mxu0 0.0
        %1699 = vmatmul.mubr.f32.gmra.mrb[0].mxu0 %v1493
        %v1700 = vpop.f32.mrb[0].mxu0
        %v1701 = vadd.f32 0.0, %v1700
        %v1702 = vpop.f32.mrb[0].mxu0
        %1703 = vmatprep.mubr.f32.mxu0 0.0
        %1704 = vmatmul.mubr.f32.gmra.mrb[0].mxu0 %v1496
        %v1705 = vpop.f32.mrb[0].mxu0
        %v1706 = vadd.f32 0.0, %v1705
        %v1707 = vpop.f32.mrb[0].mxu0
        %1708 = vmatprep.mubr.f32.mxu0 0.0
        %1709 = vmatmul.mubr.f32.gmra.mrb[0].mxu0 %v1499
        %v1710 = vpop.f32.mrb[0].mxu0
        %v1711 = vadd.f32 0.0, %v1710
        %v1712 = vpop.f32.mrb[0].mxu0
        %1713 = vmatprep.mubr.f32.mxu0 0.0
        %1714 = vmatmul.mubr.f32.gmra.mrb[0].mxu0 %v1502
        %v1715 = vpop.f32.mrb[0].mxu0
        %v1716 = vadd.f32 0.0, %v1715
        %v1717 = vpop.f32.mrb[0].mxu0
        %1718 = vmatprep.mubr.f32.mxu0 0.0
        %1719 = vmatmul.mubr.f32.gmra.mrb[0].mxu0 %v1505
        %v1720 = vpop.f32.mrb[0].mxu0
        %v1721 = vadd.f32 0.0, %v1720
        %v1722 = vpop.f32.mrb[0].mxu0
        %1723 = vmatprep.mubr.f32.mxu0 0.0
        %1724 = vmatmul.mubr.f32.gmra.mrb[0].mxu0 %v1508
        %v1725 = vpop.f32.mrb[0].mxu0
        %v1726 = vadd.f32 0.0, %v1725
        %v1727 = vpop.f32.mrb[0].mxu0
        %1728 = vmatprep.mubr.f32.mxu0 0.0
        %1729 = vmatmul.mubr.f32.gmra.mrb[0].mxu0 %v1511
        %v1730 = vpop.f32.mrb[0].mxu0
        %v1731 = vadd.f32 0.0, %v1730
        %v1732 = vpop.f32.mrb[0].mxu0
        %1733 = vmatprep.mubr.f32.mxu0 0.0
        %1734 = vmatmul.mubr.f32.gmra.mrb[0].mxu0 %v1514
        %v1735 = vpop.f32.mrb[0].mxu0
        %v1736 = vadd.f32 0.0, %v1735
        %v1737 = vpop.f32.mrb[0].mxu0
        %1738 = vmatprep.mubr.f32.mxu0 0.0
        %1739 = vmatmul.mubr.f32.gmra.mrb[0].mxu0 %v1517
        %v1740 = vpop.f32.mrb[0].mxu0
        %v1741 = vadd.f32 0.0, %v1740
        %v1742 = vpop.f32.mrb[0].mxu0
        %1743 = vdwg.mxu0
        %v1744 = vld [vmem:[%s5] sm:$0xf]
        %vm1745 = vcmask 31744
        %v1747 = vsel %vm1745, %v1065, 0
        %v1750 = vsel %vm1745, %v1066, 0
        %v1753 = vsel %vm1745, %v1067, 0
        %v1756 = vsel %vm1745, %v1068, 0
        %v1759 = vsel %vm1745, %v1069, 0
        %v1762 = vsel %vm1745, %v1070, 0
        %v1765 = vsel %vm1745, %v1071, 0
        %v1768 = vsel %vm1745, %v1072, 0
        %v1771 = vsel %vm1745, %v1073, 0
        %v1774 = vsel %vm1745, %v1074, 0
        %v1777 = vsel %vm1745, %v1075, 0
        %v1780 = vsel %vm1745, %v1076, 0
        %v1783 = vsel %vm1745, %v1077, 0
        %v1786 = vsel %vm1745, %v1078, 0
        %v1789 = vsel %vm1745, %v1079, 0
        %v1792 = vsel %vm1745, %v1080, 0
        %v1795 = vsel %vm1745, %v1081, 0
        %v1798 = vsel %vm1745, %v1082, 0
        %v1801 = vsel %vm1745, %v1083, 0
        %v1804 = vsel %vm1745, %v1084, 0
        %v1807 = vsel %vm1745, %v1085, 0
        %v1810 = vsel %vm1745, %v1086, 0
        %v1813 = vsel %vm1745, %v1087, 0
        %v1816 = vsel %vm1745, %v1088, 0
        %v1819 = vsel %vm1745, %v1089, 0
        %v1822 = vsel %vm1745, %v1090, 0
        %v1825 = vsel %vm1745, %v1091, 0
        %v1828 = vsel %vm1745, %v1092, 0
        %v1831 = vsel %vm1745, %v1093, 0
        %v1834 = vsel %vm1745, %v1094, 0
        %v1837 = vsel %vm1745, %v1095, 0
        %v1840 = vsel %vm1745, %v1096, 0
        %vm1842 = vcmask 1043456
        %v1844 = vsel %vm1842, %v1744, 0
        %1846 = vmatprep.subr.mxu0 0.0
        %1847 = vmatpush1.msra.mxu0 %v1844
        %1848 = vmatprep.subr.mxu0 0.0
        %1849 = vmatpush1.msra.mxu0 0.0
        %1850 = vmatprep.subr.mxu0 0.0
        %1851 = vmatpush1.msra.mxu0 0.0
        %1852 = vmatprep.subr.mxu0 0.0
        %1853 = vmatpush1.msra.mxu0 0.0
        %1854 = vmatprep.subr.mxu0 0.0
        %1855 = vmatpush1.msra.mxu0 0.0
        %1856 = vmatprep.subr.mxu0 0.0
        %1857 = vmatpush1.msra.mxu0 0.0
        %1858 = vmatprep.subr.mxu0 0.0
        %1859 = vmatpush1.msra.mxu0 0.0
        %1860 = vmatprep.subr.mxu0 0.0
        %1861 = vmatpush1.msra.mxu0 0.0
        %1862 = vmatprep.subr.mxu0 0.0
        %1863 = vmatpush1.msra.mxu0 0.0
        %1864 = vmatprep.subr.mxu0 0.0
        %1865 = vmatpush1.msra.mxu0 0.0
        %1866 = vmatprep.subr.mxu0 0.0
        %1867 = vmatpush1.msra.mxu0 0.0
        %1868 = vmatprep.subr.mxu0 0.0
        %1869 = vmatpush1.msra.mxu0 0.0
        %1870 = vmatprep.subr.mxu0 0.0
        %1871 = vmatpush1.msra.mxu0 0.0
        %1872 = vmatprep.subr.mxu0 0.0
        %1873 = vmatpush1.msra.mxu0 0.0
        %1874 = vmatprep.subr.mxu0 0.0
        %1875 = vmatpush1.msra.mxu0 0.0
        %1876 = vmatprep.subr.mxu0 0.0
        %1877 = vmatpush1.msra.mxu0 0.0
        %1878 = vmatprep.subr.mxu0 0.0
        %1879 = vmatpush1.msra.mxu0 0.0
        %1880 = vmatprep.subr.mxu0 0.0
        %1881 = vmatpush1.msra.mxu0 0.0
        %1882 = vmatprep.subr.mxu0 0.0
        %1883 = vmatpush1.msra.mxu0 0.0
        %1884 = vmatprep.subr.mxu0 0.0
        %1885 = vmatpush1.msra.mxu0 0.0
        %1886 = vmatprep.subr.mxu0 0.0
        %1887 = vmatpush1.msra.mxu0 0.0
        %1888 = vmatprep.subr.mxu0 0.0
        %1889 = vmatpush1.msra.mxu0 0.0
        %1890 = vmatprep.subr.mxu0 0.0
        %1891 = vmatpush1.msra.mxu0 0.0
        %1892 = vmatprep.subr.mxu0 0.0
        %1893 = vmatpush1.msra.mxu0 0.0
        %1894 = vmatprep.subr.mxu0 0.0
        %1895 = vmatpush1.msra.mxu0 0.0
        %1896 = vmatprep.subr.mxu0 0.0
        %1897 = vmatpush1.msra.mxu0 0.0
        %1898 = vmatprep.subr.mxu0 0.0
        %1899 = vmatpush1.msra.mxu0 0.0
        %1900 = vmatprep.subr.mxu0 0.0
        %1901 = vmatpush1.msra.mxu0 0.0
        %1902 = vmatprep.subr.mxu0 0.0
        %1903 = vmatpush1.msra.mxu0 0.0
        %1904 = vmatprep.subr.mxu0 0.0
        %1905 = vmatpush1.msra.mxu0 0.0
        %1906 = vmatprep.subr.mxu0 0.0
        %1907 = vmatpush1.msra.mxu0 0.0
        %1908 = vmatprep.subr.mxu0 0.0
        %1909 = vmatpush1.msra.mxu0 0.0
        %1910 = vmatprep.mubr.f32.mxu0 0.0
        %1911 = vmatmul.mubr.f32.gmra.mrb[0].mxu0 %v1747
        %v1912 = vpop.f32.mrb[0].mxu0
        %v1913 = vadd.f32 0.0, %v1912
        %v1914 = vpop.f32.mrb[0].mxu0
        %1915 = vmatprep.mubr.f32.mxu0 0.0
        %1916 = vmatmul.mubr.f32.gmra.mrb[0].mxu0 %v1750
        %v1917 = vpop.f32.mrb[0].mxu0
        %v1918 = vadd.f32 0.0, %v1917
        %v1919 = vpop.f32.mrb[0].mxu0
        %1920 = vmatprep.mubr.f32.mxu0 0.0
        %1921 = vmatmul.mubr.f32.gmra.mrb[0].mxu0 %v1753
        %v1922 = vpop.f32.mrb[0].mxu0
        %v1923 = vadd.f32 0.0, %v1922
        %v1924 = vpop.f32.mrb[0].mxu0
        %1925 = vmatprep.mubr.f32.mxu0 0.0
        %1926 = vmatmul.mubr.f32.gmra.mrb[0].mxu0 %v1756
        %v1927 = vpop.f32.mrb[0].mxu0
        %v1928 = vadd.f32 0.0, %v1927
        %v1929 = vpop.f32.mrb[0].mxu0
        %1930 = vmatprep.mubr.f32.mxu0 0.0
        %1931 = vmatmul.mubr.f32.gmra.mrb[0].mxu0 %v1759
        %v1932 = vpop.f32.mrb[0].mxu0
        %v1933 = vadd.f32 0.0, %v1932
        %v1934 = vpop.f32.mrb[0].mxu0
        %1935 = vmatprep.mubr.f32.mxu0 0.0
        %1936 = vmatmul.mubr.f32.gmra.mrb[0].mxu0 %v1762
        %v1937 = vpop.f32.mrb[0].mxu0
        %v1938 = vadd.f32 0.0, %v1937
        %v1939 = vpop.f32.mrb[0].mxu0
        %1940 = vmatprep.mubr.f32.mxu0 0.0
        %1941 = vmatmul.mubr.f32.gmra.mrb[0].mxu0 %v1765
        %v1942 = vpop.f32.mrb[0].mxu0
        %v1943 = vadd.f32 0.0, %v1942
        %v1944 = vpop.f32.mrb[0].mxu0
        %1945 = vmatprep.mubr.f32.mxu0 0.0
        %1946 = vmatmul.mubr.f32.gmra.mrb[0].mxu0 %v1768
        %v1947 = vpop.f32.mrb[0].mxu0
        %v1948 = vadd.f32 0.0, %v1947
        %v1949 = vpop.f32.mrb[0].mxu0
        %1950 = vmatprep.mubr.f32.mxu0 0.0
        %1951 = vmatmul.mubr.f32.gmra.mrb[0].mxu0 %v1771
        %v1952 = vpop.f32.mrb[0].mxu0
        %v1953 = vadd.f32 0.0, %v1952
        %v1954 = vpop.f32.mrb[0].mxu0
        %1955 = vmatprep.mubr.f32.mxu0 0.0
        %1956 = vmatmul.mubr.f32.gmra.mrb[0].mxu0 %v1774
        %v1957 = vpop.f32.mrb[0].mxu0
        %v1958 = vadd.f32 0.0, %v1957
        %v1959 = vpop.f32.mrb[0].mxu0
        %1960 = vmatprep.mubr.f32.mxu0 0.0
        %1961 = vmatmul.mubr.f32.gmra.mrb[0].mxu0 %v1777
        %v1962 = vpop.f32.mrb[0].mxu0
        %v1963 = vadd.f32 0.0, %v1962
        %v1964 = vpop.f32.mrb[0].mxu0
        %1965 = vmatprep.mubr.f32.mxu0 0.0
        %1966 = vmatmul.mubr.f32.gmra.mrb[0].mxu0 %v1780
        %v1967 = vpop.f32.mrb[0].mxu0
        %v1968 = vadd.f32 0.0, %v1967
        %v1969 = vpop.f32.mrb[0].mxu0
        %1970 = vmatprep.mubr.f32.mxu0 0.0
        %1971 = vmatmul.mubr.f32.gmra.mrb[0].mxu0 %v1783
        %v1972 = vpop.f32.mrb[0].mxu0
        %v1973 = vadd.f32 0.0, %v1972
        %v1974 = vpop.f32.mrb[0].mxu0
        %1975 = vmatprep.mubr.f32.mxu0 0.0
        %1976 = vmatmul.mubr.f32.gmra.mrb[0].mxu0 %v1786
        %v1977 = vpop.f32.mrb[0].mxu0
        %v1978 = vadd.f32 0.0, %v1977
        %v1979 = vpop.f32.mrb[0].mxu0
        %1980 = vmatprep.mubr.f32.mxu0 0.0
        %1981 = vmatmul.mubr.f32.gmra.mrb[0].mxu0 %v1789
        %v1982 = vpop.f32.mrb[0].mxu0
        %v1983 = vadd.f32 0.0, %v1982
        %v1984 = vpop.f32.mrb[0].mxu0
        %1985 = vmatprep.mubr.f32.mxu0 0.0
        %1986 = vmatmul.mubr.f32.gmra.mrb[0].mxu0 %v1792
        %v1987 = vpop.f32.mrb[0].mxu0
        %v1988 = vadd.f32 0.0, %v1987
        %v1989 = vpop.f32.mrb[0].mxu0
        %1990 = vmatprep.mubr.f32.mxu0 0.0
        %1991 = vmatmul.mubr.f32.gmra.mrb[0].mxu0 %v1795
        %v1992 = vpop.f32.mrb[0].mxu0
        %v1993 = vadd.f32 0.0, %v1992
        %v1994 = vpop.f32.mrb[0].mxu0
        %1995 = vmatprep.mubr.f32.mxu0 0.0
        %1996 = vmatmul.mubr.f32.gmra.mrb[0].mxu0 %v1798
        %v1997 = vpop.f32.mrb[0].mxu0
        %v1998 = vadd.f32 0.0, %v1997
        %v1999 = vpop.f32.mrb[0].mxu0
        %2000 = vmatprep.mubr.f32.mxu0 0.0
        %2001 = vmatmul.mubr.f32.gmra.mrb[0].mxu0 %v1801
        %v2002 = vpop.f32.mrb[0].mxu0
        %v2003 = vadd.f32 0.0, %v2002
        %v2004 = vpop.f32.mrb[0].mxu0
        %2005 = vmatprep.mubr.f32.mxu0 0.0
        %2006 = vmatmul.mubr.f32.gmra.mrb[0].mxu0 %v1804
        %v2007 = vpop.f32.mrb[0].mxu0
        %v2008 = vadd.f32 0.0, %v2007
        %v2009 = vpop.f32.mrb[0].mxu0
        %2010 = vmatprep.mubr.f32.mxu0 0.0
        %2011 = vmatmul.mubr.f32.gmra.mrb[0].mxu0 %v1807
        %v2012 = vpop.f32.mrb[0].mxu0
        %v2013 = vadd.f32 0.0, %v2012
        %v2014 = vpop.f32.mrb[0].mxu0
        %2015 = vmatprep.mubr.f32.mxu0 0.0
        %2016 = vmatmul.mubr.f32.gmra.mrb[0].mxu0 %v1810
        %v2017 = vpop.f32.mrb[0].mxu0
        %v2018 = vadd.f32 0.0, %v2017
        %v2019 = vpop.f32.mrb[0].mxu0
        %2020 = vmatprep.mubr.f32.mxu0 0.0
        %2021 = vmatmul.mubr.f32.gmra.mrb[0].mxu0 %v1813
        %v2022 = vpop.f32.mrb[0].mxu0
        %v2023 = vadd.f32 0.0, %v2022
        %v2024 = vpop.f32.mrb[0].mxu0
        %2025 = vmatprep.mubr.f32.mxu0 0.0
        %2026 = vmatmul.mubr.f32.gmra.mrb[0].mxu0 %v1816
        %v2027 = vpop.f32.mrb[0].mxu0
        %v2028 = vadd.f32 0.0, %v2027
        %v2029 = vpop.f32.mrb[0].mxu0
        %2030 = vmatprep.mubr.f32.mxu0 0.0
        %2031 = vmatmul.mubr.f32.gmra.mrb[0].mxu0 %v1819
        %v2032 = vpop.f32.mrb[0].mxu0
        %v2033 = vadd.f32 0.0, %v2032
        %v2034 = vpop.f32.mrb[0].mxu0
        %2035 = vmatprep.mubr.f32.mxu0 0.0
        %2036 = vmatmul.mubr.f32.gmra.mrb[0].mxu0 %v1822
        %v2037 = vpop.f32.mrb[0].mxu0
        %v2038 = vadd.f32 0.0, %v2037
        %v2039 = vpop.f32.mrb[0].mxu0
        %2040 = vmatprep.mubr.f32.mxu0 0.0
        %2041 = vmatmul.mubr.f32.gmra.mrb[0].mxu0 %v1825
        %v2042 = vpop.f32.mrb[0].mxu0
        %v2043 = vadd.f32 0.0, %v2042
        %v2044 = vpop.f32.mrb[0].mxu0
        %2045 = vmatprep.mubr.f32.mxu0 0.0
        %2046 = vmatmul.mubr.f32.gmra.mrb[0].mxu0 %v1828
        %v2047 = vpop.f32.mrb[0].mxu0
        %v2048 = vadd.f32 0.0, %v2047
        %v2049 = vpop.f32.mrb[0].mxu0
        %2050 = vmatprep.mubr.f32.mxu0 0.0
        %2051 = vmatmul.mubr.f32.gmra.mrb[0].mxu0 %v1831
        %v2052 = vpop.f32.mrb[0].mxu0
        %v2053 = vadd.f32 0.0, %v2052
        %v2054 = vpop.f32.mrb[0].mxu0
        %2055 = vmatprep.mubr.f32.mxu0 0.0
        %2056 = vmatmul.mubr.f32.gmra.mrb[0].mxu0 %v1834
        %v2057 = vpop.f32.mrb[0].mxu0
        %v2058 = vadd.f32 0.0, %v2057
        %v2059 = vpop.f32.mrb[0].mxu0
        %2060 = vmatprep.mubr.f32.mxu0 0.0
        %2061 = vmatmul.mubr.f32.gmra.mrb[0].mxu0 %v1837
        %v2062 = vpop.f32.mrb[0].mxu0
        %v2063 = vadd.f32 0.0, %v2062
        %v2064 = vpop.f32.mrb[0].mxu0
        %2065 = vmatprep.mubr.f32.mxu0 0.0
        %2066 = vmatmul.mubr.f32.gmra.mrb[0].mxu0 %v1840
        %v2067 = vpop.f32.mrb[0].mxu0
        %v2068 = vadd.f32 0.0, %v2067
        %v2069 = vpop.f32.mrb[0].mxu0
        %2070 = vdwg.mxu0
        %v2071 = vld [vmem:[%s6] sm:$0xf]
        %v2073 = vsel %vm1842, %v2071, 0
        %2075 = vmatprep.subr.mxu0 0.0
        %2076 = vmatpush1.msra.mxu0 %v2073
        %2077 = vmatprep.subr.mxu0 0.0
        %2078 = vmatpush1.msra.mxu0 0.0
        %2079 = vmatprep.subr.mxu0 0.0
        %2080 = vmatpush1.msra.mxu0 0.0
        %2081 = vmatprep.subr.mxu0 0.0
        %2082 = vmatpush1.msra.mxu0 0.0
        %2083 = vmatprep.subr.mxu0 0.0
        %2084 = vmatpush1.msra.mxu0 0.0
        %2085 = vmatprep.subr.mxu0 0.0
        %2086 = vmatpush1.msra.mxu0 0.0
        %2087 = vmatprep.subr.mxu0 0.0
        %2088 = vmatpush1.msra.mxu0 0.0
        %2089 = vmatprep.subr.mxu0 0.0
        %2090 = vmatpush1.msra.mxu0 0.0
        %2091 = vmatprep.subr.mxu0 0.0
        %2092 = vmatpush1.msra.mxu0 0.0
        %2093 = vmatprep.subr.mxu0 0.0
        %2094 = vmatpush1.msra.mxu0 0.0
        %2095 = vmatprep.subr.mxu0 0.0
        %2096 = vmatpush1.msra.mxu0 0.0
        %2097 = vmatprep.subr.mxu0 0.0
        %2098 = vmatpush1.msra.mxu0 0.0
        %2099 = vmatprep.subr.mxu0 0.0
        %2100 = vmatpush1.msra.mxu0 0.0
        %2101 = vmatprep.subr.mxu0 0.0
        %2102 = vmatpush1.msra.mxu0 0.0
        %2103 = vmatprep.subr.mxu0 0.0
        %2104 = vmatpush1.msra.mxu0 0.0
        %2105 = vmatprep.subr.mxu0 0.0
        %2106 = vmatpush1.msra.mxu0 0.0
        %2107 = vmatprep.subr.mxu0 0.0
        %2108 = vmatpush1.msra.mxu0 0.0
        %2109 = vmatprep.subr.mxu0 0.0
        %2110 = vmatpush1.msra.mxu0 0.0
        %2111 = vmatprep.subr.mxu0 0.0
        %2112 = vmatpush1.msra.mxu0 0.0
        %2113 = vmatprep.subr.mxu0 0.0
        %2114 = vmatpush1.msra.mxu0 0.0
        %2115 = vmatprep.subr.mxu0 0.0
        %2116 = vmatpush1.msra.mxu0 0.0
        %2117 = vmatprep.subr.mxu0 0.0
        %2118 = vmatpush1.msra.mxu0 0.0
        %2119 = vmatprep.subr.mxu0 0.0
        %2120 = vmatpush1.msra.mxu0 0.0
        %2121 = vmatprep.subr.mxu0 0.0
        %2122 = vmatpush1.msra.mxu0 0.0
        %2123 = vmatprep.subr.mxu0 0.0
        %2124 = vmatpush1.msra.mxu0 0.0
        %2125 = vmatprep.subr.mxu0 0.0
        %2126 = vmatpush1.msra.mxu0 0.0
        %2127 = vmatprep.subr.mxu0 0.0
        %2128 = vmatpush1.msra.mxu0 0.0
        %2129 = vmatprep.subr.mxu0 0.0
        %2130 = vmatpush1.msra.mxu0 0.0
        %2131 = vmatprep.subr.mxu0 0.0
        %2132 = vmatpush1.msra.mxu0 0.0
        %2133 = vmatprep.subr.mxu0 0.0
        %2134 = vmatpush1.msra.mxu0 0.0
        %2135 = vmatprep.subr.mxu0 0.0
        %2136 = vmatpush1.msra.mxu0 0.0
        %2137 = vmatprep.subr.mxu0 0.0
        %2138 = vmatpush1.msra.mxu0 0.0
        %2139 = vmatprep.mubr.f32.mxu0 0.0
        %2140 = vmatmul.mubr.f32.gmra.mrb[0].mxu0 %v1747
        %v2141 = vpop.f32.mrb[0].mxu0
        %v2142 = vadd.f32 0.0, %v2141
        %v2143 = vpop.f32.mrb[0].mxu0
        %2144 = vmatprep.mubr.f32.mxu0 0.0
        %2145 = vmatmul.mubr.f32.gmra.mrb[0].mxu0 %v1750
        %v2146 = vpop.f32.mrb[0].mxu0
        %v2147 = vadd.f32 0.0, %v2146
        %v2148 = vpop.f32.mrb[0].mxu0
        %2149 = vmatprep.mubr.f32.mxu0 0.0
        %2150 = vmatmul.mubr.f32.gmra.mrb[0].mxu0 %v1753
        %v2151 = vpop.f32.mrb[0].mxu0
        %v2152 = vadd.f32 0.0, %v2151
        %v2153 = vpop.f32.mrb[0].mxu0
        %2154 = vmatprep.mubr.f32.mxu0 0.0
        %2155 = vmatmul.mubr.f32.gmra.mrb[0].mxu0 %v1756
        %v2156 = vpop.f32.mrb[0].mxu0
        %v2157 = vadd.f32 0.0, %v2156
        %v2158 = vpop.f32.mrb[0].mxu0
        %2159 = vmatprep.mubr.f32.mxu0 0.0
        %2160 = vmatmul.mubr.f32.gmra.mrb[0].mxu0 %v1759
        %v2161 = vpop.f32.mrb[0].mxu0
        %v2162 = vadd.f32 0.0, %v2161
        %v2163 = vpop.f32.mrb[0].mxu0
        %2164 = vmatprep.mubr.f32.mxu0 0.0
        %2165 = vmatmul.mubr.f32.gmra.mrb[0].mxu0 %v1762
        %v2166 = vpop.f32.mrb[0].mxu0
        %v2167 = vadd.f32 0.0, %v2166
        %v2168 = vpop.f32.mrb[0].mxu0
        %2169 = vmatprep.mubr.f32.mxu0 0.0
        %2170 = vmatmul.mubr.f32.gmra.mrb[0].mxu0 %v1765
        %v2171 = vpop.f32.mrb[0].mxu0
        %v2172 = vadd.f32 0.0, %v2171
        %v2173 = vpop.f32.mrb[0].mxu0
        %2174 = vmatprep.mubr.f32.mxu0 0.0
        %2175 = vmatmul.mubr.f32.gmra.mrb[0].mxu0 %v1768
        %v2176 = vpop.f32.mrb[0].mxu0
        %v2177 = vadd.f32 0.0, %v2176
        %v2178 = vpop.f32.mrb[0].mxu0
        %2179 = vmatprep.mubr.f32.mxu0 0.0
        %2180 = vmatmul.mubr.f32.gmra.mrb[0].mxu0 %v1771
        %v2181 = vpop.f32.mrb[0].mxu0
        %v2182 = vadd.f32 0.0, %v2181
        %v2183 = vpop.f32.mrb[0].mxu0
        %2184 = vmatprep.mubr.f32.mxu0 0.0
        %2185 = vmatmul.mubr.f32.gmra.mrb[0].mxu0 %v1774
        %v2186 = vpop.f32.mrb[0].mxu0
        %v2187 = vadd.f32 0.0, %v2186
        %v2188 = vpop.f32.mrb[0].mxu0
        %2189 = vmatprep.mubr.f32.mxu0 0.0
        %2190 = vmatmul.mubr.f32.gmra.mrb[0].mxu0 %v1777
        %v2191 = vpop.f32.mrb[0].mxu0
        %v2192 = vadd.f32 0.0, %v2191
        %v2193 = vpop.f32.mrb[0].mxu0
        %2194 = vmatprep.mubr.f32.mxu0 0.0
        %2195 = vmatmul.mubr.f32.gmra.mrb[0].mxu0 %v1780
        %v2196 = vpop.f32.mrb[0].mxu0
        %v2197 = vadd.f32 0.0, %v2196
        %v2198 = vpop.f32.mrb[0].mxu0
        %2199 = vmatprep.mubr.f32.mxu0 0.0
        %2200 = vmatmul.mubr.f32.gmra.mrb[0].mxu0 %v1783
        %v2201 = vpop.f32.mrb[0].mxu0
        %v2202 = vadd.f32 0.0, %v2201
        %v2203 = vpop.f32.mrb[0].mxu0
        %2204 = vmatprep.mubr.f32.mxu0 0.0
        %2205 = vmatmul.mubr.f32.gmra.mrb[0].mxu0 %v1786
        %v2206 = vpop.f32.mrb[0].mxu0
        %v2207 = vadd.f32 0.0, %v2206
        %v2208 = vpop.f32.mrb[0].mxu0
        %2209 = vmatprep.mubr.f32.mxu0 0.0
        %2210 = vmatmul.mubr.f32.gmra.mrb[0].mxu0 %v1789
        %v2211 = vpop.f32.mrb[0].mxu0
        %v2212 = vadd.f32 0.0, %v2211
        %v2213 = vpop.f32.mrb[0].mxu0
        %2214 = vmatprep.mubr.f32.mxu0 0.0
        %2215 = vmatmul.mubr.f32.gmra.mrb[0].mxu0 %v1792
        %v2216 = vpop.f32.mrb[0].mxu0
        %v2217 = vadd.f32 0.0, %v2216
        %v2218 = vpop.f32.mrb[0].mxu0
        %2219 = vmatprep.mubr.f32.mxu0 0.0
        %2220 = vmatmul.mubr.f32.gmra.mrb[0].mxu0 %v1795
        %v2221 = vpop.f32.mrb[0].mxu0
        %v2222 = vadd.f32 0.0, %v2221
        %v2223 = vpop.f32.mrb[0].mxu0
        %2224 = vmatprep.mubr.f32.mxu0 0.0
        %2225 = vmatmul.mubr.f32.gmra.mrb[0].mxu0 %v1798
        %v2226 = vpop.f32.mrb[0].mxu0
        %v2227 = vadd.f32 0.0, %v2226
        %v2228 = vpop.f32.mrb[0].mxu0
        %2229 = vmatprep.mubr.f32.mxu0 0.0
        %2230 = vmatmul.mubr.f32.gmra.mrb[0].mxu0 %v1801
        %v2231 = vpop.f32.mrb[0].mxu0
        %v2232 = vadd.f32 0.0, %v2231
        %v2233 = vpop.f32.mrb[0].mxu0
        %2234 = vmatprep.mubr.f32.mxu0 0.0
        %2235 = vmatmul.mubr.f32.gmra.mrb[0].mxu0 %v1804
        %v2236 = vpop.f32.mrb[0].mxu0
        %v2237 = vadd.f32 0.0, %v2236
        %v2238 = vpop.f32.mrb[0].mxu0
        %2239 = vmatprep.mubr.f32.mxu0 0.0
        %2240 = vmatmul.mubr.f32.gmra.mrb[0].mxu0 %v1807
        %v2241 = vpop.f32.mrb[0].mxu0
        %v2242 = vadd.f32 0.0, %v2241
        %v2243 = vpop.f32.mrb[0].mxu0
        %2244 = vmatprep.mubr.f32.mxu0 0.0
        %2245 = vmatmul.mubr.f32.gmra.mrb[0].mxu0 %v1810
        %v2246 = vpop.f32.mrb[0].mxu0
        %v2247 = vadd.f32 0.0, %v2246
        %v2248 = vpop.f32.mrb[0].mxu0
        %2249 = vmatprep.mubr.f32.mxu0 0.0
        %2250 = vmatmul.mubr.f32.gmra.mrb[0].mxu0 %v1813
        %v2251 = vpop.f32.mrb[0].mxu0
        %v2252 = vadd.f32 0.0, %v2251
        %v2253 = vpop.f32.mrb[0].mxu0
        %2254 = vmatprep.mubr.f32.mxu0 0.0
        %2255 = vmatmul.mubr.f32.gmra.mrb[0].mxu0 %v1816
        %v2256 = vpop.f32.mrb[0].mxu0
        %v2257 = vadd.f32 0.0, %v2256
        %v2258 = vpop.f32.mrb[0].mxu0
        %2259 = vmatprep.mubr.f32.mxu0 0.0
        %2260 = vmatmul.mubr.f32.gmra.mrb[0].mxu0 %v1819
        %v2261 = vpop.f32.mrb[0].mxu0
        %v2262 = vadd.f32 0.0, %v2261
        %v2263 = vpop.f32.mrb[0].mxu0
        %2264 = vmatprep.mubr.f32.mxu0 0.0
        %2265 = vmatmul.mubr.f32.gmra.mrb[0].mxu0 %v1822
        %v2266 = vpop.f32.mrb[0].mxu0
        %v2267 = vadd.f32 0.0, %v2266
        %v2268 = vpop.f32.mrb[0].mxu0
        %2269 = vmatprep.mubr.f32.mxu0 0.0
        %2270 = vmatmul.mubr.f32.gmra.mrb[0].mxu0 %v1825
        %v2271 = vpop.f32.mrb[0].mxu0
        %v2272 = vadd.f32 0.0, %v2271
        %v2273 = vpop.f32.mrb[0].mxu0
        %2274 = vmatprep.mubr.f32.mxu0 0.0
        %2275 = vmatmul.mubr.f32.gmra.mrb[0].mxu0 %v1828
        %v2276 = vpop.f32.mrb[0].mxu0
        %v2277 = vadd.f32 0.0, %v2276
        %v2278 = vpop.f32.mrb[0].mxu0
        %2279 = vmatprep.mubr.f32.mxu0 0.0
        %2280 = vmatmul.mubr.f32.gmra.mrb[0].mxu0 %v1831
        %v2281 = vpop.f32.mrb[0].mxu0
        %v2282 = vadd.f32 0.0, %v2281
        %v2283 = vpop.f32.mrb[0].mxu0
        %2284 = vmatprep.mubr.f32.mxu0 0.0
        %2285 = vmatmul.mubr.f32.gmra.mrb[0].mxu0 %v1834
        %v2286 = vpop.f32.mrb[0].mxu0
        %v2287 = vadd.f32 0.0, %v2286
        %v2288 = vpop.f32.mrb[0].mxu0
        %2289 = vmatprep.mubr.f32.mxu0 0.0
        %2290 = vmatmul.mubr.f32.gmra.mrb[0].mxu0 %v1837
        %v2291 = vpop.f32.mrb[0].mxu0
        %v2292 = vadd.f32 0.0, %v2291
        %v2293 = vpop.f32.mrb[0].mxu0
        %2294 = vmatprep.mubr.f32.mxu0 0.0
        %2295 = vmatmul.mubr.f32.gmra.mrb[0].mxu0 %v1840
        %v2296 = vpop.f32.mrb[0].mxu0
        %v2297 = vadd.f32 0.0, %v2296
        %v2298 = vpop.f32.mrb[0].mxu0
        %2299 = vdwg.mxu0
        %v2300 = vmul.f32 %v1262, %v1913
        %v2301 = vmul.f32 %v1267, %v1918
        %v2302 = vmul.f32 %v1272, %v1923
        %v2303 = vmul.f32 %v1277, %v1928
        %v2304 = vmul.f32 %v1282, %v1933
        %v2305 = vmul.f32 %v1287, %v1938
        %v2306 = vmul.f32 %v1292, %v1943
        %v2307 = vmul.f32 %v1297, %v1948
        %v2308 = vmul.f32 %v1302, %v1953
        %v2309 = vmul.f32 %v1307, %v1958
        %v2310 = vmul.f32 %v1312, %v1963
        %v2311 = vmul.f32 %v1317, %v1968
        %v2312 = vmul.f32 %v1322, %v1973
        %v2313 = vmul.f32 %v1327, %v1978
        %v2314 = vmul.f32 %v1332, %v1983
        %v2315 = vmul.f32 %v1337, %v1988
        %v2316 = vmul.f32 %v1342, %v1993
        %v2317 = vmul.f32 %v1347, %v1998
        %v2318 = vmul.f32 %v1352, %v2003
        %v2319 = vmul.f32 %v1357, %v2008
        %v2320 = vmul.f32 %v1362, %v2013
        %v2321 = vmul.f32 %v1367, %v2018
        %v2322 = vmul.f32 %v1372, %v2023
        %v2323 = vmul.f32 %v1377, %v2028
        %v2324 = vmul.f32 %v1382, %v2033
        %v2325 = vmul.f32 %v1387, %v2038
        %v2326 = vmul.f32 %v1392, %v2043
        %v2327 = vmul.f32 %v1397, %v2048
        %v2328 = vmul.f32 %v1402, %v2053
        %v2329 = vmul.f32 %v1407, %v2058
        %v2330 = vmul.f32 %v1412, %v2063
        %v2331 = vmul.f32 %v1417, %v2068
        %v2332 = vmul.f32 %v1586, %v2142
        %v2333 = vmul.f32 %v1591, %v2147
        %v2334 = vmul.f32 %v1596, %v2152
        %v2335 = vmul.f32 %v1601, %v2157
        %v2336 = vmul.f32 %v1606, %v2162
        %v2337 = vmul.f32 %v1611, %v2167
        %v2338 = vmul.f32 %v1616, %v2172
        %v2339 = vmul.f32 %v1621, %v2177
        %v2340 = vmul.f32 %v1626, %v2182
        %v2341 = vmul.f32 %v1631, %v2187
        %v2342 = vmul.f32 %v1636, %v2192
        %v2343 = vmul.f32 %v1641, %v2197
        %v2344 = vmul.f32 %v1646, %v2202
        %v2345 = vmul.f32 %v1651, %v2207
        %v2346 = vmul.f32 %v1656, %v2212
        %v2347 = vmul.f32 %v1661, %v2217
        %v2348 = vmul.f32 %v1666, %v2222
        %v2349 = vmul.f32 %v1671, %v2227
        %v2350 = vmul.f32 %v1676, %v2232
        %v2351 = vmul.f32 %v1681, %v2237
        %v2352 = vmul.f32 %v1686, %v2242
        %v2353 = vmul.f32 %v1691, %v2247
        %v2354 = vmul.f32 %v1696, %v2252
        %v2355 = vmul.f32 %v1701, %v2257
        %v2356 = vmul.f32 %v1706, %v2262
        %v2357 = vmul.f32 %v1711, %v2267
        %v2358 = vmul.f32 %v1716, %v2272
        %v2359 = vmul.f32 %v1721, %v2277
        %v2360 = vmul.f32 %v1726, %v2282
        %v2361 = vmul.f32 %v1731, %v2287
        %v2362 = vmul.f32 %v1736, %v2292
        %v2363 = vmul.f32 %v1741, %v2297
        %v2364 = vadd.f32 %v2300, %v2332
        %v2365 = vadd.f32 %v2301, %v2333
        %v2366 = vadd.f32 %v2302, %v2334
        %v2367 = vadd.f32 %v2303, %v2335
        %v2368 = vadd.f32 %v2304, %v2336
        %v2369 = vadd.f32 %v2305, %v2337
        %v2370 = vadd.f32 %v2306, %v2338
        %v2371 = vadd.f32 %v2307, %v2339
        %v2372 = vadd.f32 %v2308, %v2340
        %v2373 = vadd.f32 %v2309, %v2341
        %v2374 = vadd.f32 %v2310, %v2342
        %v2375 = vadd.f32 %v2311, %v2343
        %v2376 = vadd.f32 %v2312, %v2344
        %v2377 = vadd.f32 %v2313, %v2345
        %v2378 = vadd.f32 %v2314, %v2346
        %v2379 = vadd.f32 %v2315, %v2347
        %v2380 = vadd.f32 %v2316, %v2348
        %v2381 = vadd.f32 %v2317, %v2349
        %v2382 = vadd.f32 %v2318, %v2350
        %v2383 = vadd.f32 %v2319, %v2351
        %v2384 = vadd.f32 %v2320, %v2352
        %v2385 = vadd.f32 %v2321, %v2353
        %v2386 = vadd.f32 %v2322, %v2354
        %v2387 = vadd.f32 %v2323, %v2355
        %v2388 = vadd.f32 %v2324, %v2356
        %v2389 = vadd.f32 %v2325, %v2357
        %v2390 = vadd.f32 %v2326, %v2358
        %v2391 = vadd.f32 %v2327, %v2359
        %v2392 = vadd.f32 %v2328, %v2360
        %v2393 = vadd.f32 %v2329, %v2361
        %v2394 = vadd.f32 %v2330, %v2362
        %v2395 = vadd.f32 %v2331, %v2363
        %vm2396 = vcmask 261120
        %v2397 = vsel %vm2396, %v2364, 0.0
        %2398 = vadd.xlane.f32.xlu0 %v2397
        %v2399 = vpop.xlane.xlu0 %2398
        %v2400 = vsel %vm2396, %v2365, 0.0
        %2401 = vadd.xlane.f32.xlu0 %v2400
        %v2402 = vpop.xlane.xlu0 %2401
        %v2403 = vsel %vm2396, %v2366, 0.0
        %2404 = vadd.xlane.f32.xlu0 %v2403
        %v2405 = vpop.xlane.xlu0 %2404
        %v2406 = vsel %vm2396, %v2367, 0.0
        %2407 = vadd.xlane.f32.xlu0 %v2406
        %v2408 = vpop.xlane.xlu0 %2407
        %v2409 = vsel %vm2396, %v2368, 0.0
        %2410 = vadd.xlane.f32.xlu0 %v2409
        %v2411 = vpop.xlane.xlu0 %2410
        %v2412 = vsel %vm2396, %v2369, 0.0
        %2413 = vadd.xlane.f32.xlu0 %v2412
        %v2414 = vpop.xlane.xlu0 %2413
        %v2415 = vsel %vm2396, %v2370, 0.0
        %2416 = vadd.xlane.f32.xlu0 %v2415
        %v2417 = vpop.xlane.xlu0 %2416
        %v2418 = vsel %vm2396, %v2371, 0.0
        %2419 = vadd.xlane.f32.xlu0 %v2418
        %v2420 = vpop.xlane.xlu0 %2419
        %v2421 = vsel %vm2396, %v2372, 0.0
        %2422 = vadd.xlane.f32.xlu0 %v2421
        %v2423 = vpop.xlane.xlu0 %2422
        %v2424 = vsel %vm2396, %v2373, 0.0
        %2425 = vadd.xlane.f32.xlu0 %v2424
        %v2426 = vpop.xlane.xlu0 %2425
        %v2427 = vsel %vm2396, %v2374, 0.0
        %2428 = vadd.xlane.f32.xlu0 %v2427
        %v2429 = vpop.xlane.xlu0 %2428
        %v2430 = vsel %vm2396, %v2375, 0.0
        %2431 = vadd.xlane.f32.xlu0 %v2430
        %v2432 = vpop.xlane.xlu0 %2431
        %v2433 = vsel %vm2396, %v2376, 0.0
        %2434 = vadd.xlane.f32.xlu0 %v2433
        %v2435 = vpop.xlane.xlu0 %2434
        %v2436 = vsel %vm2396, %v2377, 0.0
        %2437 = vadd.xlane.f32.xlu0 %v2436
        %v2438 = vpop.xlane.xlu0 %2437
        %v2439 = vsel %vm2396, %v2378, 0.0
        %2440 = vadd.xlane.f32.xlu0 %v2439
        %v2441 = vpop.xlane.xlu0 %2440
        %v2442 = vsel %vm2396, %v2379, 0.0
        %2443 = vadd.xlane.f32.xlu0 %v2442
        %v2444 = vpop.xlane.xlu0 %2443
        %v2445 = vsel %vm2396, %v2380, 0.0
        %2446 = vadd.xlane.f32.xlu0 %v2445
        %v2447 = vpop.xlane.xlu0 %2446
        %v2448 = vsel %vm2396, %v2381, 0.0
        %2449 = vadd.xlane.f32.xlu0 %v2448
        %v2450 = vpop.xlane.xlu0 %2449
        %v2451 = vsel %vm2396, %v2382, 0.0
        %2452 = vadd.xlane.f32.xlu0 %v2451
        %v2453 = vpop.xlane.xlu0 %2452
        %v2454 = vsel %vm2396, %v2383, 0.0
        %2455 = vadd.xlane.f32.xlu0 %v2454
        %v2456 = vpop.xlane.xlu0 %2455
        %v2457 = vsel %vm2396, %v2384, 0.0
        %2458 = vadd.xlane.f32.xlu0 %v2457
        %v2459 = vpop.xlane.xlu0 %2458
        %v2460 = vsel %vm2396, %v2385, 0.0
        %2461 = vadd.xlane.f32.xlu0 %v2460
        %v2462 = vpop.xlane.xlu0 %2461
        %v2463 = vsel %vm2396, %v2386, 0.0
        %2464 = vadd.xlane.f32.xlu0 %v2463
        %v2465 = vpop.xlane.xlu0 %2464
        %v2466 = vsel %vm2396, %v2387, 0.0
        %2467 = vadd.xlane.f32.xlu0 %v2466
        %v2468 = vpop.xlane.xlu0 %2467
        %v2469 = vsel %vm2396, %v2388, 0.0
        %2470 = vadd.xlane.f32.xlu0 %v2469
        %v2471 = vpop.xlane.xlu0 %2470
        %v2472 = vsel %vm2396, %v2389, 0.0
        %2473 = vadd.xlane.f32.xlu0 %v2472
        %v2474 = vpop.xlane.xlu0 %2473
        %v2475 = vsel %vm2396, %v2390, 0.0
        %2476 = vadd.xlane.f32.xlu0 %v2475
        %v2477 = vpop.xlane.xlu0 %2476
        %v2478 = vsel %vm2396, %v2391, 0.0
        %2479 = vadd.xlane.f32.xlu0 %v2478
        %v2480 = vpop.xlane.xlu0 %2479
        %v2481 = vsel %vm2396, %v2392, 0.0
        %2482 = vadd.xlane.f32.xlu0 %v2481
        %v2483 = vpop.xlane.xlu0 %2482
        %v2484 = vsel %vm2396, %v2393, 0.0
        %2485 = vadd.xlane.f32.xlu0 %v2484
        %v2486 = vpop.xlane.xlu0 %2485
        %v2487 = vsel %vm2396, %v2394, 0.0
        %2488 = vadd.xlane.f32.xlu0 %v2487
        %v2489 = vpop.xlane.xlu0 %2488
        %v2490 = vsel %vm2396, %v2395, 0.0
        %2491 = vadd.xlane.f32.xlu0 %v2490
        %v2492 = vpop.xlane.xlu0 %2491
        %vm2493 = vcmp.ge.f32.partialorder %v2399, 0.0
        %vm2494 = vcmp.ge.f32.partialorder %v2402, 0.0
        %vm2495 = vcmp.ge.f32.partialorder %v2405, 0.0
        %vm2496 = vcmp.ge.f32.partialorder %v2408, 0.0
        %vm2497 = vcmp.ge.f32.partialorder %v2411, 0.0
        %vm2498 = vcmp.ge.f32.partialorder %v2414, 0.0
        %vm2499 = vcmp.ge.f32.partialorder %v2417, 0.0
        %vm2500 = vcmp.ge.f32.partialorder %v2420, 0.0
        %vm2501 = vcmp.ge.f32.partialorder %v2423, 0.0
        %vm2502 = vcmp.ge.f32.partialorder %v2426, 0.0
        %vm2503 = vcmp.ge.f32.partialorder %v2429, 0.0
        %vm2504 = vcmp.ge.f32.partialorder %v2432, 0.0
        %vm2505 = vcmp.ge.f32.partialorder %v2435, 0.0
        %vm2506 = vcmp.ge.f32.partialorder %v2438, 0.0
        %vm2507 = vcmp.ge.f32.partialorder %v2441, 0.0
        %vm2508 = vcmp.ge.f32.partialorder %v2444, 0.0
        %vm2509 = vcmp.ge.f32.partialorder %v2447, 0.0
        %vm2510 = vcmp.ge.f32.partialorder %v2450, 0.0
        %vm2511 = vcmp.ge.f32.partialorder %v2453, 0.0
        %vm2512 = vcmp.ge.f32.partialorder %v2456, 0.0
        %vm2513 = vcmp.ge.f32.partialorder %v2459, 0.0
        %vm2514 = vcmp.ge.f32.partialorder %v2462, 0.0
        %vm2515 = vcmp.ge.f32.partialorder %v2465, 0.0
        %vm2516 = vcmp.ge.f32.partialorder %v2468, 0.0
        %vm2517 = vcmp.ge.f32.partialorder %v2471, 0.0
        %vm2518 = vcmp.ge.f32.partialorder %v2474, 0.0
        %vm2519 = vcmp.ge.f32.partialorder %v2477, 0.0
        %vm2520 = vcmp.ge.f32.partialorder %v2480, 0.0
        %vm2521 = vcmp.ge.f32.partialorder %v2483, 0.0
        %vm2522 = vcmp.ge.f32.partialorder %v2486, 0.0
        %vm2523 = vcmp.ge.f32.partialorder %v2489, 0.0
        %vm2524 = vcmp.ge.f32.partialorder %v2492, 0.0
        %v2525 = vmul.f32 %v2399, 0.2
        %v2526 = vmul.f32 %v2402, 0.2
        %v2527 = vmul.f32 %v2405, 0.2
        %v2528 = vmul.f32 %v2408, 0.2
        %v2529 = vmul.f32 %v2411, 0.2
        %v2530 = vmul.f32 %v2414, 0.2
        %v2531 = vmul.f32 %v2417, 0.2
        %v2532 = vmul.f32 %v2420, 0.2
        %v2533 = vmul.f32 %v2423, 0.2
        %v2534 = vmul.f32 %v2426, 0.2
        %v2535 = vmul.f32 %v2429, 0.2
        %v2536 = vmul.f32 %v2432, 0.2
        %v2537 = vmul.f32 %v2435, 0.2
        %v2538 = vmul.f32 %v2438, 0.2
        %v2539 = vmul.f32 %v2441, 0.2
        %v2540 = vmul.f32 %v2444, 0.2
        %v2541 = vmul.f32 %v2447, 0.2
        %v2542 = vmul.f32 %v2450, 0.2
        %v2543 = vmul.f32 %v2453, 0.2
        %v2544 = vmul.f32 %v2456, 0.2
        %v2545 = vmul.f32 %v2459, 0.2
        %v2546 = vmul.f32 %v2462, 0.2
        %v2547 = vmul.f32 %v2465, 0.2
        %v2548 = vmul.f32 %v2468, 0.2
        %v2549 = vmul.f32 %v2471, 0.2
        %v2550 = vmul.f32 %v2474, 0.2
        %v2551 = vmul.f32 %v2477, 0.2
        %v2552 = vmul.f32 %v2480, 0.2
        %v2553 = vmul.f32 %v2483, 0.2
        %v2554 = vmul.f32 %v2486, 0.2
        %v2555 = vmul.f32 %v2489, 0.2
        %v2556 = vmul.f32 %v2492, 0.2
        %v2557 = vsel %vm2493, %v2399, %v2525
        %v2558 = vsel %vm2494, %v2402, %v2526
        %v2559 = vsel %vm2495, %v2405, %v2527
        %v2560 = vsel %vm2496, %v2408, %v2528
        %v2561 = vsel %vm2497, %v2411, %v2529
        %v2562 = vsel %vm2498, %v2414, %v2530
        %v2563 = vsel %vm2499, %v2417, %v2531
        %v2564 = vsel %vm2500, %v2420, %v2532
        %v2565 = vsel %vm2501, %v2423, %v2533
        %v2566 = vsel %vm2502, %v2426, %v2534
        %v2567 = vsel %vm2503, %v2429, %v2535
        %v2568 = vsel %vm2504, %v2432, %v2536
        %v2569 = vsel %vm2505, %v2435, %v2537
        %v2570 = vsel %vm2506, %v2438, %v2538
        %v2571 = vsel %vm2507, %v2441, %v2539
        %v2572 = vsel %vm2508, %v2444, %v2540
        %v2573 = vsel %vm2509, %v2447, %v2541
        %v2574 = vsel %vm2510, %v2450, %v2542
        %v2575 = vsel %vm2511, %v2453, %v2543
        %v2576 = vsel %vm2512, %v2456, %v2544
        %v2577 = vsel %vm2513, %v2459, %v2545
        %v2578 = vsel %vm2514, %v2462, %v2546
        %v2579 = vsel %vm2515, %v2465, %v2547
        %v2580 = vsel %vm2516, %v2468, %v2548
        %v2581 = vsel %vm2517, %v2471, %v2549
        %v2582 = vsel %vm2518, %v2474, %v2550
        %v2583 = vsel %vm2519, %v2477, %v2551
        %v2584 = vsel %vm2520, %v2480, %v2552
        %v2585 = vsel %vm2521, %v2483, %v2553
        %v2586 = vsel %vm2522, %v2486, %v2554
        %v2587 = vsel %vm2523, %v2489, %v2555
        %v2588 = vsel %vm2524, %v2492, %v2556
        %s2589 = smul.u32 %s30, 2
        %s2590 = sadd.s32 %s2589, %s31
        %s2591 = smul.u32 %s2590, 256
        %v2592 = vlaneseq
        %v2593 = vshrl.u32 %v2592, 7
        %v2594 = vadd.s32 %v2593, 8
        %v2595 = vadd.s32 %v2593, 16
        %v2596 = vadd.s32 %v2593, 24
        %v2597 = vadd.s32 %v2593, 32
        %v2598 = vadd.s32 %v2593, 40
        %v2599 = vadd.s32 %v2593, 48
        %v2600 = vadd.s32 %v2593, 56
        %v2601 = vadd.s32 %v2593, 64
        %v2602 = vadd.s32 %v2593, 72
        %v2603 = vadd.s32 %v2593, 80
        %v2604 = vadd.s32 %v2593, 88
        %v2605 = vadd.s32 %v2593, 96
        %v2606 = vadd.s32 %v2593, 104
        %v2607 = vadd.s32 %v2593, 112
        %v2608 = vadd.s32 %v2593, 120
        %v2609 = vadd.s32 %v2593, 128
        %v2610 = vadd.s32 %v2593, 136
        %v2611 = vadd.s32 %v2593, 144
        %v2612 = vadd.s32 %v2593, 152
        %v2613 = vadd.s32 %v2593, 160
        %v2614 = vadd.s32 %v2593, 168
        %v2615 = vadd.s32 %v2593, 176
        %v2616 = vadd.s32 %v2593, 184
        %v2617 = vadd.s32 %v2593, 192
        %v2618 = vadd.s32 %v2593, 200
        %v2619 = vadd.s32 %v2593, 208
        %v2620 = vadd.s32 %v2593, 216
        %v2621 = vadd.s32 %v2593, 224
        %v2622 = vadd.s32 %v2593, 232
        %v2623 = vadd.s32 %v2593, 240
        %v2624 = vadd.s32 %v2593, 248
        %v2625 = vstv %s2591
        %v2626 = vadd.s32 %v2625, %v2593
        %v2627 = vadd.s32 %v2625, %v2594
        %v2628 = vadd.s32 %v2625, %v2595
        %v2629 = vadd.s32 %v2625, %v2596
        %v2630 = vadd.s32 %v2625, %v2597
        %v2631 = vadd.s32 %v2625, %v2598
        %v2632 = vadd.s32 %v2625, %v2599
        %v2633 = vadd.s32 %v2625, %v2600
        %v2634 = vadd.s32 %v2625, %v2601
        %v2635 = vadd.s32 %v2625, %v2602
        %v2636 = vadd.s32 %v2625, %v2603
        %v2637 = vadd.s32 %v2625, %v2604
        %v2638 = vadd.s32 %v2625, %v2605
        %v2639 = vadd.s32 %v2625, %v2606
        %v2640 = vadd.s32 %v2625, %v2607
        %v2641 = vadd.s32 %v2625, %v2608
        %v2642 = vadd.s32 %v2625, %v2609
        %v2643 = vadd.s32 %v2625, %v2610
        %v2644 = vadd.s32 %v2625, %v2611
        %v2645 = vadd.s32 %v2625, %v2612
        %v2646 = vadd.s32 %v2625, %v2613
        %v2647 = vadd.s32 %v2625, %v2614
        %v2648 = vadd.s32 %v2625, %v2615
        %v2649 = vadd.s32 %v2625, %v2616
        %v2650 = vadd.s32 %v2625, %v2617
        %v2651 = vadd.s32 %v2625, %v2618
        %v2652 = vadd.s32 %v2625, %v2619
        %v2653 = vadd.s32 %v2625, %v2620
        %v2654 = vadd.s32 %v2625, %v2621
        %v2655 = vadd.s32 %v2625, %v2622
        %v2656 = vadd.s32 %v2625, %v2623
        %v2657 = vadd.s32 %v2625, %v2624
        %vm2658 = vcmp.lt.s32.totalorder %v2626, 600
        %vm2659 = vcmp.lt.s32.totalorder %v2627, 600
        %vm2660 = vcmp.lt.s32.totalorder %v2628, 600
        %vm2661 = vcmp.lt.s32.totalorder %v2629, 600
        %vm2662 = vcmp.lt.s32.totalorder %v2630, 600
        %vm2663 = vcmp.lt.s32.totalorder %v2631, 600
        %vm2664 = vcmp.lt.s32.totalorder %v2632, 600
        %vm2665 = vcmp.lt.s32.totalorder %v2633, 600
        %vm2666 = vcmp.lt.s32.totalorder %v2634, 600
        %vm2667 = vcmp.lt.s32.totalorder %v2635, 600
        %vm2668 = vcmp.lt.s32.totalorder %v2636, 600
        %vm2669 = vcmp.lt.s32.totalorder %v2637, 600
        %vm2670 = vcmp.lt.s32.totalorder %v2638, 600
        %vm2671 = vcmp.lt.s32.totalorder %v2639, 600
        %vm2672 = vcmp.lt.s32.totalorder %v2640, 600
        %vm2673 = vcmp.lt.s32.totalorder %v2641, 600
        %vm2674 = vcmp.lt.s32.totalorder %v2642, 600
        %vm2675 = vcmp.lt.s32.totalorder %v2643, 600
        %vm2676 = vcmp.lt.s32.totalorder %v2644, 600
        %vm2677 = vcmp.lt.s32.totalorder %v2645, 600
        %vm2678 = vcmp.lt.s32.totalorder %v2646, 600
        %vm2679 = vcmp.lt.s32.totalorder %v2647, 600
        %vm2680 = vcmp.lt.s32.totalorder %v2648, 600
        %vm2681 = vcmp.lt.s32.totalorder %v2649, 600
        %vm2682 = vcmp.lt.s32.totalorder %v2650, 600
        %vm2683 = vcmp.lt.s32.totalorder %v2651, 600
        %vm2684 = vcmp.lt.s32.totalorder %v2652, 600
        %vm2685 = vcmp.lt.s32.totalorder %v2653, 600
        %vm2686 = vcmp.lt.s32.totalorder %v2654, 600
        %vm2687 = vcmp.lt.s32.totalorder %v2655, 600
        %vm2688 = vcmp.lt.s32.totalorder %v2656, 600
        %vm2689 = vcmp.lt.s32.totalorder %v2657, 600
        %v2690 = vsel %vm2658, 1, 0
        %v2691 = vsel %vm2659, 1, 0
        %v2692 = vsel %vm2660, 1, 0
        %v2693 = vsel %vm2661, 1, 0
        %v2694 = vsel %vm2662, 1, 0
        %v2695 = vsel %vm2663, 1, 0
        %v2696 = vsel %vm2664, 1, 0
        %v2697 = vsel %vm2665, 1, 0
        %v2698 = vsel %vm2666, 1, 0
        %v2699 = vsel %vm2667, 1, 0
        %v2700 = vsel %vm2668, 1, 0
        %v2701 = vsel %vm2669, 1, 0
        %v2702 = vsel %vm2670, 1, 0
        %v2703 = vsel %vm2671, 1, 0
        %v2704 = vsel %vm2672, 1, 0
        %v2705 = vsel %vm2673, 1, 0
        %v2706 = vsel %vm2674, 1, 0
        %v2707 = vsel %vm2675, 1, 0
        %v2708 = vsel %vm2676, 1, 0
        %v2709 = vsel %vm2677, 1, 0
        %v2710 = vsel %vm2678, 1, 0
        %v2711 = vsel %vm2679, 1, 0
        %v2712 = vsel %vm2680, 1, 0
        %v2713 = vsel %vm2681, 1, 0
        %v2714 = vsel %vm2682, 1, 0
        %v2715 = vsel %vm2683, 1, 0
        %v2716 = vsel %vm2684, 1, 0
        %v2717 = vsel %vm2685, 1, 0
        %v2718 = vsel %vm2686, 1, 0
        %v2719 = vsel %vm2687, 1, 0
        %v2720 = vsel %vm2688, 1, 0
        %v2721 = vsel %vm2689, 1, 0
        %v2722 = vcvt.s32.f32 %v2690
        %v2723 = vcvt.s32.f32 %v2691
        %v2724 = vcvt.s32.f32 %v2692
        %v2725 = vcvt.s32.f32 %v2693
        %v2726 = vcvt.s32.f32 %v2694
        %v2727 = vcvt.s32.f32 %v2695
        %v2728 = vcvt.s32.f32 %v2696
        %v2729 = vcvt.s32.f32 %v2697
        %v2730 = vcvt.s32.f32 %v2698
        %v2731 = vcvt.s32.f32 %v2699
        %v2732 = vcvt.s32.f32 %v2700
        %v2733 = vcvt.s32.f32 %v2701
        %v2734 = vcvt.s32.f32 %v2702
        %v2735 = vcvt.s32.f32 %v2703
        %v2736 = vcvt.s32.f32 %v2704
        %v2737 = vcvt.s32.f32 %v2705
        %v2738 = vcvt.s32.f32 %v2706
        %v2739 = vcvt.s32.f32 %v2707
        %v2740 = vcvt.s32.f32 %v2708
        %v2741 = vcvt.s32.f32 %v2709
        %v2742 = vcvt.s32.f32 %v2710
        %v2743 = vcvt.s32.f32 %v2711
        %v2744 = vcvt.s32.f32 %v2712
        %v2745 = vcvt.s32.f32 %v2713
        %v2746 = vcvt.s32.f32 %v2714
        %v2747 = vcvt.s32.f32 %v2715
        %v2748 = vcvt.s32.f32 %v2716
        %v2749 = vcvt.s32.f32 %v2717
        %v2750 = vcvt.s32.f32 %v2718
        %v2751 = vcvt.s32.f32 %v2719
        %v2752 = vcvt.s32.f32 %v2720
        %v2753 = vcvt.s32.f32 %v2721
        %v2754 = vmul.f32 %v2557, 1.442695
        %v2755 = vpow.pop %v2754
        %v2756 = vmul.f32 %v2558, 1.442695
        %v2757 = vpow.pop %v2756
        %v2758 = vmul.f32 %v2559, 1.442695
        %v2759 = vpow.pop %v2758
        %v2760 = vmul.f32 %v2560, 1.442695
        %v2761 = vpow.pop %v2760
        %v2762 = vmul.f32 %v2561, 1.442695
        %v2763 = vpow.pop %v2762
        %v2764 = vmul.f32 %v2562, 1.442695
        %v2765 = vpow.pop %v2764
        %v2766 = vmul.f32 %v2563, 1.442695
        %v2767 = vpow.pop %v2766
        %v2768 = vmul.f32 %v2564, 1.442695
        %v2769 = vpow.pop %v2768
        %v2770 = vmul.f32 %v2565, 1.442695
        %v2771 = vpow.pop %v2770
        %v2772 = vmul.f32 %v2566, 1.442695
        %v2773 = vpow.pop %v2772
        %v2774 = vmul.f32 %v2567, 1.442695
        %v2775 = vpow.pop %v2774
        %v2776 = vmul.f32 %v2568, 1.442695
        %v2777 = vpow.pop %v2776
        %v2778 = vmul.f32 %v2569, 1.442695
        %v2779 = vpow.pop %v2778
        %v2780 = vmul.f32 %v2570, 1.442695
        %v2781 = vpow.pop %v2780
        %v2782 = vmul.f32 %v2571, 1.442695
        %v2783 = vpow.pop %v2782
        %v2784 = vmul.f32 %v2572, 1.442695
        %v2785 = vpow.pop %v2784
        %v2786 = vmul.f32 %v2573, 1.442695
        %v2787 = vpow.pop %v2786
        %v2788 = vmul.f32 %v2574, 1.442695
        %v2789 = vpow.pop %v2788
        %v2790 = vmul.f32 %v2575, 1.442695
        %v2791 = vpow.pop %v2790
        %v2792 = vmul.f32 %v2576, 1.442695
        %v2793 = vpow.pop %v2792
        %v2794 = vmul.f32 %v2577, 1.442695
        %v2795 = vpow.pop %v2794
        %v2796 = vmul.f32 %v2578, 1.442695
        %v2797 = vpow.pop %v2796
        %v2798 = vmul.f32 %v2579, 1.442695
        %v2799 = vpow.pop %v2798
        %v2800 = vmul.f32 %v2580, 1.442695
        %v2801 = vpow.pop %v2800
        %v2802 = vmul.f32 %v2581, 1.442695
        %v2803 = vpow.pop %v2802
        %v2804 = vmul.f32 %v2582, 1.442695
        %v2805 = vpow.pop %v2804
        %v2806 = vmul.f32 %v2583, 1.442695
        %v2807 = vpow.pop %v2806
        %v2808 = vmul.f32 %v2584, 1.442695
        %v2809 = vpow.pop %v2808
        %v2810 = vmul.f32 %v2585, 1.442695
        %v2811 = vpow.pop %v2810
        %v2812 = vmul.f32 %v2586, 1.442695
        %v2813 = vpow.pop %v2812
        %v2814 = vmul.f32 %v2587, 1.442695
        %v2815 = vpow.pop %v2814
        %v2816 = vmul.f32 %v2588, 1.442695
        %v2817 = vpow.pop %v2816
        %v2818 = vmul.f32 %v2755, %v2722
        %v2819 = vmul.f32 %v2757, %v2723
        %v2820 = vmul.f32 %v2759, %v2724
        %v2821 = vmul.f32 %v2761, %v2725
        %v2822 = vmul.f32 %v2763, %v2726
        %v2823 = vmul.f32 %v2765, %v2727
        %v2824 = vmul.f32 %v2767, %v2728
        %v2825 = vmul.f32 %v2769, %v2729
        %v2826 = vmul.f32 %v2771, %v2730
        %v2827 = vmul.f32 %v2773, %v2731
        %v2828 = vmul.f32 %v2775, %v2732
        %v2829 = vmul.f32 %v2777, %v2733
        %v2830 = vmul.f32 %v2779, %v2734
        %v2831 = vmul.f32 %v2781, %v2735
        %v2832 = vmul.f32 %v2783, %v2736
        %v2833 = vmul.f32 %v2785, %v2737
        %v2834 = vmul.f32 %v2787, %v2738
        %v2835 = vmul.f32 %v2789, %v2739
        %v2836 = vmul.f32 %v2791, %v2740
        %v2837 = vmul.f32 %v2793, %v2741
        %v2838 = vmul.f32 %v2795, %v2742
        %v2839 = vmul.f32 %v2797, %v2743
        %v2840 = vmul.f32 %v2799, %v2744
        %v2841 = vmul.f32 %v2801, %v2745
        %v2842 = vmul.f32 %v2803, %v2746
        %v2843 = vmul.f32 %v2805, %v2747
        %v2844 = vmul.f32 %v2807, %v2748
        %v2845 = vmul.f32 %v2809, %v2749
        %v2846 = vmul.f32 %v2811, %v2750
        %v2847 = vmul.f32 %v2813, %v2751
        %v2848 = vmul.f32 %v2815, %v2752
        %v2849 = vmul.f32 %v2817, %v2753
        %v2850 = vmul.f32 %v1586, %v2818
        %v2851 = vmul.f32 %v1591, %v2819
        %v2852 = vmul.f32 %v1596, %v2820
        %v2853 = vmul.f32 %v1601, %v2821
        %v2854 = vmul.f32 %v1606, %v2822
        %v2855 = vmul.f32 %v1611, %v2823
        %v2856 = vmul.f32 %v1616, %v2824
        %v2857 = vmul.f32 %v1621, %v2825
        %v2858 = vmul.f32 %v1626, %v2826
        %v2859 = vmul.f32 %v1631, %v2827
        %v2860 = vmul.f32 %v1636, %v2828
        %v2861 = vmul.f32 %v1641, %v2829
        %v2862 = vmul.f32 %v1646, %v2830
        %v2863 = vmul.f32 %v1651, %v2831
        %v2864 = vmul.f32 %v1656, %v2832
        %v2865 = vmul.f32 %v1661, %v2833
        %v2866 = vmul.f32 %v1666, %v2834
        %v2867 = vmul.f32 %v1671, %v2835
        %v2868 = vmul.f32 %v1676, %v2836
        %v2869 = vmul.f32 %v1681, %v2837
        %v2870 = vmul.f32 %v1686, %v2838
        %v2871 = vmul.f32 %v1691, %v2839
        %v2872 = vmul.f32 %v1696, %v2840
        %v2873 = vmul.f32 %v1701, %v2841
        %v2874 = vmul.f32 %v1706, %v2842
        %v2875 = vmul.f32 %v1711, %v2843
        %v2876 = vmul.f32 %v1716, %v2844
        %v2877 = vmul.f32 %v1721, %v2845
        %v2878 = vmul.f32 %v1726, %v2846
        %v2879 = vmul.f32 %v1731, %v2847
        %v2880 = vmul.f32 %v1736, %v2848
        %v2881 = vmul.f32 %v1741, %v2849
        %v2882 = vsel %vm2396, %v2850, %v2818
        %v2883 = vsel %vm2396, %v2851, %v2819
        %v2884 = vsel %vm2396, %v2852, %v2820
        %v2885 = vsel %vm2396, %v2853, %v2821
        %v2886 = vsel %vm2396, %v2854, %v2822
        %v2887 = vsel %vm2396, %v2855, %v2823
        %v2888 = vsel %vm2396, %v2856, %v2824
        %v2889 = vsel %vm2396, %v2857, %v2825
        %v2890 = vsel %vm2396, %v2858, %v2826
        %v2891 = vsel %vm2396, %v2859, %v2827
        %v2892 = vsel %vm2396, %v2860, %v2828
        %v2893 = vsel %vm2396, %v2861, %v2829
        %v2894 = vsel %vm2396, %v2862, %v2830
        %v2895 = vsel %vm2396, %v2863, %v2831
        %v2896 = vsel %vm2396, %v2864, %v2832
        %v2897 = vsel %vm2396, %v2865, %v2833
        %v2898 = vsel %vm2396, %v2866, %v2834
        %v2899 = vsel %vm2396, %v2867, %v2835
        %v2900 = vsel %vm2396, %v2868, %v2836
        %v2901 = vsel %vm2396, %v2869, %v2837
        %v2902 = vsel %vm2396, %v2870, %v2838
        %v2903 = vsel %vm2396, %v2871, %v2839
        %v2904 = vsel %vm2396, %v2872, %v2840
        %v2905 = vsel %vm2396, %v2873, %v2841
        %v2906 = vsel %vm2396, %v2874, %v2842
        %v2907 = vsel %vm2396, %v2875, %v2843
        %v2908 = vsel %vm2396, %v2876, %v2844
        %v2909 = vsel %vm2396, %v2877, %v2845
        %v2910 = vsel %vm2396, %v2878, %v2846
        %v2911 = vsel %vm2396, %v2879, %v2847
        %v2912 = vsel %vm2396, %v2880, %v2848
        %v2913 = vsel %vm2396, %v2881, %v2849
        %v2914 = vmul.f32 %v1262, %v2818
        %v2915 = vmul.f32 %v1267, %v2819
        %v2916 = vmul.f32 %v1272, %v2820
        %v2917 = vmul.f32 %v1277, %v2821
        %v2918 = vmul.f32 %v1282, %v2822
        %v2919 = vmul.f32 %v1287, %v2823
        %v2920 = vmul.f32 %v1292, %v2824
        %v2921 = vmul.f32 %v1297, %v2825
        %v2922 = vmul.f32 %v1302, %v2826
        %v2923 = vmul.f32 %v1307, %v2827
        %v2924 = vmul.f32 %v1312, %v2828
        %v2925 = vmul.f32 %v1317, %v2829
        %v2926 = vmul.f32 %v1322, %v2830
        %v2927 = vmul.f32 %v1327, %v2831
        %v2928 = vmul.f32 %v1332, %v2832
        %v2929 = vmul.f32 %v1337, %v2833
        %v2930 = vmul.f32 %v1342, %v2834
        %v2931 = vmul.f32 %v1347, %v2835
        %v2932 = vmul.f32 %v1352, %v2836
        %v2933 = vmul.f32 %v1357, %v2837
        %v2934 = vmul.f32 %v1362, %v2838
        %v2935 = vmul.f32 %v1367, %v2839
        %v2936 = vmul.f32 %v1372, %v2840
        %v2937 = vmul.f32 %v1377, %v2841
        %v2938 = vmul.f32 %v1382, %v2842
        %v2939 = vmul.f32 %v1387, %v2843
        %v2940 = vmul.f32 %v1392, %v2844
        %v2941 = vmul.f32 %v1397, %v2845
        %v2942 = vmul.f32 %v1402, %v2846
        %v2943 = vmul.f32 %v1407, %v2847
        %v2944 = vmul.f32 %v1412, %v2848
        %v2945 = vmul.f32 %v1417, %v2849
        %v2946 = vsel %vm2396, %v2914, %v2818
        %v2947 = vsel %vm2396, %v2915, %v2819
        %v2948 = vsel %vm2396, %v2916, %v2820
        %v2949 = vsel %vm2396, %v2917, %v2821
        %v2950 = vsel %vm2396, %v2918, %v2822
        %v2951 = vsel %vm2396, %v2919, %v2823
        %v2952 = vsel %vm2396, %v2920, %v2824
        %v2953 = vsel %vm2396, %v2921, %v2825
        %v2954 = vsel %vm2396, %v2922, %v2826
        %v2955 = vsel %vm2396, %v2923, %v2827
        %v2956 = vsel %vm2396, %v2924, %v2828
        %v2957 = vsel %vm2396, %v2925, %v2829
        %v2958 = vsel %vm2396, %v2926, %v2830
        %v2959 = vsel %vm2396, %v2927, %v2831
        %v2960 = vsel %vm2396, %v2928, %v2832
        %v2961 = vsel %vm2396, %v2929, %v2833
        %v2962 = vsel %vm2396, %v2930, %v2834
        %v2963 = vsel %vm2396, %v2931, %v2835
        %v2964 = vsel %vm2396, %v2932, %v2836
        %v2965 = vsel %vm2396, %v2933, %v2837
        %v2966 = vsel %vm2396, %v2934, %v2838
        %v2967 = vsel %vm2396, %v2935, %v2839
        %v2968 = vsel %vm2396, %v2936, %v2840
        %v2969 = vsel %vm2396, %v2937, %v2841
        %v2970 = vsel %vm2396, %v2938, %v2842
        %v2971 = vsel %vm2396, %v2939, %v2843
        %v2972 = vsel %vm2396, %v2940, %v2844
        %v2973 = vsel %vm2396, %v2941, %v2845
        %v2974 = vsel %vm2396, %v2942, %v2846
        %v2975 = vsel %vm2396, %v2943, %v2847
        %v2976 = vsel %vm2396, %v2944, %v2848
        %v2977 = vsel %vm2396, %v2945, %v2849
        %2978 = vxpose.xlu0.b32.start [1/16] %v617, 128
        %2979 = vxpose.xlu0.b32.cont [2/16] %v618, 128
        %2980 = vxpose.xlu0.b32.cont [3/16] %v619, 128
        %2981 = vxpose.xlu0.b32.cont [4/16] %v620, 128
        %2982 = vxpose.xlu0.b32.cont [5/16] %v621, 128
        %2983 = vxpose.xlu0.b32.cont [6/16] %v622, 128
        %2984 = vxpose.xlu0.b32.cont [7/16] %v623, 128
        %2985 = vxpose.xlu0.b32.cont [8/16] %v624, 128
        %2986 = vxpose.xlu0.b32.cont [9/16] %v625, 128
        %2987 = vxpose.xlu0.b32.cont [10/16] %v626, 128
        %2988 = vxpose.xlu0.b32.cont [11/16] %v627, 128
        %2989 = vxpose.xlu0.b32.cont [12/16] %v628, 128
        %2990 = vxpose.xlu0.b32.cont [13/16] %v629, 128
        %2991 = vxpose.xlu0.b32.cont [14/16] %v630, 128
        %2992 = vxpose.xlu0.b32.cont [15/16] %v631, 128
        %2993 = vxpose.xlu0.b32.end [16/16] %v632, 128
        %v2994 = vpop.trf.xlu0
        %v2995 = vpop.trf.xlu0
        %v2996 = vpop.trf.xlu0
        %v2997 = vpop.trf.xlu0
        %v2998 = vpop.trf.xlu0
        %v2999 = vpop.trf.xlu0
        %v3000 = vpop.trf.xlu0
        %v3001 = vpop.trf.xlu0
        %v3002 = vpop.trf.xlu0
        %v3003 = vpop.trf.xlu0
        %v3004 = vpop.trf.xlu0
        %v3005 = vpop.trf.xlu0
        %v3006 = vpop.trf.xlu0
        %v3007 = vpop.trf.xlu0
        %v3008 = vpop.trf.xlu0
        %v3009 = vpop.trf.xlu0
        %3010 = vxpose.xlu0.b32.start [1/16] %v633, 128
        %3011 = vxpose.xlu0.b32.cont [2/16] %v634, 128
        %3012 = vxpose.xlu0.b32.cont [3/16] %v635, 128
        %3013 = vxpose.xlu0.b32.cont [4/16] %v636, 128
        %3014 = vxpose.xlu0.b32.cont [5/16] %v637, 128
        %3015 = vxpose.xlu0.b32.cont [6/16] %v638, 128
        %3016 = vxpose.xlu0.b32.cont [7/16] %v639, 128
        %3017 = vxpose.xlu0.b32.cont [8/16] %v640, 128
        %3018 = vxpose.xlu0.b32.cont [9/16] %v641, 128
        %3019 = vxpose.xlu0.b32.cont [10/16] %v642, 128
        %3020 = vxpose.xlu0.b32.cont [11/16] %v643, 128
        %3021 = vxpose.xlu0.b32.cont [12/16] %v644, 128
        %3022 = vxpose.xlu0.b32.cont [13/16] %v645, 128
        %3023 = vxpose.xlu0.b32.cont [14/16] %v646, 128
        %3024 = vxpose.xlu0.b32.cont [15/16] %v647, 128
        %3025 = vxpose.xlu0.b32.end [16/16] %v648, 128
        %v3026 = vpop.trf.xlu0
        %v3027 = vpop.trf.xlu0
        %v3028 = vpop.trf.xlu0
        %v3029 = vpop.trf.xlu0
        %v3030 = vpop.trf.xlu0
        %v3031 = vpop.trf.xlu0
        %v3032 = vpop.trf.xlu0
        %v3033 = vpop.trf.xlu0
        %v3034 = vpop.trf.xlu0
        %v3035 = vpop.trf.xlu0
        %v3036 = vpop.trf.xlu0
        %v3037 = vpop.trf.xlu0
        %v3038 = vpop.trf.xlu0
        %v3039 = vpop.trf.xlu0
        %v3040 = vpop.trf.xlu0
        %v3041 = vpop.trf.xlu0
        %3042 = vmatprep.subr.mxu0 0.0
        %3043 = vmatpush1.msra.mxu0 %v2882
        %3044 = vmatprep.subr.mxu0 0.0
        %3045 = vmatpush1.msra.mxu0 %v2883
        %3046 = vmatprep.subr.mxu0 0.0
        %3047 = vmatpush1.msra.mxu0 %v2884
        %3048 = vmatprep.subr.mxu0 0.0
        %3049 = vmatpush1.msra.mxu0 %v2885
        %3050 = vmatprep.subr.mxu0 0.0
        %3051 = vmatpush1.msra.mxu0 %v2886
        %3052 = vmatprep.subr.mxu0 0.0
        %3053 = vmatpush1.msra.mxu0 %v2887
        %3054 = vmatprep.subr.mxu0 0.0
        %3055 = vmatpush1.msra.mxu0 %v2888
        %3056 = vmatprep.subr.mxu0 0.0
        %3057 = vmatpush1.msra.mxu0 %v2889
        %3058 = vmatprep.subr.mxu0 0.0
        %3059 = vmatpush1.msra.mxu0 %v2890
        %3060 = vmatprep.subr.mxu0 0.0
        %3061 = vmatpush1.msra.mxu0 %v2891
        %3062 = vmatprep.subr.mxu0 0.0
        %3063 = vmatpush1.msra.mxu0 %v2892
        %3064 = vmatprep.subr.mxu0 0.0
        %3065 = vmatpush1.msra.mxu0 %v2893
        %3066 = vmatprep.subr.mxu0 0.0
        %3067 = vmatpush1.msra.mxu0 %v2894
        %3068 = vmatprep.subr.mxu0 0.0
        %3069 = vmatpush1.msra.mxu0 %v2895
        %3070 = vmatprep.subr.mxu0 0.0
        %3071 = vmatpush1.msra.mxu0 %v2896
        %3072 = vmatprep.subr.mxu0 0.0
        %3073 = vmatpush1.msra.mxu0 %v2897
        %3074 = vmatprep.subr.mxu0 0.0
        %3075 = vmatpush1.msra.mxu0 %v2898
        %3076 = vmatprep.subr.mxu0 0.0
        %3077 = vmatpush1.msra.mxu0 %v2899
        %3078 = vmatprep.subr.mxu0 0.0
        %3079 = vmatpush1.msra.mxu0 %v2900
        %3080 = vmatprep.subr.mxu0 0.0
        %3081 = vmatpush1.msra.mxu0 %v2901
        %3082 = vmatprep.subr.mxu0 0.0
        %3083 = vmatpush1.msra.mxu0 %v2902
        %3084 = vmatprep.subr.mxu0 0.0
        %3085 = vmatpush1.msra.mxu0 %v2903
        %3086 = vmatprep.subr.mxu0 0.0
        %3087 = vmatpush1.msra.mxu0 %v2904
        %3088 = vmatprep.subr.mxu0 0.0
        %3089 = vmatpush1.msra.mxu0 %v2905
        %3090 = vmatprep.subr.mxu0 0.0
        %3091 = vmatpush1.msra.mxu0 %v2906
        %3092 = vmatprep.subr.mxu0 0.0
        %3093 = vmatpush1.msra.mxu0 %v2907
        %3094 = vmatprep.subr.mxu0 0.0
        %3095 = vmatpush1.msra.mxu0 %v2908
        %3096 = vmatprep.subr.mxu0 0.0
        %3097 = vmatpush1.msra.mxu0 %v2909
        %3098 = vmatprep.subr.mxu0 0.0
        %3099 = vmatpush1.msra.mxu0 %v2910
        %3100 = vmatprep.subr.mxu0 0.0
        %3101 = vmatpush1.msra.mxu0 %v2911
        %3102 = vmatprep.subr.mxu0 0.0
        %3103 = vmatpush1.msra.mxu0 %v2912
        %3104 = vmatprep.subr.mxu0 0.0
        %3105 = vmatpush1.msra.mxu0 %v2913
        %3106 = vmatprep.mubr.f32.mxu0 %v3026
        %3107 = vmatmul.mubr.f32.gmra.mrb[0].mxu0 %v2994
        %v3108 = vpop.f32.mrb[0].mxu0
        %v3109 = vadd.f32 0.0, %v3108
        %v3110 = vpop.f32.mrb[0].mxu0
        %3111 = vdwg.mxu0
        %3112 = vxpose.xlu0.b32.start [1/16] %v841, 128
        %3113 = vxpose.xlu0.b32.cont [2/16] %v842, 128
        %3114 = vxpose.xlu0.b32.cont [3/16] %v843, 128
        %3115 = vxpose.xlu0.b32.cont [4/16] %v844, 128
        %3116 = vxpose.xlu0.b32.cont [5/16] %v845, 128
        %3117 = vxpose.xlu0.b32.cont [6/16] %v846, 128
        %3118 = vxpose.xlu0.b32.cont [7/16] %v847, 128
        %3119 = vxpose.xlu0.b32.cont [8/16] %v848, 128
        %3120 = vxpose.xlu0.b32.cont [9/16] %v849, 128
        %3121 = vxpose.xlu0.b32.cont [10/16] %v850, 128
        %3122 = vxpose.xlu0.b32.cont [11/16] %v851, 128
        %3123 = vxpose.xlu0.b32.cont [12/16] %v852, 128
        %3124 = vxpose.xlu0.b32.cont [13/16] %v853, 128
        %3125 = vxpose.xlu0.b32.cont [14/16] %v854, 128
        %3126 = vxpose.xlu0.b32.cont [15/16] %v855, 128
        %3127 = vxpose.xlu0.b32.end [16/16] %v856, 128
        %v3128 = vpop.trf.xlu0
        %v3129 = vpop.trf.xlu0
        %v3130 = vpop.trf.xlu0
        %v3131 = vpop.trf.xlu0
        %v3132 = vpop.trf.xlu0
        %v3133 = vpop.trf.xlu0
        %v3134 = vpop.trf.xlu0
        %v3135 = vpop.trf.xlu0
        %v3136 = vpop.trf.xlu0
        %v3137 = vpop.trf.xlu0
        %v3138 = vpop.trf.xlu0
        %v3139 = vpop.trf.xlu0
        %v3140 = vpop.trf.xlu0
        %v3141 = vpop.trf.xlu0
        %v3142 = vpop.trf.xlu0
        %v3143 = vpop.trf.xlu0
        %3144 = vxpose.xlu0.b32.start [1/16] %v857, 128
        %3145 = vxpose.xlu0.b32.cont [2/16] %v858, 128
        %3146 = vxpose.xlu0.b32.cont [3/16] %v859, 128
        %3147 = vxpose.xlu0.b32.cont [4/16] %v860, 128
        %3148 = vxpose.xlu0.b32.cont [5/16] %v861, 128
        %3149 = vxpose.xlu0.b32.cont [6/16] %v862, 128
        %3150 = vxpose.xlu0.b32.cont [7/16] %v863, 128
        %3151 = vxpose.xlu0.b32.cont [8/16] %v864, 128
        %3152 = vxpose.xlu0.b32.cont [9/16] %v865, 128
        %3153 = vxpose.xlu0.b32.cont [10/16] %v866, 128
        %3154 = vxpose.xlu0.b32.cont [11/16] %v867, 128
        %3155 = vxpose.xlu0.b32.cont [12/16] %v868, 128
        %3156 = vxpose.xlu0.b32.cont [13/16] %v869, 128
        %3157 = vxpose.xlu0.b32.cont [14/16] %v870, 128
        %3158 = vxpose.xlu0.b32.cont [15/16] %v871, 128
        %3159 = vxpose.xlu0.b32.end [16/16] %v872, 128
        %v3160 = vpop.trf.xlu0
        %v3161 = vpop.trf.xlu0
        %v3162 = vpop.trf.xlu0
        %v3163 = vpop.trf.xlu0
        %v3164 = vpop.trf.xlu0
        %v3165 = vpop.trf.xlu0
        %v3166 = vpop.trf.xlu0
        %v3167 = vpop.trf.xlu0
        %v3168 = vpop.trf.xlu0
        %v3169 = vpop.trf.xlu0
        %v3170 = vpop.trf.xlu0
        %v3171 = vpop.trf.xlu0
        %v3172 = vpop.trf.xlu0
        %v3173 = vpop.trf.xlu0
        %v3174 = vpop.trf.xlu0
        %v3175 = vpop.trf.xlu0
        %3176 = vmatprep.subr.mxu0 0.0
        %3177 = vmatpush1.msra.mxu0 %v2946
        %3178 = vmatprep.subr.mxu0 0.0
        %3179 = vmatpush1.msra.mxu0 %v2947
        %3180 = vmatprep.subr.mxu0 0.0
        %3181 = vmatpush1.msra.mxu0 %v2948
        %3182 = vmatprep.subr.mxu0 0.0
        %3183 = vmatpush1.msra.mxu0 %v2949
        %3184 = vmatprep.subr.mxu0 0.0
        %3185 = vmatpush1.msra.mxu0 %v2950
        %3186 = vmatprep.subr.mxu0 0.0
        %3187 = vmatpush1.msra.mxu0 %v2951
        %3188 = vmatprep.subr.mxu0 0.0
        %3189 = vmatpush1.msra.mxu0 %v2952
        %3190 = vmatprep.subr.mxu0 0.0
        %3191 = vmatpush1.msra.mxu0 %v2953
        %3192 = vmatprep.subr.mxu0 0.0
        %3193 = vmatpush1.msra.mxu0 %v2954
        %3194 = vmatprep.subr.mxu0 0.0
        %3195 = vmatpush1.msra.mxu0 %v2955
        %3196 = vmatprep.subr.mxu0 0.0
        %3197 = vmatpush1.msra.mxu0 %v2956
        %3198 = vmatprep.subr.mxu0 0.0
        %3199 = vmatpush1.msra.mxu0 %v2957
        %3200 = vmatprep.subr.mxu0 0.0
        %3201 = vmatpush1.msra.mxu0 %v2958
        %3202 = vmatprep.subr.mxu0 0.0
        %3203 = vmatpush1.msra.mxu0 %v2959
        %3204 = vmatprep.subr.mxu0 0.0
        %3205 = vmatpush1.msra.mxu0 %v2960
        %3206 = vmatprep.subr.mxu0 0.0
        %3207 = vmatpush1.msra.mxu0 %v2961
        %3208 = vmatprep.subr.mxu0 0.0
        %3209 = vmatpush1.msra.mxu0 %v2962
        %3210 = vmatprep.subr.mxu0 0.0
        %3211 = vmatpush1.msra.mxu0 %v2963
        %3212 = vmatprep.subr.mxu0 0.0
        %3213 = vmatpush1.msra.mxu0 %v2964
        %3214 = vmatprep.subr.mxu0 0.0
        %3215 = vmatpush1.msra.mxu0 %v2965
        %3216 = vmatprep.subr.mxu0 0.0
        %3217 = vmatpush1.msra.mxu0 %v2966
        %3218 = vmatprep.subr.mxu0 0.0
        %3219 = vmatpush1.msra.mxu0 %v2967
        %3220 = vmatprep.subr.mxu0 0.0
        %3221 = vmatpush1.msra.mxu0 %v2968
        %3222 = vmatprep.subr.mxu0 0.0
        %3223 = vmatpush1.msra.mxu0 %v2969
        %3224 = vmatprep.subr.mxu0 0.0
        %3225 = vmatpush1.msra.mxu0 %v2970
        %3226 = vmatprep.subr.mxu0 0.0
        %3227 = vmatpush1.msra.mxu0 %v2971
        %3228 = vmatprep.subr.mxu0 0.0
        %3229 = vmatpush1.msra.mxu0 %v2972
        %3230 = vmatprep.subr.mxu0 0.0
        %3231 = vmatpush1.msra.mxu0 %v2973
        %3232 = vmatprep.subr.mxu0 0.0
        %3233 = vmatpush1.msra.mxu0 %v2974
        %3234 = vmatprep.subr.mxu0 0.0
        %3235 = vmatpush1.msra.mxu0 %v2975
        %3236 = vmatprep.subr.mxu0 0.0
        %3237 = vmatpush1.msra.mxu0 %v2976
        %3238 = vmatprep.subr.mxu0 0.0
        %3239 = vmatpush1.msra.mxu0 %v2977
        %3240 = vmatprep.mubr.f32.mxu0 %v3160
        %3241 = vmatmul.mubr.f32.gmra.mrb[0].mxu0 %v3128
        %v3242 = vpop.f32.mrb[0].mxu0
        %v3243 = vadd.f32 0.0, %v3242
        %v3244 = vpop.f32.mrb[0].mxu0
        %3245 = vmatprep.mubr.f32.mxu0 %v3161
        %3246 = vmatmul.mubr.f32.gmra.mrb[0].mxu0 %v3129
        %v3247 = vpop.f32.mrb[0].mxu0
        %v3248 = vadd.f32 0.0, %v3247
        %v3249 = vpop.f32.mrb[0].mxu0
        %3250 = vdwg.mxu0
        %v3251 = vld [vmem:[%s377] sm:$0xff]
        %v3252 = vadd.f32 %v3251, %v3109
        %vm3253 = vcmask 269312
        %3254 = vst.msk [vmem:[%s377] sm:$0xff] %vm3253, %v3252
        %v3255 = vld [vmem:[%s384] sm:$0xff]
        %v3256 = vld [vmem:[%s384 + $0x8] sm:$0xff]
        %v3257 = vadd.f32 %v3255, %v3243
        %v3258 = vadd.f32 %v3256, %v3248
        %3259 = vst.msk [vmem:[%s384] sm:$0xff] %vm3253, %v3257
        %3260 = vst.msk [vmem:[%s384 + $0x8] sm:$0xff] %vm3253, %v3258
        %s3261 = sand.u32 %s220, 1
        %s3262 = scalar_lea.sflag [#allocation3], %s3261
        %s3263 = sand.u32 %s220, 1
        %s3264 = smul.addr %s3263, 8
        %s3265 = scalar_lea.vmem [#allocation2], %s3264
        %s3266 = sand.u32 %s246, 1
        %s3267 = scalar_lea.sflag [#allocation5], %s3266
        %s3268 = sand.u32 %s246, 1
        %s3269 = smul.addr %s3268, 16
        %s3270 = scalar_lea.vmem [#allocation4], %s3269
        // Predicated region
        $region53: #{tpu_custom_call.1} parent=47 // pred_check
          %p3271 = pneg %p230
        $region54: #{tpu_custom_call.1} parent=47 // pred_check_branch
          %3273 = sbr.rel (%p3271) target = $region56
        $region55: #{tpu_custom_call.1} parent=47 // pred_region
          %s3275 = ssub.s32 128, 128
          %3276 = vsyncadd %s3262, %s3275
          %s3277 = smul.addr %s30, 128
          %s3278 = scalar_lea.hbm %s7, %s3277
          %s3280 = sshll.u32 %s3265, 4
          %s3281 = int_to_ptr.vmem [resolvable:$true] %s3280
          %3283 = dma.vmem_to_hbm [thread:$0]  %s3281, 128, %s3278, %s3262
        $region56: #{tpu_custom_call.1} parent=47 // pred_fallthru
          _
        // Predicated region
        $region57: #{tpu_custom_call.1} parent=47 // pred_check
          %p3284 = pneg %p256
        $region58: #{tpu_custom_call.1} parent=47 // pred_check_branch
          %3286 = sbr.rel (%p3284) target = $region60
        $region59: #{tpu_custom_call.1} parent=47 // pred_region
          %s3288 = ssub.s32 256, 256
          %3289 = vsyncadd %s3267, %s3288
          %s3290 = smul.addr %s30, 2
          %s3291 = smul.addr %s3290, 128
          %s3292 = scalar_lea.hbm %s8, %s3291
          %s3293 = sshll.u32 %s3270, 4
          %s3294 = int_to_ptr.vmem [resolvable:$true] %s3293
          %3299 = dma.vmem_to_hbm [thread:$0]  %s3294, 256, %s3292, %s3267, 128, 128, 8
        $region60: #{tpu_custom_call.1} parent=47 // pred_fallthru
          _
      $region48: #{tpu_custom_call.1} parent=5 // pred_fallthru
        _
      %p3300 = scmp.le.s32.totalorder 2, %s21
      // Predicated region
      $region61: #{tpu_custom_call.1} parent=5 // pred_check
        %p3301 = pneg %p3300
      $region62: #{tpu_custom_call.1} parent=5 // pred_check_branch
        %3303 = sbr.rel (%p3301) target = $region64
      $region63: #{tpu_custom_call.1} parent=5 // pred_region
        %s3304 = ssub.s32 %s21, 2
        // Predicated region
        $region65: #{tpu_custom_call.1} parent=63 // pred_check
          %p3305 = pneg %p236
        $region66: #{tpu_custom_call.1} parent=63 // pred_check_branch
          %3307 = sbr.rel (%p3305) target = $region68
        $region67: #{tpu_custom_call.1} parent=63 // pred_region
          %s3308 = sand.u32 %s221, 1
          %s3309 = scalar_lea.sflag [#allocation3], %s3308
          %s3310 = sand.u32 %s221, 1
          %s3311 = smul.addr %s3310, 8
          %s3312 = scalar_lea.vmem [#allocation2], %s3311
          %3313 = dma.done %s3309, 128
        $region68: #{tpu_custom_call.1} parent=63 // pred_fallthru
          _
        // Predicated region
        $region69: #{tpu_custom_call.1} parent=63 // pred_check
          %p3314 = pneg %p262
        $region70: #{tpu_custom_call.1} parent=63 // pred_check_branch
          %3316 = sbr.rel (%p3314) target = $region72
        $region71: #{tpu_custom_call.1} parent=63 // pred_region
          %s3317 = sand.u32 %s247, 1
          %s3318 = scalar_lea.sflag [#allocation5], %s3317
          %s3319 = sand.u32 %s247, 1
          %s3320 = smul.addr %s3319, 16
          %s3321 = scalar_lea.vmem [#allocation4], %s3320
          %3322 = dma.done %s3318, 256
        $region72: #{tpu_custom_call.1} parent=63 // pred_fallthru
          _
      $region64: #{tpu_custom_call.1} parent=5 // pred_fallthru
        _
    $region6: #{tpu_custom_call.1} parent=1 // loop_footer
      %s25 = sadd.s32 1, %s21
    $region7: #{tpu_custom_call.1} parent=1 // loop_footer_branch
      %20 = sbr.rel target = $region3
    $region8: #{tpu_custom_call.1} parent=1 // loop_exit
      _
    %3323 = vsyncpa [#allocation3], 1
    %s3324 = scalar_lea.sflag [#allocation3], 1
    %3325 = vsyncpa %s3324, 1
    %3326 = vsyncpa [#allocation5], 1
    %s3327 = scalar_lea.sflag [#allocation5], 1
    %3328 = vsyncpa %s3327, 1

</llo_original>
